<compile_context>
chip_gen: v7x
topology: tpu7x:2x2x1
jax: 0.10.0
libtpu: 0.0.40
codegen_flags: <defaults>
</compile_context>

<pallas_src>
import math

import jax
import jax.numpy as jnp
from jax.experimental import pallas as pl
from jax.experimental.pallas import tpu as pltpu


MM_DTYPE = jnp.bfloat16   # MXU input dtype for the conv matmuls (f32 accumulate)
GUARD = 128               # lane-aligned guard so the scratch stores stay aligned
BN_EPS = 1e-5


# ----------------------------- pallas plumbing ------------------------------

def _zero_map(ndim):
    return lambda i: (0,) * ndim


def _full_call(kernel, out_struct, args, scratch_shapes=()):
    """Single-step grid with every operand as one full-array VMEM block."""
    in_specs = [pl.BlockSpec(a.shape, _zero_map(a.ndim)) for a in args]
    out_specs = pl.BlockSpec(out_struct.shape, _zero_map(len(out_struct.shape)))
    return pl.pallas_call(
        kernel,
        grid=(1,),
        in_specs=in_specs,
        out_specs=out_specs,
        out_shape=out_struct,
        scratch_shapes=list(scratch_shapes),
        compiler_params=pltpu.CompilerParams(
            dimension_semantics=("arbitrary",)),
    )(*args)


# ----------------------------- fused block kernel ---------------------------

def _make_wide_basic_kernel(cin, planes, mp, wp, count, has_shortcut):
    """bn1+relu -> conv1 -> bn2+relu -> conv2(stride) -> shortcut -> add."""
    offs = [(dy - 1) * wp + (dx - 1) for dy in range(3) for dx in range(3)]
    inv_count = 1.0 / float(count)

    def bn_relu(v, gamma, beta, mask):
        # Training-mode batch stats over the valid (non-pad) columns only.
        vm = v * mask
        mean = jnp.sum(vm, axis=1, keepdims=True) * inv_count
        ex2 = jnp.sum(vm * vm, axis=1, keepdims=True) * inv_count
        inv = jax.lax.rsqrt(ex2 - mean * mean + BN_EPS)
        # mask re-zeroes the pad frame so the conv taps see zero padding.
        return jnp.maximum((v - mean) * (inv * gamma) + beta, 0.0) * mask

    def conv3x3(w_ref, hbuf):
        # 9 accumulated (planes, K) @ (K, mp) bf16 MXU matmuls over shifted
        # slices of the guard-padded VMEM scratch (in-kernel im2col).
        acc = None
        for t, off in enumerate(offs):
            w_t = w_ref[t * planes:(t + 1) * planes, :].astype(MM_DTYPE)
            h_t = hbuf[:, GUARD + off:GUARD + off + mp].astype(MM_DTYPE)
            d = jnp.dot(w_t, h_t, preferred_element_type=jnp.float32)
            acc = d if acc is None else acc + d
        return acc

    def kernel(*refs):
        if has_shortcut:
            (x_ref, mask_ref, g1_ref, b1_ref, w1_ref, c1b_ref,
             g2_ref, b2_ref, w2_ref, c2b_ref, wsc_ref, bsc_ref, sel_ref,
             o_ref, h1buf, h2buf) = refs
        else:
            (x_ref, mask_ref, g1_ref, b1_ref, w1_ref, c1b_ref,
             g2_ref, b2_ref, w2_ref, c2b_ref, sel_ref,
             o_ref, h1buf, h2buf) = refs

        x = x_ref[...]            # (cin, mp) padded-flat activation, f32
        mask = mask_ref[...]      # (1, mp)   1 inside the frame, 0 on padding

        # ---- bn1 + relu ----
        h1 = bn_relu(x, g1_ref[...], b1_ref[...], mask)
        h1buf[...] = jnp.zeros_like(h1buf)
        h1buf[:, GUARD:GUARD + mp] = h1

        # ---- conv1: 3x3, stride 1, pad 1 (dense over the padded grid) ----
        a1 = conv3x3(w1_ref, h1buf) + c1b_ref[...]

        # ---- bn2 + relu ----
        h2 = bn_relu(a1, g2_ref[...], b2_ref[...], mask)
        h2buf[...] = jnp.zeros_like(h2buf)
        h2buf[:, GUARD:GUARD + mp] = h2

        # ---- conv2: 3x3, pad 1 (dense); stride handled by the selection ----
        a2 = conv3x3(w2_ref, h2buf) + c2b_ref[...]

        # ---- stride-s subsample + pad-frame drop via 0/1 selection matmul ----
        sel = sel_ref[...]                                            # (mp, mo)
        y = jnp.dot(a2, sel, preferred_element_type=jnp.float32)      # (planes, mo)

        # ---- shortcut (strided 1x1 conv or identity) + residual add ----
        x_sel = jnp.dot(x, sel, preferred_element_type=jnp.float32)   # (cin, mo)
        if has_shortcut:
            sc = jnp.dot(wsc_ref[...], x_sel,
                         preferred_element_type=jnp.float32) + bsc_ref[...]
        else:
            sc = x_sel            # identity path: cin == planes, stride == 1
        o_ref[...] = (y + sc).astype(o_ref.dtype)

    return kernel


# ----------------------------- host-side helpers ----------------------------

def _valid_mask(batch, h, w):
    hp, wp = h + 2, w + 2
    m = jnp.zeros((hp, wp), jnp.float32).at[1:h + 1, 1:w + 1].set(1.0)
    return jnp.tile(m.reshape(-1), (batch,)).reshape(1, batch * hp * wp)


def _selection_matrix(batch, h, w, stride):
    """0/1 matrix mapping dense padded columns -> strided, unpadded outputs."""
    hp, wp = h + 2, w + 2
    ho = (h - 1) // stride + 1
    wo = (w - 1) // stride + 1
    mp, mo = batch * hp * wp, batch * ho * wo
    b = jnp.arange(batch)[:, None, None]
    y = jnp.arange(ho)[None, :, None]
    x = jnp.arange(wo)[None, None, :]
    src = (b * hp * wp + (stride * y + 1) * wp + (stride * x + 1)).reshape(-1)
    return jnp.zeros((mp, mo), jnp.float32).at[src, jnp.arange(mo)].set(1.0)


def wide_basic_forward(params, x_nchw):
    """Fused Pallas forward of one wide_basic block. NCHW in, NCHW out."""
    stride = params['stride']
    w1, c1b = params['conv1']
    w2, c2b = params['conv2']
    g1, b1 = params['bn1']
    g2, b2 = params['bn2']

    batch, cin, h, w = x_nchw.shape
    planes = w1.shape[0]
    hp, wp = h + 2, w + 2
    ho = (h - 1) // stride + 1
    wo = (w - 1) // stride + 1
    mp, mo = batch * hp * wp, batch * ho * wo
    has_shortcut = params['shortcut'] is not None

    # NCHW -> lane-dense padded-flat (C, B*Hp*Wp): channels on sublanes,
    # flattened padded spatial on lanes (layout plumbing, done once per block).
    xc = jnp.transpose(x_nchw, (1, 0, 2, 3)).astype(jnp.float32)
    xp = jnp.pad(xc, ((0, 0), (0, 0), (1, 1), (1, 1)))
    x2 = xp.reshape(cin, mp)

    mask = _valid_mask(batch, h, w)
    sel = _selection_matrix(batch, h, w, stride)

    # Per-tap stacked weights: rows [t*planes:(t+1)*planes] hold tap t=(dy,dx).
    w1t = jnp.transpose(w1, (2, 3, 0, 1)).reshape(9 * planes, cin)
    w2t = jnp.transpose(w2, (2, 3, 0, 1)).reshape(9 * planes, planes)

    args = [x2, mask,
            g1.reshape(cin, 1), b1.reshape(cin, 1), w1t, c1b.reshape(planes, 1),
            g2.reshape(planes, 1), b2.reshape(planes, 1), w2t,
            c2b.reshape(planes, 1)]
    if has_shortcut:
        wsc, bsc = params['shortcut']
        args += [wsc.reshape(planes, cin), bsc.reshape(planes, 1)]
    args += [sel]

    kernel = _make_wide_basic_kernel(cin, planes, mp, wp, batch * h * w,
                                     has_shortcut)
    out2 = _full_call(
        kernel,
        jax.ShapeDtypeStruct((planes, mo), jnp.float32),
        args,
        scratch_shapes=(pltpu.VMEM((cin, mp + 2 * GUARD), jnp.float32),
                        pltpu.VMEM((planes, mp + 2 * GUARD), jnp.float32)))
    return jnp.transpose(out2.reshape(planes, batch, ho, wo), (1, 0, 2, 3))


# ----------------------------- parameters -----------------------------------

def init_wide_basic(key, in_planes, planes, stride=1):
    ks = jax.random.split(key, 5)

    def conv_p(k, cout, cin_, ksz):
        kw, kb = jax.random.split(k)
        w = (jax.random.normal(kw, (cout, cin_, ksz, ksz), jnp.float32)
             / math.sqrt(cin_ * ksz * ksz))
        b = jax.random.normal(kb, (cout,), jnp.float32) * 0.05
        return w, b

    def bn_p(k, c):
        kg, kb = jax.random.split(k)
        return (1.0 + 0.1 * jax.random.normal(kg, (c,), jnp.float32),
                0.1 * jax.random.normal(kb, (c,), jnp.float32))

    return {
        'stride': stride,
        'bn1': bn_p(ks[0], in_planes),
        'conv1': conv_p(ks[1], planes, in_planes, 3),
        'bn2': bn_p(ks[2], planes),
        'conv2': conv_p(ks[3], planes, planes, 3),
        'shortcut': (conv_p(ks[4], planes, in_planes, 1)
                     if (stride != 1 or in_planes != planes) else None),
    }


# ------------------ plain-JAX reference (PyTorch train-mode math) ------------

def _bn_train_ref(x, gamma, beta):
    mean = jnp.mean(x, axis=(0, 2, 3), keepdims=True)
    var = jnp.mean(jnp.square(x - mean), axis=(0, 2, 3), keepdims=True)
    xn = (x - mean) * jax.lax.rsqrt(var + BN_EPS)
    return xn * gamma.reshape(1, -1, 1, 1) + beta.reshape(1, -1, 1, 1)


def _conv_ref(x, w, b, stride, pad):
    out = jax.lax.conv_general_dilated(
        x, w, (stride, stride), [(pad, pad), (pad, pad)],
        dimension_numbers=('NCHW', 'OIHW', 'NCHW'))
    return out + b.reshape(1, -1, 1, 1)


def wide_basic_reference(params, x):
    stride = params['stride']
    out = _conv_ref(jax.nn.relu(_bn_train_ref(x, *params['bn1'])),
                    *params['conv1'], 1, 1)
    out = _conv_ref(jax.nn.relu(_bn_train_ref(out, *params['bn2'])),
                    *params['conv2'], stride, 1)
    if params['shortcut'] is not None:
        sc = _conv_ref(x, *params['shortcut'], stride, 0)
    else:
        sc = x
    return out + sc


# ----------------------------- main ------------------------------------------

if __name__ == "__main__":
    key = jax.random.PRNGKey(0)
    kb1, kb2, kx = jax.random.split(key, 3)

    batch, in_planes, planes, h, w = 2, 16, 32, 16, 16
    x = jax.random.normal(kx, (batch, in_planes, h, w), jnp.float32)

    # Downsampling block (stride 2, 1x1-conv shortcut) followed by an
    # identity-shortcut block (stride 1, planes == planes).
    blk1 = init_wide_basic(kb1, in_planes, planes, stride=2)
    blk2 = init_wide_basic(kb2, planes, planes, stride=1)

    y1 = wide_basic_forward(blk1, x)
    y2 = wide_basic_forward(blk2, y1)
    jax.block_until_ready((y1, y2))

    assert y1.shape == (batch, planes, 8, 8)
    assert y2.shape == (batch, planes, 8, 8)

    # Per-block check against the PyTorch-equivalent math; bf16 MXU inputs with
    # f32 accumulation -> loose absolute tolerance.
    r1 = wide_basic_reference(blk1, x)
    r2 = wide_basic_reference(blk2, y1)
    for got, ref in ((y1, r1), (y2, r2)):
        assert bool(jnp.all(jnp.isfinite(got)))
        err = float(jnp.max(jnp.abs(got - ref)))
        assert err < 0.25, f"max abs error vs reference = {err}"

    print("KERNEL_OK")
</pallas_src>

<mosaic_0001>
module attributes {stable_mosaic.version = 11 : i64} {
  func.func @kernel(%arg0: i32, %arg1: memref<16x648xf32, #tpu.memory_space<vmem>>, %arg2: memref<1x648xf32, #tpu.memory_space<vmem>>, %arg3: memref<16x1xf32, #tpu.memory_space<vmem>>, %arg4: memref<16x1xf32, #tpu.memory_space<vmem>>, %arg5: memref<288x16xf32, #tpu.memory_space<vmem>>, %arg6: memref<32x1xf32, #tpu.memory_space<vmem>>, %arg7: memref<32x1xf32, #tpu.memory_space<vmem>>, %arg8: memref<32x1xf32, #tpu.memory_space<vmem>>, %arg9: memref<288x32xf32, #tpu.memory_space<vmem>>, %arg10: memref<32x1xf32, #tpu.memory_space<vmem>>, %arg11: memref<32x16xf32, #tpu.memory_space<vmem>>, %arg12: memref<32x1xf32, #tpu.memory_space<vmem>>, %arg13: memref<648x128xf32, #tpu.memory_space<vmem>>, %arg14: memref<32x128xf32, #tpu.memory_space<vmem>>, %arg15: memref<16x904xf32, #tpu.memory_space<vmem>>, %arg16: memref<32x904xf32, #tpu.memory_space<vmem>>) attributes {dimension_semantics = [#tpu.dimension_semantics<arbitrary>], iteration_bounds = array<i64: 1>, scalar_prefetch = 0 : i64, scratch_operands = 2 : i64, tpu.core_type = #tpu.core_type<tc>, window_params = [{pipeline_mode = #tpu.pipeline_mode<synchronous>, transform_indices = @transform_0, window_bounds = array<i64: 16, 648>}, {pipeline_mode = #tpu.pipeline_mode<synchronous>, transform_indices = @transform_1, window_bounds = array<i64: 1, 648>}, {pipeline_mode = #tpu.pipeline_mode<synchronous>, transform_indices = @transform_2, window_bounds = array<i64: 16, 1>}, {pipeline_mode = #tpu.pipeline_mode<synchronous>, transform_indices = @transform_3, window_bounds = array<i64: 16, 1>}, {pipeline_mode = #tpu.pipeline_mode<synchronous>, transform_indices = @transform_4, window_bounds = array<i64: 288, 16>}, {pipeline_mode = #tpu.pipeline_mode<synchronous>, transform_indices = @transform_5, window_bounds = array<i64: 32, 1>}, {pipeline_mode = #tpu.pipeline_mode<synchronous>, transform_indices = @transform_6, window_bounds = array<i64: 32, 1>}, {pipeline_mode = #tpu.pipeline_mode<synchronous>, transform_indices = @transform_7, window_bounds = array<i64: 32, 1>}, {pipeline_mode = #tpu.pipeline_mode<synchronous>, transform_indices = @transform_8, window_bounds = array<i64: 288, 32>}, {pipeline_mode = #tpu.pipeline_mode<synchronous>, transform_indices = @transform_9, window_bounds = array<i64: 32, 1>}, {pipeline_mode = #tpu.pipeline_mode<synchronous>, transform_indices = @transform_10, window_bounds = array<i64: 32, 16>}, {pipeline_mode = #tpu.pipeline_mode<synchronous>, transform_indices = @transform_11, window_bounds = array<i64: 32, 1>}, {pipeline_mode = #tpu.pipeline_mode<synchronous>, transform_indices = @transform_12, window_bounds = array<i64: 648, 128>}, {pipeline_mode = #tpu.pipeline_mode<synchronous>, transform_indices = @transform_13, window_bounds = array<i64: 32, 128>}]} {
    %c0 = arith.constant 0 : index
    %c0_0 = arith.constant 0 : index
    %0 = vector.load %arg1[%c0, %c0_0] : memref<16x648xf32, #tpu.memory_space<vmem>>, vector<16x648xf32>
    %c0_1 = arith.constant 0 : index
    %c0_2 = arith.constant 0 : index
    %1 = vector.load %arg2[%c0_1, %c0_2] : memref<1x648xf32, #tpu.memory_space<vmem>>, vector<1x648xf32>
    %c0_3 = arith.constant 0 : index
    %c0_4 = arith.constant 0 : index
    %2 = vector.load %arg3[%c0_3, %c0_4] : memref<16x1xf32, #tpu.memory_space<vmem>>, vector<16x1xf32>
    %c0_5 = arith.constant 0 : index
    %c0_6 = arith.constant 0 : index
    %3 = vector.load %arg4[%c0_5, %c0_6] : memref<16x1xf32, #tpu.memory_space<vmem>>, vector<16x1xf32>
    %4 = vector.broadcast %1 : vector<1x648xf32> to vector<16x648xf32>
    %5 = arith.mulf %0, %4 : vector<16x648xf32>
    %cst = arith.constant dense<0.000000e+00> : vector<16xf32>
    %6 = vector.multi_reduction <add>, %5, %cst [1] : vector<16x648xf32> to vector<16xf32>
    %7 = vector.shape_cast %6 : vector<16xf32> to vector<16x1xf32>
    %cst_7 = arith.constant 0.001953125 : f32
    %8 = vector.broadcast %cst_7 : f32 to vector<16x1xf32>
    %9 = arith.mulf %7, %8 : vector<16x1xf32>
    %10 = arith.mulf %5, %5 : vector<16x648xf32>
    %cst_8 = arith.constant dense<0.000000e+00> : vector<16xf32>
    %11 = vector.multi_reduction <add>, %10, %cst_8 [1] : vector<16x648xf32> to vector<16xf32>
    %12 = vector.shape_cast %11 : vector<16xf32> to vector<16x1xf32>
    %cst_9 = arith.constant 0.001953125 : f32
    %13 = vector.broadcast %cst_9 : f32 to vector<16x1xf32>
    %14 = arith.mulf %12, %13 : vector<16x1xf32>
    %15 = arith.mulf %9, %9 : vector<16x1xf32>
    %16 = arith.subf %14, %15 : vector<16x1xf32>
    %cst_10 = arith.constant 9.99999974E-6 : f32
    %17 = vector.broadcast %cst_10 : f32 to vector<16x1xf32>
    %18 = arith.addf %16, %17 : vector<16x1xf32>
    %19 = math.rsqrt %18 : vector<16x1xf32>
    %20 = vector.broadcast %9 : vector<16x1xf32> to vector<16x648xf32>
    %21 = arith.subf %0, %20 : vector<16x648xf32>
    %22 = arith.mulf %19, %2 : vector<16x1xf32>
    %23 = vector.broadcast %22 : vector<16x1xf32> to vector<16x648xf32>
    %24 = arith.mulf %21, %23 : vector<16x648xf32>
    %25 = vector.broadcast %3 : vector<16x1xf32> to vector<16x648xf32>
    %26 = arith.addf %24, %25 : vector<16x648xf32>
    %cst_11 = arith.constant 0.000000e+00 : f32
    %27 = vector.broadcast %cst_11 : f32 to vector<16x648xf32>
    %28 = arith.maximumf %26, %27 : vector<16x648xf32>
    %29 = vector.broadcast %1 : vector<1x648xf32> to vector<16x648xf32>
    %30 = arith.mulf %28, %29 : vector<16x648xf32>
    %cst_12 = arith.constant 0.000000e+00 : f32
    %31 = vector.broadcast %cst_12 : f32 to vector<16x904xf32>
    %c0_13 = arith.constant 0 : index
    %c0_14 = arith.constant 0 : index
    %32 = vector.load %arg15[%c0_13, %c0_14] : memref<16x904xf32, #tpu.memory_space<vmem>>, vector<16x904xf32>
    tpu.vector_store %arg15[%c0_13, %c0_14], %31 {strides = array<i32>} : memref<16x904xf32, #tpu.memory_space<vmem>>, vector<16x904xf32>,
    %c0_15 = arith.constant 0 : index
    %c128 = arith.constant 128 : index
    %33 = vector.load %arg15[%c0_15, %c128] : memref<16x904xf32, #tpu.memory_space<vmem>>, vector<16x648xf32>
    tpu.vector_store %arg15[%c0_15, %c128], %30 {strides = array<i32>} : memref<16x904xf32, #tpu.memory_space<vmem>>, vector<16x648xf32>,
    %c0_16 = arith.constant 0 : index
    %c0_17 = arith.constant 0 : index
    %34 = vector.load %arg5[%c0_16, %c0_17] : memref<288x16xf32, #tpu.memory_space<vmem>>, vector<32x16xf32>
    %35 = arith.truncf %34 : vector<32x16xf32> to vector<32x16xbf16>
    %c0_18 = arith.constant 0 : index
    %c109 = arith.constant 109 : index
    %36 = vector.load %arg15[%c0_18, %c109] : memref<16x904xf32, #tpu.memory_space<vmem>>, vector<16x648xf32>
    %37 = arith.truncf %36 : vector<16x648xf32> to vector<16x648xbf16>
    %cst_19 = arith.constant dense<0.000000e+00> : vector<32x648xf32>
    %38 = tpu.matmul %35, %37, %cst_19 {dimension_numbers = #tpu.dot_dimension_numbers<[1], [0], [0], [1], [0, 0, 1, 1], [], []>} : vector<32x16xbf16>, vector<16x648xbf16>, vector<32x648xf32> -> vector<32x648xf32>
    %c32 = arith.constant 32 : index
    %c0_20 = arith.constant 0 : index
    %39 = vector.load %arg5[%c32, %c0_20] : memref<288x16xf32, #tpu.memory_space<vmem>>, vector<32x16xf32>
    %40 = arith.truncf %39 : vector<32x16xf32> to vector<32x16xbf16>
    %c0_21 = arith.constant 0 : index
    %c110 = arith.constant 110 : index
    %41 = vector.load %arg15[%c0_21, %c110] : memref<16x904xf32, #tpu.memory_space<vmem>>, vector<16x648xf32>
    %42 = arith.truncf %41 : vector<16x648xf32> to vector<16x648xbf16>
    %cst_22 = arith.constant dense<0.000000e+00> : vector<32x648xf32>
    %43 = tpu.matmul %40, %42, %cst_22 {dimension_numbers = #tpu.dot_dimension_numbers<[1], [0], [0], [1], [0, 0, 1, 1], [], []>} : vector<32x16xbf16>, vector<16x648xbf16>, vector<32x648xf32> -> vector<32x648xf32>
    %44 = arith.addf %38, %43 : vector<32x648xf32>
    %c64 = arith.constant 64 : index
    %c0_23 = arith.constant 0 : index
    %45 = vector.load %arg5[%c64, %c0_23] : memref<288x16xf32, #tpu.memory_space<vmem>>, vector<32x16xf32>
    %46 = arith.truncf %45 : vector<32x16xf32> to vector<32x16xbf16>
    %c0_24 = arith.constant 0 : index
    %c111 = arith.constant 111 : index
    %47 = vector.load %arg15[%c0_24, %c111] : memref<16x904xf32, #tpu.memory_space<vmem>>, vector<16x648xf32>
    %48 = arith.truncf %47 : vector<16x648xf32> to vector<16x648xbf16>
    %cst_25 = arith.constant dense<0.000000e+00> : vector<32x648xf32>
    %49 = tpu.matmul %46, %48, %cst_25 {dimension_numbers = #tpu.dot_dimension_numbers<[1], [0], [0], [1], [0, 0, 1, 1], [], []>} : vector<32x16xbf16>, vector<16x648xbf16>, vector<32x648xf32> -> vector<32x648xf32>
    %50 = arith.addf %44, %49 : vector<32x648xf32>
    %c96 = arith.constant 96 : index
    %c0_26 = arith.constant 0 : index
    %51 = vector.load %arg5[%c96, %c0_26] : memref<288x16xf32, #tpu.memory_space<vmem>>, vector<32x16xf32>
    %52 = arith.truncf %51 : vector<32x16xf32> to vector<32x16xbf16>
    %c0_27 = arith.constant 0 : index
    %c127 = arith.constant 127 : index
    %53 = vector.load %arg15[%c0_27, %c127] : memref<16x904xf32, #tpu.memory_space<vmem>>, vector<16x648xf32>
    %54 = arith.truncf %53 : vector<16x648xf32> to vector<16x648xbf16>
    %cst_28 = arith.constant dense<0.000000e+00> : vector<32x648xf32>
    %55 = tpu.matmul %52, %54, %cst_28 {dimension_numbers = #tpu.dot_dimension_numbers<[1], [0], [0], [1], [0, 0, 1, 1], [], []>} : vector<32x16xbf16>, vector<16x648xbf16>, vector<32x648xf32> -> vector<32x648xf32>
    %56 = arith.addf %50, %55 : vector<32x648xf32>
    %c128_29 = arith.constant 128 : index
    %c0_30 = arith.constant 0 : index
    %57 = vector.load %arg5[%c128_29, %c0_30] : memref<288x16xf32, #tpu.memory_space<vmem>>, vector<32x16xf32>
    %58 = arith.truncf %57 : vector<32x16xf32> to vector<32x16xbf16>
    %c0_31 = arith.constant 0 : index
    %c128_32 = arith.constant 128 : index
    %59 = vector.load %arg15[%c0_31, %c128_32] : memref<16x904xf32, #tpu.memory_space<vmem>>, vector<16x648xf32>
    %60 = arith.truncf %59 : vector<16x648xf32> to vector<16x648xbf16>
    %cst_33 = arith.constant dense<0.000000e+00> : vector<32x648xf32>
    %61 = tpu.matmul %58, %60, %cst_33 {dimension_numbers = #tpu.dot_dimension_numbers<[1], [0], [0], [1], [0, 0, 1, 1], [], []>} : vector<32x16xbf16>, vector<16x648xbf16>, vector<32x648xf32> -> vector<32x648xf32>
    %62 = arith.addf %56, %61 : vector<32x648xf32>
    %c160 = arith.constant 160 : index
    %c0_34 = arith.constant 0 : index
    %63 = vector.load %arg5[%c160, %c0_34] : memref<288x16xf32, #tpu.memory_space<vmem>>, vector<32x16xf32>
    %64 = arith.truncf %63 : vector<32x16xf32> to vector<32x16xbf16>
    %c0_35 = arith.constant 0 : index
    %c129 = arith.constant 129 : index
    %65 = vector.load %arg15[%c0_35, %c129] : memref<16x904xf32, #tpu.memory_space<vmem>>, vector<16x648xf32>
    %66 = arith.truncf %65 : vector<16x648xf32> to vector<16x648xbf16>
    %cst_36 = arith.constant dense<0.000000e+00> : vector<32x648xf32>
    %67 = tpu.matmul %64, %66, %cst_36 {dimension_numbers = #tpu.dot_dimension_numbers<[1], [0], [0], [1], [0, 0, 1, 1], [], []>} : vector<32x16xbf16>, vector<16x648xbf16>, vector<32x648xf32> -> vector<32x648xf32>
    %68 = arith.addf %62, %67 : vector<32x648xf32>
    %c192 = arith.constant 192 : index
    %c0_37 = arith.constant 0 : index
    %69 = vector.load %arg5[%c192, %c0_37] : memref<288x16xf32, #tpu.memory_space<vmem>>, vector<32x16xf32>
    %70 = arith.truncf %69 : vector<32x16xf32> to vector<32x16xbf16>
    %c0_38 = arith.constant 0 : index
    %c145 = arith.constant 145 : index
    %71 = vector.load %arg15[%c0_38, %c145] : memref<16x904xf32, #tpu.memory_space<vmem>>, vector<16x648xf32>
    %72 = arith.truncf %71 : vector<16x648xf32> to vector<16x648xbf16>
    %cst_39 = arith.constant dense<0.000000e+00> : vector<32x648xf32>
    %73 = tpu.matmul %70, %72, %cst_39 {dimension_numbers = #tpu.dot_dimension_numbers<[1], [0], [0], [1], [0, 0, 1, 1], [], []>} : vector<32x16xbf16>, vector<16x648xbf16>, vector<32x648xf32> -> vector<32x648xf32>
    %74 = arith.addf %68, %73 : vector<32x648xf32>
    %c224 = arith.constant 224 : index
    %c0_40 = arith.constant 0 : index
    %75 = vector.load %arg5[%c224, %c0_40] : memref<288x16xf32, #tpu.memory_space<vmem>>, vector<32x16xf32>
    %76 = arith.truncf %75 : vector<32x16xf32> to vector<32x16xbf16>
    %c0_41 = arith.constant 0 : index
    %c146 = arith.constant 146 : index
    %77 = vector.load %arg15[%c0_41, %c146] : memref<16x904xf32, #tpu.memory_space<vmem>>, vector<16x648xf32>
    %78 = arith.truncf %77 : vector<16x648xf32> to vector<16x648xbf16>
    %cst_42 = arith.constant dense<0.000000e+00> : vector<32x648xf32>
    %79 = tpu.matmul %76, %78, %cst_42 {dimension_numbers = #tpu.dot_dimension_numbers<[1], [0], [0], [1], [0, 0, 1, 1], [], []>} : vector<32x16xbf16>, vector<16x648xbf16>, vector<32x648xf32> -> vector<32x648xf32>
    %80 = arith.addf %74, %79 : vector<32x648xf32>
    %c256 = arith.constant 256 : index
    %c0_43 = arith.constant 0 : index
    %81 = vector.load %arg5[%c256, %c0_43] : memref<288x16xf32, #tpu.memory_space<vmem>>, vector<32x16xf32>
    %82 = arith.truncf %81 : vector<32x16xf32> to vector<32x16xbf16>
    %c0_44 = arith.constant 0 : index
    %c147 = arith.constant 147 : index
    %83 = vector.load %arg15[%c0_44, %c147] : memref<16x904xf32, #tpu.memory_space<vmem>>, vector<16x648xf32>
    %84 = arith.truncf %83 : vector<16x648xf32> to vector<16x648xbf16>
    %cst_45 = arith.constant dense<0.000000e+00> : vector<32x648xf32>
    %85 = tpu.matmul %82, %84, %cst_45 {dimension_numbers = #tpu.dot_dimension_numbers<[1], [0], [0], [1], [0, 0, 1, 1], [], []>} : vector<32x16xbf16>, vector<16x648xbf16>, vector<32x648xf32> -> vector<32x648xf32>
    %86 = arith.addf %80, %85 : vector<32x648xf32>
    %c0_46 = arith.constant 0 : index
    %c0_47 = arith.constant 0 : index
    %87 = vector.load %arg6[%c0_46, %c0_47] : memref<32x1xf32, #tpu.memory_space<vmem>>, vector<32x1xf32>
    %88 = vector.broadcast %87 : vector<32x1xf32> to vector<32x648xf32>
    %89 = arith.addf %86, %88 : vector<32x648xf32>
    %c0_48 = arith.constant 0 : index
    %c0_49 = arith.constant 0 : index
    %90 = vector.load %arg7[%c0_48, %c0_49] : memref<32x1xf32, #tpu.memory_space<vmem>>, vector<32x1xf32>
    %c0_50 = arith.constant 0 : index
    %c0_51 = arith.constant 0 : index
    %91 = vector.load %arg8[%c0_50, %c0_51] : memref<32x1xf32, #tpu.memory_space<vmem>>, vector<32x1xf32>
    %92 = vector.broadcast %1 : vector<1x648xf32> to vector<32x648xf32>
    %93 = arith.mulf %89, %92 : vector<32x648xf32>
    %cst_52 = arith.constant dense<0.000000e+00> : vector<32xf32>
    %94 = vector.multi_reduction <add>, %93, %cst_52 [1] : vector<32x648xf32> to vector<32xf32>
    %95 = vector.shape_cast %94 : vector<32xf32> to vector<32x1xf32>
    %cst_53 = arith.constant 0.001953125 : f32
    %96 = vector.broadcast %cst_53 : f32 to vector<32x1xf32>
    %97 = arith.mulf %95, %96 : vector<32x1xf32>
    %98 = arith.mulf %93, %93 : vector<32x648xf32>
    %cst_54 = arith.constant dense<0.000000e+00> : vector<32xf32>
    %99 = vector.multi_reduction <add>, %98, %cst_54 [1] : vector<32x648xf32> to vector<32xf32>
    %100 = vector.shape_cast %99 : vector<32xf32> to vector<32x1xf32>
    %cst_55 = arith.constant 0.001953125 : f32
    %101 = vector.broadcast %cst_55 : f32 to vector<32x1xf32>
    %102 = arith.mulf %100, %101 : vector<32x1xf32>
    %103 = arith.mulf %97, %97 : vector<32x1xf32>
    %104 = arith.subf %102, %103 : vector<32x1xf32>
    %cst_56 = arith.constant 9.99999974E-6 : f32
    %105 = vector.broadcast %cst_56 : f32 to vector<32x1xf32>
    %106 = arith.addf %104, %105 : vector<32x1xf32>
    %107 = math.rsqrt %106 : vector<32x1xf32>
    %108 = vector.broadcast %97 : vector<32x1xf32> to vector<32x648xf32>
    %109 = arith.subf %89, %108 : vector<32x648xf32>
    %110 = arith.mulf %107, %90 : vector<32x1xf32>
    %111 = vector.broadcast %110 : vector<32x1xf32> to vector<32x648xf32>
    %112 = arith.mulf %109, %111 : vector<32x648xf32>
    %113 = vector.broadcast %91 : vector<32x1xf32> to vector<32x648xf32>
    %114 = arith.addf %112, %113 : vector<32x648xf32>
    %cst_57 = arith.constant 0.000000e+00 : f32
    %115 = vector.broadcast %cst_57 : f32 to vector<32x648xf32>
    %116 = arith.maximumf %114, %115 : vector<32x648xf32>
    %117 = vector.broadcast %1 : vector<1x648xf32> to vector<32x648xf32>
    %118 = arith.mulf %116, %117 : vector<32x648xf32>
    %cst_58 = arith.constant 0.000000e+00 : f32
    %119 = vector.broadcast %cst_58 : f32 to vector<32x904xf32>
    %c0_59 = arith.constant 0 : index
    %c0_60 = arith.constant 0 : index
    %120 = vector.load %arg16[%c0_59, %c0_60] : memref<32x904xf32, #tpu.memory_space<vmem>>, vector<32x904xf32>
    tpu.vector_store %arg16[%c0_59, %c0_60], %119 {strides = array<i32>} : memref<32x904xf32, #tpu.memory_space<vmem>>, vector<32x904xf32>,
    %c0_61 = arith.constant 0 : index
    %c128_62 = arith.constant 128 : index
    %121 = vector.load %arg16[%c0_61, %c128_62] : memref<32x904xf32, #tpu.memory_space<vmem>>, vector<32x648xf32>
    tpu.vector_store %arg16[%c0_61, %c128_62], %118 {strides = array<i32>} : memref<32x904xf32, #tpu.memory_space<vmem>>, vector<32x648xf32>,
    %c0_63 = arith.constant 0 : index
    %c0_64 = arith.constant 0 : index
    %122 = vector.load %arg9[%c0_63, %c0_64] : memref<288x32xf32, #tpu.memory_space<vmem>>, vector<32x32xf32>
    %123 = arith.truncf %122 : vector<32x32xf32> to vector<32x32xbf16>
    %c0_65 = arith.constant 0 : index
    %c109_66 = arith.constant 109 : index
    %124 = vector.load %arg16[%c0_65, %c109_66] : memref<32x904xf32, #tpu.memory_space<vmem>>, vector<32x648xf32>
    %125 = arith.truncf %124 : vector<32x648xf32> to vector<32x648xbf16>
    %cst_67 = arith.constant dense<0.000000e+00> : vector<32x648xf32>
    %126 = tpu.matmul %123, %125, %cst_67 {dimension_numbers = #tpu.dot_dimension_numbers<[1], [0], [0], [1], [0, 0, 1, 1], [], []>} : vector<32x32xbf16>, vector<32x648xbf16>, vector<32x648xf32> -> vector<32x648xf32>
    %c32_68 = arith.constant 32 : index
    %c0_69 = arith.constant 0 : index
    %127 = vector.load %arg9[%c32_68, %c0_69] : memref<288x32xf32, #tpu.memory_space<vmem>>, vector<32x32xf32>
    %128 = arith.truncf %127 : vector<32x32xf32> to vector<32x32xbf16>
    %c0_70 = arith.constant 0 : index
    %c110_71 = arith.constant 110 : index
    %129 = vector.load %arg16[%c0_70, %c110_71] : memref<32x904xf32, #tpu.memory_space<vmem>>, vector<32x648xf32>
    %130 = arith.truncf %129 : vector<32x648xf32> to vector<32x648xbf16>
    %cst_72 = arith.constant dense<0.000000e+00> : vector<32x648xf32>
    %131 = tpu.matmul %128, %130, %cst_72 {dimension_numbers = #tpu.dot_dimension_numbers<[1], [0], [0], [1], [0, 0, 1, 1], [], []>} : vector<32x32xbf16>, vector<32x648xbf16>, vector<32x648xf32> -> vector<32x648xf32>
    %132 = arith.addf %126, %131 : vector<32x648xf32>
    %c64_73 = arith.constant 64 : index
    %c0_74 = arith.constant 0 : index
    %133 = vector.load %arg9[%c64_73, %c0_74] : memref<288x32xf32, #tpu.memory_space<vmem>>, vector<32x32xf32>
    %134 = arith.truncf %133 : vector<32x32xf32> to vector<32x32xbf16>
    %c0_75 = arith.constant 0 : index
    %c111_76 = arith.constant 111 : index
    %135 = vector.load %arg16[%c0_75, %c111_76] : memref<32x904xf32, #tpu.memory_space<vmem>>, vector<32x648xf32>
    %136 = arith.truncf %135 : vector<32x648xf32> to vector<32x648xbf16>
    %cst_77 = arith.constant dense<0.000000e+00> : vector<32x648xf32>
    %137 = tpu.matmul %134, %136, %cst_77 {dimension_numbers = #tpu.dot_dimension_numbers<[1], [0], [0], [1], [0, 0, 1, 1], [], []>} : vector<32x32xbf16>, vector<32x648xbf16>, vector<32x648xf32> -> vector<32x648xf32>
    %138 = arith.addf %132, %137 : vector<32x648xf32>
    %c96_78 = arith.constant 96 : index
    %c0_79 = arith.constant 0 : index
    %139 = vector.load %arg9[%c96_78, %c0_79] : memref<288x32xf32, #tpu.memory_space<vmem>>, vector<32x32xf32>
    %140 = arith.truncf %139 : vector<32x32xf32> to vector<32x32xbf16>
    %c0_80 = arith.constant 0 : index
    %c127_81 = arith.constant 127 : index
    %141 = vector.load %arg16[%c0_80, %c127_81] : memref<32x904xf32, #tpu.memory_space<vmem>>, vector<32x648xf32>
    %142 = arith.truncf %141 : vector<32x648xf32> to vector<32x648xbf16>
    %cst_82 = arith.constant dense<0.000000e+00> : vector<32x648xf32>
    %143 = tpu.matmul %140, %142, %cst_82 {dimension_numbers = #tpu.dot_dimension_numbers<[1], [0], [0], [1], [0, 0, 1, 1], [], []>} : vector<32x32xbf16>, vector<32x648xbf16>, vector<32x648xf32> -> vector<32x648xf32>
    %144 = arith.addf %138, %143 : vector<32x648xf32>
    %c128_83 = arith.constant 128 : index
    %c0_84 = arith.constant 0 : index
    %145 = vector.load %arg9[%c128_83, %c0_84] : memref<288x32xf32, #tpu.memory_space<vmem>>, vector<32x32xf32>
    %146 = arith.truncf %145 : vector<32x32xf32> to vector<32x32xbf16>
    %c0_85 = arith.constant 0 : index
    %c128_86 = arith.constant 128 : index
    %147 = vector.load %arg16[%c0_85, %c128_86] : memref<32x904xf32, #tpu.memory_space<vmem>>, vector<32x648xf32>
    %148 = arith.truncf %147 : vector<32x648xf32> to vector<32x648xbf16>
    %cst_87 = arith.constant dense<0.000000e+00> : vector<32x648xf32>
    %149 = tpu.matmul %146, %148, %cst_87 {dimension_numbers = #tpu.dot_dimension_numbers<[1], [0], [0], [1], [0, 0, 1, 1], [], []>} : vector<32x32xbf16>, vector<32x648xbf16>, vector<32x648xf32> -> vector<32x648xf32>
    %150 = arith.addf %144, %149 : vector<32x648xf32>
    %c160_88 = arith.constant 160 : index
    %c0_89 = arith.constant 0 : index
    %151 = vector.load %arg9[%c160_88, %c0_89] : memref<288x32xf32, #tpu.memory_space<vmem>>, vector<32x32xf32>
    %152 = arith.truncf %151 : vector<32x32xf32> to vector<32x32xbf16>
    %c0_90 = arith.constant 0 : index
    %c129_91 = arith.constant 129 : index
    %153 = vector.load %arg16[%c0_90, %c129_91] : memref<32x904xf32, #tpu.memory_space<vmem>>, vector<32x648xf32>
    %154 = arith.truncf %153 : vector<32x648xf32> to vector<32x648xbf16>
    %cst_92 = arith.constant dense<0.000000e+00> : vector<32x648xf32>
    %155 = tpu.matmul %152, %154, %cst_92 {dimension_numbers = #tpu.dot_dimension_numbers<[1], [0], [0], [1], [0, 0, 1, 1], [], []>} : vector<32x32xbf16>, vector<32x648xbf16>, vector<32x648xf32> -> vector<32x648xf32>
    %156 = arith.addf %150, %155 : vector<32x648xf32>
    %c192_93 = arith.constant 192 : index
    %c0_94 = arith.constant 0 : index
    %157 = vector.load %arg9[%c192_93, %c0_94] : memref<288x32xf32, #tpu.memory_space<vmem>>, vector<32x32xf32>
    %158 = arith.truncf %157 : vector<32x32xf32> to vector<32x32xbf16>
    %c0_95 = arith.constant 0 : index
    %c145_96 = arith.constant 145 : index
    %159 = vector.load %arg16[%c0_95, %c145_96] : memref<32x904xf32, #tpu.memory_space<vmem>>, vector<32x648xf32>
    %160 = arith.truncf %159 : vector<32x648xf32> to vector<32x648xbf16>
    %cst_97 = arith.constant dense<0.000000e+00> : vector<32x648xf32>
    %161 = tpu.matmul %158, %160, %cst_97 {dimension_numbers = #tpu.dot_dimension_numbers<[1], [0], [0], [1], [0, 0, 1, 1], [], []>} : vector<32x32xbf16>, vector<32x648xbf16>, vector<32x648xf32> -> vector<32x648xf32>
    %162 = arith.addf %156, %161 : vector<32x648xf32>
    %c224_98 = arith.constant 224 : index
    %c0_99 = arith.constant 0 : index
    %163 = vector.load %arg9[%c224_98, %c0_99] : memref<288x32xf32, #tpu.memory_space<vmem>>, vector<32x32xf32>
    %164 = arith.truncf %163 : vector<32x32xf32> to vector<32x32xbf16>
    %c0_100 = arith.constant 0 : index
    %c146_101 = arith.constant 146 : index
    %165 = vector.load %arg16[%c0_100, %c146_101] : memref<32x904xf32, #tpu.memory_space<vmem>>, vector<32x648xf32>
    %166 = arith.truncf %165 : vector<32x648xf32> to vector<32x648xbf16>
    %cst_102 = arith.constant dense<0.000000e+00> : vector<32x648xf32>
    %167 = tpu.matmul %164, %166, %cst_102 {dimension_numbers = #tpu.dot_dimension_numbers<[1], [0], [0], [1], [0, 0, 1, 1], [], []>} : vector<32x32xbf16>, vector<32x648xbf16>, vector<32x648xf32> -> vector<32x648xf32>
    %168 = arith.addf %162, %167 : vector<32x648xf32>
    %c256_103 = arith.constant 256 : index
    %c0_104 = arith.constant 0 : index
    %169 = vector.load %arg9[%c256_103, %c0_104] : memref<288x32xf32, #tpu.memory_space<vmem>>, vector<32x32xf32>
    %170 = arith.truncf %169 : vector<32x32xf32> to vector<32x32xbf16>
    %c0_105 = arith.constant 0 : index
    %c147_106 = arith.constant 147 : index
    %171 = vector.load %arg16[%c0_105, %c147_106] : memref<32x904xf32, #tpu.memory_space<vmem>>, vector<32x648xf32>
    %172 = arith.truncf %171 : vector<32x648xf32> to vector<32x648xbf16>
    %cst_107 = arith.constant dense<0.000000e+00> : vector<32x648xf32>
    %173 = tpu.matmul %170, %172, %cst_107 {dimension_numbers = #tpu.dot_dimension_numbers<[1], [0], [0], [1], [0, 0, 1, 1], [], []>} : vector<32x32xbf16>, vector<32x648xbf16>, vector<32x648xf32> -> vector<32x648xf32>
    %174 = arith.addf %168, %173 : vector<32x648xf32>
    %c0_108 = arith.constant 0 : index
    %c0_109 = arith.constant 0 : index
    %175 = vector.load %arg10[%c0_108, %c0_109] : memref<32x1xf32, #tpu.memory_space<vmem>>, vector<32x1xf32>
    %176 = vector.broadcast %175 : vector<32x1xf32> to vector<32x648xf32>
    %177 = arith.addf %174, %176 : vector<32x648xf32>
    %c0_110 = arith.constant 0 : index
    %c0_111 = arith.constant 0 : index
    %178 = vector.load %arg13[%c0_110, %c0_111] : memref<648x128xf32, #tpu.memory_space<vmem>>, vector<648x128xf32>
    %cst_112 = arith.constant dense<0.000000e+00> : vector<32x128xf32>
    %179 = tpu.matmul %177, %178, %cst_112 {dimension_numbers = #tpu.dot_dimension_numbers<[1], [0], [0], [1], [0, 0, 1, 1], [], []>} : vector<32x648xf32>, vector<648x128xf32>, vector<32x128xf32> -> vector<32x128xf32>
    %cst_113 = arith.constant dense<0.000000e+00> : vector<16x128xf32>
    %180 = tpu.matmul %0, %178, %cst_113 {dimension_numbers = #tpu.dot_dimension_numbers<[1], [0], [0], [1], [0, 0, 1, 1], [], []>} : vector<16x648xf32>, vector<648x128xf32>, vector<16x128xf32> -> vector<16x128xf32>
    %c0_114 = arith.constant 0 : index
    %c0_115 = arith.constant 0 : index
    %181 = vector.load %arg11[%c0_114, %c0_115] : memref<32x16xf32, #tpu.memory_space<vmem>>, vector<32x16xf32>
    %cst_116 = arith.constant dense<0.000000e+00> : vector<32x128xf32>
    %182 = tpu.matmul %181, %180, %cst_116 {dimension_numbers = #tpu.dot_dimension_numbers<[1], [0], [0], [1], [0, 0, 1, 1], [], []>} : vector<32x16xf32>, vector<16x128xf32>, vector<32x128xf32> -> vector<32x128xf32>
    %c0_117 = arith.constant 0 : index
    %c0_118 = arith.constant 0 : index
    %183 = vector.load %arg12[%c0_117, %c0_118] : memref<32x1xf32, #tpu.memory_space<vmem>>, vector<32x1xf32>
    %184 = vector.broadcast %183 : vector<32x1xf32> to vector<32x128xf32>
    %185 = arith.addf %182, %184 : vector<32x128xf32>
    %186 = arith.addf %179, %185 : vector<32x128xf32>
    %c0_119 = arith.constant 0 : index
    %c0_120 = arith.constant 0 : index
    %187 = vector.load %arg14[%c0_119, %c0_120] : memref<32x128xf32, #tpu.memory_space<vmem>>, vector<32x128xf32>
    tpu.vector_store %arg14[%c0_119, %c0_120], %186 {strides = array<i32>} : memref<32x128xf32, #tpu.memory_space<vmem>>, vector<32x128xf32>,
    return
  }
  func.func @transform_0(%arg0: i32) -> (i32, i32) {
    %c0_i32 = arith.constant 0 : i32
    %c0_i32_0 = arith.constant 0 : i32
    %c0_i32_1 = arith.constant 0 : i32
    return %c0_i32, %c0_i32_0 : i32, i32
  }
  func.func @transform_1(%arg0: i32) -> (i32, i32) {
    %c0_i32 = arith.constant 0 : i32
    %c0_i32_0 = arith.constant 0 : i32
    %c0_i32_1 = arith.constant 0 : i32
    return %c0_i32, %c0_i32_0 : i32, i32
  }
  func.func @transform_2(%arg0: i32) -> (i32, i32) {
    %c0_i32 = arith.constant 0 : i32
    %c0_i32_0 = arith.constant 0 : i32
    %c0_i32_1 = arith.constant 0 : i32
    return %c0_i32, %c0_i32_0 : i32, i32
  }
  func.func @transform_3(%arg0: i32) -> (i32, i32) {
    %c0_i32 = arith.constant 0 : i32
    %c0_i32_0 = arith.constant 0 : i32
    %c0_i32_1 = arith.constant 0 : i32
    return %c0_i32, %c0_i32_0 : i32, i32
  }
  func.func @transform_4(%arg0: i32) -> (i32, i32) {
    %c0_i32 = arith.constant 0 : i32
    %c0_i32_0 = arith.constant 0 : i32
    %c0_i32_1 = arith.constant 0 : i32
    return %c0_i32, %c0_i32_0 : i32, i32
  }
  func.func @transform_5(%arg0: i32) -> (i32, i32) {
    %c0_i32 = arith.constant 0 : i32
    %c0_i32_0 = arith.constant 0 : i32
    %c0_i32_1 = arith.constant 0 : i32
    return %c0_i32, %c0_i32_0 : i32, i32
  }
  func.func @transform_6(%arg0: i32) -> (i32, i32) {
    %c0_i32 = arith.constant 0 : i32
    %c0_i32_0 = arith.constant 0 : i32
    %c0_i32_1 = arith.constant 0 : i32
    return %c0_i32, %c0_i32_0 : i32, i32
  }
  func.func @transform_7(%arg0: i32) -> (i32, i32) {
    %c0_i32 = arith.constant 0 : i32
    %c0_i32_0 = arith.constant 0 : i32
    %c0_i32_1 = arith.constant 0 : i32
    return %c0_i32, %c0_i32_0 : i32, i32
  }
  func.func @transform_8(%arg0: i32) -> (i32, i32) {
    %c0_i32 = arith.constant 0 : i32
    %c0_i32_0 = arith.constant 0 : i32
    %c0_i32_1 = arith.constant 0 : i32
    return %c0_i32, %c0_i32_0 : i32, i32
  }
  func.func @transform_9(%arg0: i32) -> (i32, i32) {
    %c0_i32 = arith.constant 0 : i32
    %c0_i32_0 = arith.constant 0 : i32
    %c0_i32_1 = arith.constant 0 : i32
    return %c0_i32, %c0_i32_0 : i32, i32
  }
  func.func @transform_10(%arg0: i32) -> (i32, i32) {
    %c0_i32 = arith.constant 0 : i32
    %c0_i32_0 = arith.constant 0 : i32
    %c0_i32_1 = arith.constant 0 : i32
    return %c0_i32, %c0_i32_0 : i32, i32
  }
  func.func @transform_11(%arg0: i32) -> (i32, i32) {
    %c0_i32 = arith.constant 0 : i32
    %c0_i32_0 = arith.constant 0 : i32
    %c0_i32_1 = arith.constant 0 : i32
    return %c0_i32, %c0_i32_0 : i32, i32
  }
  func.func @transform_12(%arg0: i32) -> (i32, i32) {
    %c0_i32 = arith.constant 0 : i32
    %c0_i32_0 = arith.constant 0 : i32
    %c0_i32_1 = arith.constant 0 : i32
    return %c0_i32, %c0_i32_0 : i32, i32
  }
  func.func @transform_13(%arg0: i32) -> (i32, i32) {
    %c0_i32 = arith.constant 0 : i32
    %c0_i32_0 = arith.constant 0 : i32
    %c0_i32_1 = arith.constant 0 : i32
    return %c0_i32, %c0_i32_0 : i32, i32
  }
}

</mosaic_0001>

<llo_original>
// kernel: tpu_custom_call.1
$region0: #{tpu_custom_call.1}
  #allocation0 [shape = 'u32[]', space=smem, size = 0x4, offset = 0x4, fixed_abs, tag = 'smem constant byte address 0x4 - core index']
  #allocation1 [shape = 'u32[144,128]{1,0:T(1,128)}', space=vmem, size = 0x12000, scoped, tag = 'internal scratch']
  #allocation2 [shape = 'f32[16,904]{1,0:T(8,128)}', space=vmem, size = 0x10000, scoped, tag = 'scratch operand']
  #allocation3 [shape = 'f32[32,904]{1,0:T(8,128)}', space=vmem, size = 0x20000, scoped, tag = 'scratch operand']
  %s0 = inlined_call_operand.vmem [shape: f32[16,648], index: 0, kind: input, shape index: {}]
  %s1 = inlined_call_operand.vmem [shape: f32[1,648], index: 1, kind: input, shape index: {}]
  %s2 = inlined_call_operand.vmem [shape: f32[16,1], index: 2, kind: input, shape index: {}]
  %s3 = inlined_call_operand.vmem [shape: f32[16,1], index: 3, kind: input, shape index: {}]
  %s4 = inlined_call_operand.vmem [shape: f32[288,16], index: 4, kind: input, shape index: {}]
  %s5 = inlined_call_operand.vmem [shape: f32[32,1], index: 5, kind: input, shape index: {}]
  %s6 = inlined_call_operand.vmem [shape: f32[32,1], index: 6, kind: input, shape index: {}]
  %s7 = inlined_call_operand.vmem [shape: f32[32,1], index: 7, kind: input, shape index: {}]
  %s8 = inlined_call_operand.vmem [shape: f32[288,32], index: 8, kind: input, shape index: {}]
  %s9 = inlined_call_operand.vmem [shape: f32[32,1], index: 9, kind: input, shape index: {}]
  %s10 = inlined_call_operand.vmem [shape: f32[32,16], index: 10, kind: input, shape index: {}]
  %s11 = inlined_call_operand.vmem [shape: f32[32,1], index: 11, kind: input, shape index: {}]
  %s12 = inlined_call_operand.vmem [shape: f32[648,128], index: 12, kind: input, shape index: {}]
  %s13 = inlined_call_operand.hbm [shape: f32[32,128], index: 13, kind: output, shape index: {}]
  %s14 = sld [smem:[#allocation0]]
  $region62: #{tpu_custom_call.1} parent=0
    _
  %s16 = ssub.s32 1, %s14
  %s17 = scalar_select 0, %s16, %s14
  $region1: #{tpu_custom_call.1} parent=0
    #allocation4 [shape = 'u8[16384]{0}', space=vmem, size = 0x4000, scoped, tag = 'output window, operand 0, single buffered']
    #allocation5 [shape = 's32[1]{0}', space=sflag, size = 0x4, scoped, tag = 'scoped memory for tpu_custom_call.1']
    %18 = vsyncpa [#allocation5], 0
    // Predicated region
    $region2: #{tpu_custom_call.1} parent=1 // pred_check
      _
    $region3: #{tpu_custom_call.1} parent=1 // pred_check_branch
      %20 = sbr.rel (0) target = $region5
    $region4: #{tpu_custom_call.1} parent=1 // pred_region
      _
    $region5: #{tpu_custom_call.1} parent=1 // pred_fallthru
      _
    // Predicated region
    $region6: #{tpu_custom_call.1} parent=1 // pred_check
      _
    $region7: #{tpu_custom_call.1} parent=1 // pred_check_branch
      %22 = sbr.rel (0) target = $region9
    $region8: #{tpu_custom_call.1} parent=1 // pred_region
      _
    $region9: #{tpu_custom_call.1} parent=1 // pred_fallthru
      _
    // Predicated region
    $region10: #{tpu_custom_call.1} parent=1 // pred_check
      _
    $region11: #{tpu_custom_call.1} parent=1 // pred_check_branch
      %24 = sbr.rel (0) target = $region13
    $region12: #{tpu_custom_call.1} parent=1 // pred_region
      _
    $region13: #{tpu_custom_call.1} parent=1 // pred_fallthru
      _
    // Predicated region
    $region14: #{tpu_custom_call.1} parent=1 // pred_check
      _
    $region15: #{tpu_custom_call.1} parent=1 // pred_check_branch
      %26 = sbr.rel (0) target = $region17
    $region16: #{tpu_custom_call.1} parent=1 // pred_region
      _
    $region17: #{tpu_custom_call.1} parent=1 // pred_fallthru
      _
    // Predicated region
    $region18: #{tpu_custom_call.1} parent=1 // pred_check
      _
    $region19: #{tpu_custom_call.1} parent=1 // pred_check_branch
      %28 = sbr.rel (0) target = $region21
    $region20: #{tpu_custom_call.1} parent=1 // pred_region
      _
    $region21: #{tpu_custom_call.1} parent=1 // pred_fallthru
      _
    // Predicated region
    $region22: #{tpu_custom_call.1} parent=1 // pred_check
      _
    $region23: #{tpu_custom_call.1} parent=1 // pred_check_branch
      %30 = sbr.rel (0) target = $region25
    $region24: #{tpu_custom_call.1} parent=1 // pred_region
      _
    $region25: #{tpu_custom_call.1} parent=1 // pred_fallthru
      _
    // Predicated region
    $region26: #{tpu_custom_call.1} parent=1 // pred_check
      _
    $region27: #{tpu_custom_call.1} parent=1 // pred_check_branch
      %32 = sbr.rel (0) target = $region29
    $region28: #{tpu_custom_call.1} parent=1 // pred_region
      _
    $region29: #{tpu_custom_call.1} parent=1 // pred_fallthru
      _
    // Predicated region
    $region30: #{tpu_custom_call.1} parent=1 // pred_check
      _
    $region31: #{tpu_custom_call.1} parent=1 // pred_check_branch
      %34 = sbr.rel (0) target = $region33
    $region32: #{tpu_custom_call.1} parent=1 // pred_region
      _
    $region33: #{tpu_custom_call.1} parent=1 // pred_fallthru
      _
    // Predicated region
    $region34: #{tpu_custom_call.1} parent=1 // pred_check
      _
    $region35: #{tpu_custom_call.1} parent=1 // pred_check_branch
      %36 = sbr.rel (0) target = $region37
    $region36: #{tpu_custom_call.1} parent=1 // pred_region
      _
    $region37: #{tpu_custom_call.1} parent=1 // pred_fallthru
      _
    // Predicated region
    $region38: #{tpu_custom_call.1} parent=1 // pred_check
      _
    $region39: #{tpu_custom_call.1} parent=1 // pred_check_branch
      %38 = sbr.rel (0) target = $region41
    $region40: #{tpu_custom_call.1} parent=1 // pred_region
      _
    $region41: #{tpu_custom_call.1} parent=1 // pred_fallthru
      _
    // Predicated region
    $region42: #{tpu_custom_call.1} parent=1 // pred_check
      _
    $region43: #{tpu_custom_call.1} parent=1 // pred_check_branch
      %40 = sbr.rel (0) target = $region45
    $region44: #{tpu_custom_call.1} parent=1 // pred_region
      _
    $region45: #{tpu_custom_call.1} parent=1 // pred_fallthru
      _
    // Predicated region
    $region46: #{tpu_custom_call.1} parent=1 // pred_check
      _
    $region47: #{tpu_custom_call.1} parent=1 // pred_check_branch
      %42 = sbr.rel (0) target = $region49
    $region48: #{tpu_custom_call.1} parent=1 // pred_region
      _
    $region49: #{tpu_custom_call.1} parent=1 // pred_fallthru
      _
    // Predicated region
    $region50: #{tpu_custom_call.1} parent=1 // pred_check
      _
    $region51: #{tpu_custom_call.1} parent=1 // pred_check_branch
      %44 = sbr.rel (0) target = $region53
    $region52: #{tpu_custom_call.1} parent=1 // pred_region
      _
    $region53: #{tpu_custom_call.1} parent=1 // pred_fallthru
      _
    %v46 = vld [vmem:[%s0] sm:$0xff]
    %v47 = vld [vmem:[%s0 + $0x8] sm:$0xff]
    %v48 = vld [vmem:[%s0 + $0x10] sm:$0xff]
    %v49 = vld [vmem:[%s0 + $0x18] sm:$0xff]
    %v50 = vld [vmem:[%s0 + $0x20] sm:$0xff]
    %v51 = vld [vmem:[%s0 + $0x28] sm:$0xff]
    %v52 = vld [vmem:[%s0 + $0x30] sm:$0xff]
    %v53 = vld [vmem:[%s0 + $0x38] sm:$0xff]
    %v54 = vld [vmem:[%s0 + $0x40] sm:$0xff]
    %v55 = vld [vmem:[%s0 + $0x48] sm:$0xff]
    %v56 = vld [vmem:[%s0 + $0x50] sm:$0xff]
    %v57 = vld [vmem:[%s0 + $0x58] sm:$0xff]
    %v58 = vld [vmem:[%s1] sm:$0x3f]
    %v59 = vld [vmem:[%s2] sm:$0xff]
    %v60 = vld [vmem:[%s2 + $0x8] sm:$0xff]
    %v61 = vld [vmem:[%s3] sm:$0xff]
    %v62 = vld [vmem:[%s3 + $0x8] sm:$0xff]
    %v64 = vlaneseq
    %v65 = vshrl.u32 %v64, 7
    %v66 = vsub.s32 0, %v65
    %v67 = vrot.slane %v58, %v66
    %v68 = vlaneseq
    %v69 = vshrl.u32 %v68, 7
    %v70 = vsub.s32 1, %v69
    %v71 = vrot.slane %v58, %v70
    %v72 = vlaneseq
    %v73 = vshrl.u32 %v72, 7
    %v74 = vsub.s32 2, %v73
    %v75 = vrot.slane %v58, %v74
    %v76 = vlaneseq
    %v77 = vshrl.u32 %v76, 7
    %v78 = vsub.s32 3, %v77
    %v79 = vrot.slane %v58, %v78
    %v80 = vlaneseq
    %v81 = vshrl.u32 %v80, 7
    %v82 = vsub.s32 4, %v81
    %v83 = vrot.slane %v58, %v82
    %v84 = vlaneseq
    %v85 = vshrl.u32 %v84, 7
    %v86 = vsub.s32 5, %v85
    %v87 = vrot.slane %v58, %v86
    %v94 = vmul.f32 %v46, %v67
    %v95 = vmul.f32 %v47, %v71
    %v96 = vmul.f32 %v48, %v75
    %v97 = vmul.f32 %v49, %v79
    %v98 = vmul.f32 %v50, %v83
    %v99 = vmul.f32 %v51, %v87
    %v100 = vmul.f32 %v52, %v67
    %v101 = vmul.f32 %v53, %v71
    %v102 = vmul.f32 %v54, %v75
    %v103 = vmul.f32 %v55, %v79
    %v104 = vmul.f32 %v56, %v83
    %v105 = vmul.f32 %v57, %v87
    %v106 = vadd.f32 %v94, %v95
    %v107 = vadd.f32 %v106, %v96
    %v108 = vadd.f32 %v107, %v97
    %v109 = vadd.f32 %v108, %v98
    %vm110 = vcmask 64512
    %v111 = vsel %vm110, %v99, 0.0
    %v112 = vadd.f32 %v109, %v111
    %113 = vadd.xlane.f32.xlu0 %v112
    %v114 = vpop.xlane.xlu0 %113
    %v115 = vadd.f32 %v100, %v101
    %v116 = vadd.f32 %v115, %v102
    %v117 = vadd.f32 %v116, %v103
    %v118 = vadd.f32 %v117, %v104
    %v119 = vsel %vm110, %v105, 0.0
    %v120 = vadd.f32 %v118, %v119
    %121 = vadd.xlane.f32.xlu0 %v120
    %v122 = vpop.xlane.xlu0 %121
    %v123 = vmul.f32 %v114, 0.001953125
    %v124 = vmul.f32 %v122, 0.001953125
    %v125 = vmul.f32 %v94, %v94
    %v126 = vmul.f32 %v95, %v95
    %v127 = vmul.f32 %v96, %v96
    %v128 = vmul.f32 %v97, %v97
    %v129 = vmul.f32 %v98, %v98
    %v130 = vmul.f32 %v99, %v99
    %v131 = vmul.f32 %v100, %v100
    %v132 = vmul.f32 %v101, %v101
    %v133 = vmul.f32 %v102, %v102
    %v134 = vmul.f32 %v103, %v103
    %v135 = vmul.f32 %v104, %v104
    %v136 = vmul.f32 %v105, %v105
    %v137 = vadd.f32 %v125, %v126
    %v138 = vadd.f32 %v137, %v127
    %v139 = vadd.f32 %v138, %v128
    %v140 = vadd.f32 %v139, %v129
    %v141 = vsel %vm110, %v130, 0.0
    %v142 = vadd.f32 %v140, %v141
    %143 = vadd.xlane.f32.xlu0 %v142
    %v144 = vpop.xlane.xlu0 %143
    %v145 = vadd.f32 %v131, %v132
    %v146 = vadd.f32 %v145, %v133
    %v147 = vadd.f32 %v146, %v134
    %v148 = vadd.f32 %v147, %v135
    %v149 = vsel %vm110, %v136, 0.0
    %v150 = vadd.f32 %v148, %v149
    %151 = vadd.xlane.f32.xlu0 %v150
    %v152 = vpop.xlane.xlu0 %151
    %v153 = vmul.f32 %v144, 0.001953125
    %v154 = vmul.f32 %v152, 0.001953125
    %v155 = vmul.f32 %v123, %v123
    %v156 = vmul.f32 %v124, %v124
    %v157 = vsub.f32 %v153, %v155
    %v158 = vsub.f32 %v154, %v156
    %v159 = vadd.f32 %v157, 1e-05
    %v160 = vadd.f32 %v158, 1e-05
    %v161 = vrsqrt.pop %v159
    %v162 = vrsqrt.pop %v160
    %v163 = vsub.f32 %v46, %v123
    %v164 = vsub.f32 %v47, %v123
    %v165 = vsub.f32 %v48, %v123
    %v166 = vsub.f32 %v49, %v123
    %v167 = vsub.f32 %v50, %v123
    %v168 = vsub.f32 %v51, %v123
    %v169 = vsub.f32 %v52, %v124
    %v170 = vsub.f32 %v53, %v124
    %v171 = vsub.f32 %v54, %v124
    %v172 = vsub.f32 %v55, %v124
    %v173 = vsub.f32 %v56, %v124
    %v174 = vsub.f32 %v57, %v124
    %v175 = vmul.f32 %v161, %v59
    %v176 = vmul.f32 %v162, %v60
    %178 = vset.pattern.permute.xlu0 0
    %179 = vperm.xlu0 %178, %v175
    %v180 = vpop.permute.xlu0 %179
    %183 = vset.pattern.permute.xlu0 0
    %184 = vperm.xlu0 %183, %v176
    %v185 = vpop.permute.xlu0 %184
    %v187 = vmul.f32 %v163, %v180
    %v188 = vmul.f32 %v164, %v180
    %v189 = vmul.f32 %v165, %v180
    %v190 = vmul.f32 %v166, %v180
    %v191 = vmul.f32 %v167, %v180
    %v192 = vmul.f32 %v168, %v180
    %v193 = vmul.f32 %v169, %v185
    %v194 = vmul.f32 %v170, %v185
    %v195 = vmul.f32 %v171, %v185
    %v196 = vmul.f32 %v172, %v185
    %v197 = vmul.f32 %v173, %v185
    %v198 = vmul.f32 %v174, %v185
    %200 = vset.pattern.permute.xlu0 0
    %201 = vperm.xlu0 %200, %v61
    %v202 = vpop.permute.xlu0 %201
    %205 = vset.pattern.permute.xlu0 0
    %206 = vperm.xlu0 %205, %v62
    %v207 = vpop.permute.xlu0 %206
    %v209 = vadd.f32 %v187, %v202
    %v210 = vadd.f32 %v188, %v202
    %v211 = vadd.f32 %v189, %v202
    %v212 = vadd.f32 %v190, %v202
    %v213 = vadd.f32 %v191, %v202
    %v214 = vadd.f32 %v192, %v202
    %v215 = vadd.f32 %v193, %v207
    %v216 = vadd.f32 %v194, %v207
    %v217 = vadd.f32 %v195, %v207
    %v218 = vadd.f32 %v196, %v207
    %v219 = vadd.f32 %v197, %v207
    %v220 = vadd.f32 %v198, %v207
    %v221 = vmax.f32 %v209, 0.0
    %v222 = vmax.f32 %v210, 0.0
    %v223 = vmax.f32 %v211, 0.0
    %v224 = vmax.f32 %v212, 0.0
    %v225 = vmax.f32 %v213, 0.0
    %v226 = vmax.f32 %v214, 0.0
    %v227 = vmax.f32 %v215, 0.0
    %v228 = vmax.f32 %v216, 0.0
    %v229 = vmax.f32 %v217, 0.0
    %v230 = vmax.f32 %v218, 0.0
    %v231 = vmax.f32 %v219, 0.0
    %v232 = vmax.f32 %v220, 0.0
    %v233 = vmul.f32 %v221, %v67
    %v234 = vmul.f32 %v222, %v71
    %v235 = vmul.f32 %v223, %v75
    %v236 = vmul.f32 %v224, %v79
    %v237 = vmul.f32 %v225, %v83
    %v238 = vmul.f32 %v226, %v87
    %v239 = vmul.f32 %v227, %v67
    %v240 = vmul.f32 %v228, %v71
    %v241 = vmul.f32 %v229, %v75
    %v242 = vmul.f32 %v230, %v79
    %v243 = vmul.f32 %v231, %v83
    %v244 = vmul.f32 %v232, %v87
    %245 = vst [vmem:[#allocation2] sm:$0xff] 0.0
    %246 = vst [vmem:[#allocation2 + $0x8] sm:$0xff] 0.0
    %247 = vst [vmem:[#allocation2 + $0x10] sm:$0xff] 0.0
    %248 = vst [vmem:[#allocation2 + $0x18] sm:$0xff] 0.0
    %249 = vst [vmem:[#allocation2 + $0x20] sm:$0xff] 0.0
    %250 = vst [vmem:[#allocation2 + $0x28] sm:$0xff] 0.0
    %251 = vst [vmem:[#allocation2 + $0x30] sm:$0xff] 0.0
    %252 = vst.msk [vmem:[#allocation2 + $0x38] sm:$0xff] %vm110, 0.0
    %253 = vst [vmem:[#allocation2 + $0x40] sm:$0xff] 0.0
    %254 = vst [vmem:[#allocation2 + $0x48] sm:$0xff] 0.0
    %255 = vst [vmem:[#allocation2 + $0x50] sm:$0xff] 0.0
    %256 = vst [vmem:[#allocation2 + $0x58] sm:$0xff] 0.0
    %257 = vst [vmem:[#allocation2 + $0x60] sm:$0xff] 0.0
    %258 = vst [vmem:[#allocation2 + $0x68] sm:$0xff] 0.0
    %259 = vst [vmem:[#allocation2 + $0x70] sm:$0xff] 0.0
    %260 = vst.msk [vmem:[#allocation2 + $0x78] sm:$0xff] %vm110, 0.0
    %261 = vst [vmem:[#allocation2 + $0x8] sm:$0xff] %v233
    %262 = vst [vmem:[#allocation2 + $0x10] sm:$0xff] %v234
    %263 = vst [vmem:[#allocation2 + $0x18] sm:$0xff] %v235
    %264 = vst [vmem:[#allocation2 + $0x20] sm:$0xff] %v236
    %265 = vst [vmem:[#allocation2 + $0x28] sm:$0xff] %v237
    %266 = vst.msk [vmem:[#allocation2 + $0x30] sm:$0xff] %vm110, %v238
    %267 = vst [vmem:[#allocation2 + $0x48] sm:$0xff] %v239
    %268 = vst [vmem:[#allocation2 + $0x50] sm:$0xff] %v240
    %269 = vst [vmem:[#allocation2 + $0x58] sm:$0xff] %v241
    %270 = vst [vmem:[#allocation2 + $0x60] sm:$0xff] %v242
    %271 = vst [vmem:[#allocation2 + $0x68] sm:$0xff] %v243
    %272 = vst.msk [vmem:[#allocation2 + $0x70] sm:$0xff] %vm110, %v244
    %v273 = vld [vmem:[%s4] sm:$0xff]
    %v274 = vld [vmem:[%s4 + $0x8] sm:$0xff]
    %v275 = vld [vmem:[%s4 + $0x10] sm:$0xff]
    %v276 = vld [vmem:[%s4 + $0x18] sm:$0xff]
    %v277 = vpack.c.bf16 %v274, %v273
    %v278 = vpack.c.bf16 %v276, %v275
    %v279 = vld [vmem:[#allocation2] sm:$0xff]
    %v280 = vld [vmem:[#allocation2 + $0x8] sm:$0xff]
    %v281 = vld [vmem:[#allocation2 + $0x10] sm:$0xff]
    %v282 = vld [vmem:[#allocation2 + $0x18] sm:$0xff]
    %v283 = vld [vmem:[#allocation2 + $0x20] sm:$0xff]
    %v284 = vld [vmem:[#allocation2 + $0x28] sm:$0xff]
    %v285 = vld [vmem:[#allocation2 + $0x40] sm:$0xff]
    %v286 = vld [vmem:[#allocation2 + $0x48] sm:$0xff]
    %v287 = vld [vmem:[#allocation2 + $0x50] sm:$0xff]
    %v288 = vld [vmem:[#allocation2 + $0x58] sm:$0xff]
    %v289 = vld [vmem:[#allocation2 + $0x60] sm:$0xff]
    %v290 = vld [vmem:[#allocation2 + $0x68] sm:$0xff]
    %v291 = vpack.c.bf16 %v285, %v279
    %v292 = vpack.c.bf16 %v286, %v280
    %v293 = vpack.c.bf16 %v287, %v281
    %v294 = vpack.c.bf16 %v288, %v282
    %v295 = vpack.c.bf16 %v289, %v283
    %v296 = vpack.c.bf16 %v290, %v284
    %v297 = vld [vmem:[%s4 + $0x20] sm:$0xff]
    %v298 = vld [vmem:[%s4 + $0x28] sm:$0xff]
    %v299 = vld [vmem:[%s4 + $0x30] sm:$0xff]
    %v300 = vld [vmem:[%s4 + $0x38] sm:$0xff]
    %v301 = vpack.c.bf16 %v298, %v297
    %v302 = vpack.c.bf16 %v300, %v299
    %309 = vrot.lane.b32.xlu0 %v291, 18
    %v310 = vpop.permute.xlu0 %309
    %311 = vrot.lane.b32.xlu0 %v292, 18
    %v312 = vpop.permute.xlu0 %311
    %313 = vrot.lane.b32.xlu0 %v293, 18
    %v314 = vpop.permute.xlu0 %313
    %315 = vrot.lane.b32.xlu0 %v294, 18
    %v316 = vpop.permute.xlu0 %315
    %317 = vrot.lane.b32.xlu0 %v295, 18
    %v318 = vpop.permute.xlu0 %317
    %319 = vrot.lane.b32.xlu0 %v296, 18
    %v320 = vpop.permute.xlu0 %319
    %vm321 = vcmask 146432
    %v322 = vsel %vm321, %v310, %v312
    %v323 = vsel %vm321, %v312, %v314
    %v324 = vsel %vm321, %v314, %v316
    %v325 = vsel %vm321, %v316, %v318
    %v326 = vsel %vm321, %v318, %v320
    %vm333 = vcmask 130048
    %v335 = vsel %vm333, %v301, 0
    %v338 = vsel %vm333, %v302, 0
    %340 = vmatprep.subr.bf16.mxu0 %v323
    %341 = vmatpush1.bf16.msra.mxu0 %v322
    %342 = vmatprep.subr.bf16.mxu0 0
    %343 = vmatpush1.bf16.msra.mxu0 0
    %344 = vmatprep.subr.bf16.mxu0 0
    %345 = vmatpush1.bf16.msra.mxu0 0
    %346 = vmatprep.subr.bf16.mxu0 0
    %347 = vmatpush1.bf16.msra.mxu0 0
    %348 = vmatprep.subr.bf16.mxu0 0
    %349 = vmatpush1.bf16.msra.mxu0 0
    %350 = vmatprep.subr.bf16.mxu0 0
    %351 = vmatpush1.bf16.msra.mxu0 0
    %352 = vmatprep.subr.bf16.mxu0 0
    %353 = vmatpush1.bf16.msra.mxu0 0
    %354 = vmatprep.subr.bf16.mxu0 0
    %355 = vmatpush1.bf16.msra.mxu0 0
    %356 = vmatprep.subr.bf16.mxu0 0
    %357 = vmatpush1.bf16.msra.mxu0 0
    %358 = vmatprep.subr.bf16.mxu0 0
    %359 = vmatpush1.bf16.msra.mxu0 0
    %360 = vmatprep.subr.bf16.mxu0 0
    %361 = vmatpush1.bf16.msra.mxu0 0
    %362 = vmatprep.subr.bf16.mxu0 0
    %363 = vmatpush1.bf16.msra.mxu0 0
    %364 = vmatprep.subr.bf16.mxu0 0
    %365 = vmatpush1.bf16.msra.mxu0 0
    %366 = vmatprep.subr.bf16.mxu0 0
    %367 = vmatpush1.bf16.msra.mxu0 0
    %368 = vmatprep.subr.bf16.mxu0 0
    %369 = vmatpush1.bf16.msra.mxu0 0
    %370 = vmatprep.subr.bf16.mxu0 0
    %371 = vmatpush1.bf16.msra.mxu0 0
    %372 = vmatprep.mubr.bf16.mxu0 0
    %373 = vmatmul.mubr.bf16.gmra.mrb[0].mxu0 %v335
    %v374 = vpop.f32.mrb[0].mxu0
    %v375 = vadd.f32 0.0, %v374
    %v376 = vpop.f32.mrb[0].mxu0
    %v377 = vadd.f32 0.0, %v376
    %v378 = vpop.f32.mrb[0].mxu0
    %v379 = vadd.f32 0.0, %v378
    %v380 = vpop.f32.mrb[0].mxu0
    %v381 = vadd.f32 0.0, %v380
    %382 = vmatprep.mubr.bf16.mxu0 0
    %383 = vmatmul.mubr.bf16.gmra.mrb[0].mxu0 %v338
    %v384 = vpop.f32.mrb[0].mxu0
    %v385 = vadd.f32 0.0, %v384
    %v386 = vpop.f32.mrb[0].mxu0
    %v387 = vadd.f32 0.0, %v386
    %v388 = vpop.f32.mrb[0].mxu0
    %v389 = vadd.f32 0.0, %v388
    %v390 = vpop.f32.mrb[0].mxu0
    %v391 = vadd.f32 0.0, %v390
    %392 = vdwg.mxu0
    %393 = vmatprep.subr.bf16.mxu0 %v325
    %394 = vmatpush1.bf16.msra.mxu0 %v324
    %395 = vmatprep.subr.bf16.mxu0 0
    %396 = vmatpush1.bf16.msra.mxu0 0
    %397 = vmatprep.subr.bf16.mxu0 0
    %398 = vmatpush1.bf16.msra.mxu0 0
    %399 = vmatprep.subr.bf16.mxu0 0
    %400 = vmatpush1.bf16.msra.mxu0 0
    %401 = vmatprep.subr.bf16.mxu0 0
    %402 = vmatpush1.bf16.msra.mxu0 0
    %403 = vmatprep.subr.bf16.mxu0 0
    %404 = vmatpush1.bf16.msra.mxu0 0
    %405 = vmatprep.subr.bf16.mxu0 0
    %406 = vmatpush1.bf16.msra.mxu0 0
    %407 = vmatprep.subr.bf16.mxu0 0
    %408 = vmatpush1.bf16.msra.mxu0 0
    %409 = vmatprep.subr.bf16.mxu0 0
    %410 = vmatpush1.bf16.msra.mxu0 0
    %411 = vmatprep.subr.bf16.mxu0 0
    %412 = vmatpush1.bf16.msra.mxu0 0
    %413 = vmatprep.subr.bf16.mxu0 0
    %414 = vmatpush1.bf16.msra.mxu0 0
    %415 = vmatprep.subr.bf16.mxu0 0
    %416 = vmatpush1.bf16.msra.mxu0 0
    %417 = vmatprep.subr.bf16.mxu0 0
    %418 = vmatpush1.bf16.msra.mxu0 0
    %419 = vmatprep.subr.bf16.mxu0 0
    %420 = vmatpush1.bf16.msra.mxu0 0
    %421 = vmatprep.subr.bf16.mxu0 0
    %422 = vmatpush1.bf16.msra.mxu0 0
    %423 = vmatprep.subr.bf16.mxu0 0
    %424 = vmatpush1.bf16.msra.mxu0 0
    %425 = vmatprep.mubr.bf16.mxu0 0
    %426 = vmatmul.mubr.bf16.gmra.mrb[0].mxu0 %v335
    %v427 = vpop.f32.mrb[0].mxu0
    %v428 = vadd.f32 0.0, %v427
    %v429 = vpop.f32.mrb[0].mxu0
    %v430 = vadd.f32 0.0, %v429
    %v431 = vpop.f32.mrb[0].mxu0
    %v432 = vadd.f32 0.0, %v431
    %v433 = vpop.f32.mrb[0].mxu0
    %v434 = vadd.f32 0.0, %v433
    %435 = vmatprep.mubr.bf16.mxu0 0
    %436 = vmatmul.mubr.bf16.gmra.mrb[0].mxu0 %v338
    %v437 = vpop.f32.mrb[0].mxu0
    %v438 = vadd.f32 0.0, %v437
    %v439 = vpop.f32.mrb[0].mxu0
    %v440 = vadd.f32 0.0, %v439
    %v441 = vpop.f32.mrb[0].mxu0
    %v442 = vadd.f32 0.0, %v441
    %v443 = vpop.f32.mrb[0].mxu0
    %v444 = vadd.f32 0.0, %v443
    %445 = vdwg.mxu0
    %446 = vmatprep.subr.bf16.mxu0 %v320
    %447 = vmatpush1.bf16.msra.mxu0 %v326
    %448 = vmatprep.subr.bf16.mxu0 0
    %449 = vmatpush1.bf16.msra.mxu0 0
    %450 = vmatprep.subr.bf16.mxu0 0
    %451 = vmatpush1.bf16.msra.mxu0 0
    %452 = vmatprep.subr.bf16.mxu0 0
    %453 = vmatpush1.bf16.msra.mxu0 0
    %454 = vmatprep.subr.bf16.mxu0 0
    %455 = vmatpush1.bf16.msra.mxu0 0
    %456 = vmatprep.subr.bf16.mxu0 0
    %457 = vmatpush1.bf16.msra.mxu0 0
    %458 = vmatprep.subr.bf16.mxu0 0
    %459 = vmatpush1.bf16.msra.mxu0 0
    %460 = vmatprep.subr.bf16.mxu0 0
    %461 = vmatpush1.bf16.msra.mxu0 0
    %462 = vmatprep.subr.bf16.mxu0 0
    %463 = vmatpush1.bf16.msra.mxu0 0
    %464 = vmatprep.subr.bf16.mxu0 0
    %465 = vmatpush1.bf16.msra.mxu0 0
    %466 = vmatprep.subr.bf16.mxu0 0
    %467 = vmatpush1.bf16.msra.mxu0 0
    %468 = vmatprep.subr.bf16.mxu0 0
    %469 = vmatpush1.bf16.msra.mxu0 0
    %470 = vmatprep.subr.bf16.mxu0 0
    %471 = vmatpush1.bf16.msra.mxu0 0
    %472 = vmatprep.subr.bf16.mxu0 0
    %473 = vmatpush1.bf16.msra.mxu0 0
    %474 = vmatprep.subr.bf16.mxu0 0
    %475 = vmatpush1.bf16.msra.mxu0 0
    %476 = vmatprep.subr.bf16.mxu0 0
    %477 = vmatpush1.bf16.msra.mxu0 0
    %478 = vmatprep.mubr.bf16.mxu0 0
    %479 = vmatmul.mubr.bf16.gmra.mrb[0].mxu0 %v335
    %v480 = vpop.f32.mrb[0].mxu0
    %v481 = vadd.f32 0.0, %v480
    %v482 = vpop.f32.mrb[0].mxu0
    %v483 = vadd.f32 0.0, %v482
    %v484 = vpop.f32.mrb[0].mxu0
    %v485 = vadd.f32 0.0, %v484
    %v486 = vpop.f32.mrb[0].mxu0
    %v487 = vadd.f32 0.0, %v486
    %488 = vmatprep.mubr.bf16.mxu0 0
    %489 = vmatmul.mubr.bf16.gmra.mrb[0].mxu0 %v338
    %v490 = vpop.f32.mrb[0].mxu0
    %v491 = vadd.f32 0.0, %v490
    %v492 = vpop.f32.mrb[0].mxu0
    %v493 = vadd.f32 0.0, %v492
    %v494 = vpop.f32.mrb[0].mxu0
    %v495 = vadd.f32 0.0, %v494
    %v496 = vpop.f32.mrb[0].mxu0
    %v497 = vadd.f32 0.0, %v496
    %498 = vdwg.mxu0
    %499 = vrot.lane.b32.xlu0 %v291, 19
    %v500 = vpop.permute.xlu0 %499
    %501 = vrot.lane.b32.xlu0 %v292, 19
    %v502 = vpop.permute.xlu0 %501
    %503 = vrot.lane.b32.xlu0 %v293, 19
    %v504 = vpop.permute.xlu0 %503
    %505 = vrot.lane.b32.xlu0 %v294, 19
    %v506 = vpop.permute.xlu0 %505
    %507 = vrot.lane.b32.xlu0 %v295, 19
    %v508 = vpop.permute.xlu0 %507
    %509 = vrot.lane.b32.xlu0 %v296, 19
    %v510 = vpop.permute.xlu0 %509
    %vm511 = vcmask 154624
    %v512 = vsel %vm511, %v500, %v502
    %v513 = vsel %vm511, %v502, %v504
    %v514 = vsel %vm511, %v504, %v506
    %v515 = vsel %vm511, %v506, %v508
    %v516 = vsel %vm511, %v508, %v510
    %v524 = vsel %vm333, %v277, 0
    %v527 = vsel %vm333, %v278, 0
    %529 = vmatprep.subr.bf16.mxu0 %v513
    %530 = vmatpush1.bf16.msra.mxu0 %v512
    %531 = vmatprep.subr.bf16.mxu0 0
    %532 = vmatpush1.bf16.msra.mxu0 0
    %533 = vmatprep.subr.bf16.mxu0 0
    %534 = vmatpush1.bf16.msra.mxu0 0
    %535 = vmatprep.subr.bf16.mxu0 0
    %536 = vmatpush1.bf16.msra.mxu0 0
    %537 = vmatprep.subr.bf16.mxu0 0
    %538 = vmatpush1.bf16.msra.mxu0 0
    %539 = vmatprep.subr.bf16.mxu0 0
    %540 = vmatpush1.bf16.msra.mxu0 0
    %541 = vmatprep.subr.bf16.mxu0 0
    %542 = vmatpush1.bf16.msra.mxu0 0
    %543 = vmatprep.subr.bf16.mxu0 0
    %544 = vmatpush1.bf16.msra.mxu0 0
    %545 = vmatprep.subr.bf16.mxu0 0
    %546 = vmatpush1.bf16.msra.mxu0 0
    %547 = vmatprep.subr.bf16.mxu0 0
    %548 = vmatpush1.bf16.msra.mxu0 0
    %549 = vmatprep.subr.bf16.mxu0 0
    %550 = vmatpush1.bf16.msra.mxu0 0
    %551 = vmatprep.subr.bf16.mxu0 0
    %552 = vmatpush1.bf16.msra.mxu0 0
    %553 = vmatprep.subr.bf16.mxu0 0
    %554 = vmatpush1.bf16.msra.mxu0 0
    %555 = vmatprep.subr.bf16.mxu0 0
    %556 = vmatpush1.bf16.msra.mxu0 0
    %557 = vmatprep.subr.bf16.mxu0 0
    %558 = vmatpush1.bf16.msra.mxu0 0
    %559 = vmatprep.subr.bf16.mxu0 0
    %560 = vmatpush1.bf16.msra.mxu0 0
    %561 = vmatprep.mubr.bf16.mxu0 0
    %562 = vmatmul.mubr.bf16.gmra.mrb[0].mxu0 %v524
    %v563 = vpop.f32.mrb[0].mxu0
    %v564 = vadd.f32 %v375, %v563
    %v565 = vpop.f32.mrb[0].mxu0
    %v566 = vadd.f32 %v377, %v565
    %v567 = vpop.f32.mrb[0].mxu0
    %v568 = vadd.f32 %v379, %v567
    %v569 = vpop.f32.mrb[0].mxu0
    %v570 = vadd.f32 %v381, %v569
    %571 = vmatprep.mubr.bf16.mxu0 0
    %572 = vmatmul.mubr.bf16.gmra.mrb[0].mxu0 %v527
    %v573 = vpop.f32.mrb[0].mxu0
    %v574 = vadd.f32 %v385, %v573
    %v575 = vpop.f32.mrb[0].mxu0
    %v576 = vadd.f32 %v387, %v575
    %v577 = vpop.f32.mrb[0].mxu0
    %v578 = vadd.f32 %v389, %v577
    %v579 = vpop.f32.mrb[0].mxu0
    %v580 = vadd.f32 %v391, %v579
    %581 = vdwg.mxu0
    %582 = vmatprep.subr.bf16.mxu0 %v515
    %583 = vmatpush1.bf16.msra.mxu0 %v514
    %584 = vmatprep.subr.bf16.mxu0 0
    %585 = vmatpush1.bf16.msra.mxu0 0
    %586 = vmatprep.subr.bf16.mxu0 0
    %587 = vmatpush1.bf16.msra.mxu0 0
    %588 = vmatprep.subr.bf16.mxu0 0
    %589 = vmatpush1.bf16.msra.mxu0 0
    %590 = vmatprep.subr.bf16.mxu0 0
    %591 = vmatpush1.bf16.msra.mxu0 0
    %592 = vmatprep.subr.bf16.mxu0 0
    %593 = vmatpush1.bf16.msra.mxu0 0
    %594 = vmatprep.subr.bf16.mxu0 0
    %595 = vmatpush1.bf16.msra.mxu0 0
    %596 = vmatprep.subr.bf16.mxu0 0
    %597 = vmatpush1.bf16.msra.mxu0 0
    %598 = vmatprep.subr.bf16.mxu0 0
    %599 = vmatpush1.bf16.msra.mxu0 0
    %600 = vmatprep.subr.bf16.mxu0 0
    %601 = vmatpush1.bf16.msra.mxu0 0
    %602 = vmatprep.subr.bf16.mxu0 0
    %603 = vmatpush1.bf16.msra.mxu0 0
    %604 = vmatprep.subr.bf16.mxu0 0
    %605 = vmatpush1.bf16.msra.mxu0 0
    %606 = vmatprep.subr.bf16.mxu0 0
    %607 = vmatpush1.bf16.msra.mxu0 0
    %608 = vmatprep.subr.bf16.mxu0 0
    %609 = vmatpush1.bf16.msra.mxu0 0
    %610 = vmatprep.subr.bf16.mxu0 0
    %611 = vmatpush1.bf16.msra.mxu0 0
    %612 = vmatprep.subr.bf16.mxu0 0
    %613 = vmatpush1.bf16.msra.mxu0 0
    %614 = vmatprep.mubr.bf16.mxu0 0
    %615 = vmatmul.mubr.bf16.gmra.mrb[0].mxu0 %v524
    %v616 = vpop.f32.mrb[0].mxu0
    %v617 = vadd.f32 %v428, %v616
    %v618 = vpop.f32.mrb[0].mxu0
    %v619 = vadd.f32 %v430, %v618
    %v620 = vpop.f32.mrb[0].mxu0
    %v621 = vadd.f32 %v432, %v620
    %v622 = vpop.f32.mrb[0].mxu0
    %v623 = vadd.f32 %v434, %v622
    %624 = vmatprep.mubr.bf16.mxu0 0
    %625 = vmatmul.mubr.bf16.gmra.mrb[0].mxu0 %v527
    %v626 = vpop.f32.mrb[0].mxu0
    %v627 = vadd.f32 %v438, %v626
    %v628 = vpop.f32.mrb[0].mxu0
    %v629 = vadd.f32 %v440, %v628
    %v630 = vpop.f32.mrb[0].mxu0
    %v631 = vadd.f32 %v442, %v630
    %v632 = vpop.f32.mrb[0].mxu0
    %v633 = vadd.f32 %v444, %v632
    %634 = vdwg.mxu0
    %635 = vmatprep.subr.bf16.mxu0 %v510
    %636 = vmatpush1.bf16.msra.mxu0 %v516
    %637 = vmatprep.subr.bf16.mxu0 0
    %638 = vmatpush1.bf16.msra.mxu0 0
    %639 = vmatprep.subr.bf16.mxu0 0
    %640 = vmatpush1.bf16.msra.mxu0 0
    %641 = vmatprep.subr.bf16.mxu0 0
    %642 = vmatpush1.bf16.msra.mxu0 0
    %643 = vmatprep.subr.bf16.mxu0 0
    %644 = vmatpush1.bf16.msra.mxu0 0
    %645 = vmatprep.subr.bf16.mxu0 0
    %646 = vmatpush1.bf16.msra.mxu0 0
    %647 = vmatprep.subr.bf16.mxu0 0
    %648 = vmatpush1.bf16.msra.mxu0 0
    %649 = vmatprep.subr.bf16.mxu0 0
    %650 = vmatpush1.bf16.msra.mxu0 0
    %651 = vmatprep.subr.bf16.mxu0 0
    %652 = vmatpush1.bf16.msra.mxu0 0
    %653 = vmatprep.subr.bf16.mxu0 0
    %654 = vmatpush1.bf16.msra.mxu0 0
    %655 = vmatprep.subr.bf16.mxu0 0
    %656 = vmatpush1.bf16.msra.mxu0 0
    %657 = vmatprep.subr.bf16.mxu0 0
    %658 = vmatpush1.bf16.msra.mxu0 0
    %659 = vmatprep.subr.bf16.mxu0 0
    %660 = vmatpush1.bf16.msra.mxu0 0
    %661 = vmatprep.subr.bf16.mxu0 0
    %662 = vmatpush1.bf16.msra.mxu0 0
    %663 = vmatprep.subr.bf16.mxu0 0
    %664 = vmatpush1.bf16.msra.mxu0 0
    %665 = vmatprep.subr.bf16.mxu0 0
    %666 = vmatpush1.bf16.msra.mxu0 0
    %667 = vmatprep.mubr.bf16.mxu0 0
    %668 = vmatmul.mubr.bf16.gmra.mrb[0].mxu0 %v524
    %v669 = vpop.f32.mrb[0].mxu0
    %v670 = vadd.f32 %v481, %v669
    %v671 = vpop.f32.mrb[0].mxu0
    %v672 = vadd.f32 %v483, %v671
    %v673 = vpop.f32.mrb[0].mxu0
    %v674 = vadd.f32 %v485, %v673
    %v675 = vpop.f32.mrb[0].mxu0
    %v676 = vadd.f32 %v487, %v675
    %677 = vmatprep.mubr.bf16.mxu0 0
    %678 = vmatmul.mubr.bf16.gmra.mrb[0].mxu0 %v527
    %v679 = vpop.f32.mrb[0].mxu0
    %v680 = vadd.f32 %v491, %v679
    %v681 = vpop.f32.mrb[0].mxu0
    %v682 = vadd.f32 %v493, %v681
    %v683 = vpop.f32.mrb[0].mxu0
    %v684 = vadd.f32 %v495, %v683
    %v685 = vpop.f32.mrb[0].mxu0
    %v686 = vadd.f32 %v497, %v685
    %687 = vdwg.mxu0
    %v688 = vld [vmem:[%s4 + $0x40] sm:$0xff]
    %v689 = vld [vmem:[%s4 + $0x48] sm:$0xff]
    %v690 = vld [vmem:[%s4 + $0x50] sm:$0xff]
    %v691 = vld [vmem:[%s4 + $0x58] sm:$0xff]
    %v692 = vpack.c.bf16 %v689, %v688
    %v693 = vpack.c.bf16 %v691, %v690
    %694 = vrot.lane.b32.xlu0 %v291, 17
    %v695 = vpop.permute.xlu0 %694
    %696 = vrot.lane.b32.xlu0 %v292, 17
    %v697 = vpop.permute.xlu0 %696
    %698 = vrot.lane.b32.xlu0 %v293, 17
    %v699 = vpop.permute.xlu0 %698
    %700 = vrot.lane.b32.xlu0 %v294, 17
    %v701 = vpop.permute.xlu0 %700
    %702 = vrot.lane.b32.xlu0 %v295, 17
    %v703 = vpop.permute.xlu0 %702
    %704 = vrot.lane.b32.xlu0 %v296, 17
    %v705 = vpop.permute.xlu0 %704
    %vm706 = vcmask 138240
    %v707 = vsel %vm706, %v695, %v697
    %v708 = vsel %vm706, %v697, %v699
    %v709 = vsel %vm706, %v699, %v701
    %v710 = vsel %vm706, %v701, %v703
    %v711 = vsel %vm706, %v703, %v705
    %v719 = vsel %vm333, %v692, 0
    %v722 = vsel %vm333, %v693, 0
    %724 = vmatprep.subr.bf16.mxu0 %v708
    %725 = vmatpush1.bf16.msra.mxu0 %v707
    %726 = vmatprep.subr.bf16.mxu0 0
    %727 = vmatpush1.bf16.msra.mxu0 0
    %728 = vmatprep.subr.bf16.mxu0 0
    %729 = vmatpush1.bf16.msra.mxu0 0
    %730 = vmatprep.subr.bf16.mxu0 0
    %731 = vmatpush1.bf16.msra.mxu0 0
    %732 = vmatprep.subr.bf16.mxu0 0
    %733 = vmatpush1.bf16.msra.mxu0 0
    %734 = vmatprep.subr.bf16.mxu0 0
    %735 = vmatpush1.bf16.msra.mxu0 0
    %736 = vmatprep.subr.bf16.mxu0 0
    %737 = vmatpush1.bf16.msra.mxu0 0
    %738 = vmatprep.subr.bf16.mxu0 0
    %739 = vmatpush1.bf16.msra.mxu0 0
    %740 = vmatprep.subr.bf16.mxu0 0
    %741 = vmatpush1.bf16.msra.mxu0 0
    %742 = vmatprep.subr.bf16.mxu0 0
    %743 = vmatpush1.bf16.msra.mxu0 0
    %744 = vmatprep.subr.bf16.mxu0 0
    %745 = vmatpush1.bf16.msra.mxu0 0
    %746 = vmatprep.subr.bf16.mxu0 0
    %747 = vmatpush1.bf16.msra.mxu0 0
    %748 = vmatprep.subr.bf16.mxu0 0
    %749 = vmatpush1.bf16.msra.mxu0 0
    %750 = vmatprep.subr.bf16.mxu0 0
    %751 = vmatpush1.bf16.msra.mxu0 0
    %752 = vmatprep.subr.bf16.mxu0 0
    %753 = vmatpush1.bf16.msra.mxu0 0
    %754 = vmatprep.subr.bf16.mxu0 0
    %755 = vmatpush1.bf16.msra.mxu0 0
    %756 = vmatprep.mubr.bf16.mxu0 0
    %757 = vmatmul.mubr.bf16.gmra.mrb[0].mxu0 %v719
    %v758 = vpop.f32.mrb[0].mxu0
    %v759 = vadd.f32 0.0, %v758
    %v760 = vpop.f32.mrb[0].mxu0
    %v761 = vadd.f32 0.0, %v760
    %v762 = vpop.f32.mrb[0].mxu0
    %v763 = vadd.f32 0.0, %v762
    %v764 = vpop.f32.mrb[0].mxu0
    %v765 = vadd.f32 0.0, %v764
    %766 = vmatprep.mubr.bf16.mxu0 0
    %767 = vmatmul.mubr.bf16.gmra.mrb[0].mxu0 %v722
    %v768 = vpop.f32.mrb[0].mxu0
    %v769 = vadd.f32 0.0, %v768
    %v770 = vpop.f32.mrb[0].mxu0
    %v771 = vadd.f32 0.0, %v770
    %v772 = vpop.f32.mrb[0].mxu0
    %v773 = vadd.f32 0.0, %v772
    %v774 = vpop.f32.mrb[0].mxu0
    %v775 = vadd.f32 0.0, %v774
    %776 = vdwg.mxu0
    %777 = vmatprep.subr.bf16.mxu0 %v710
    %778 = vmatpush1.bf16.msra.mxu0 %v709
    %779 = vmatprep.subr.bf16.mxu0 0
    %780 = vmatpush1.bf16.msra.mxu0 0
    %781 = vmatprep.subr.bf16.mxu0 0
    %782 = vmatpush1.bf16.msra.mxu0 0
    %783 = vmatprep.subr.bf16.mxu0 0
    %784 = vmatpush1.bf16.msra.mxu0 0
    %785 = vmatprep.subr.bf16.mxu0 0
    %786 = vmatpush1.bf16.msra.mxu0 0
    %787 = vmatprep.subr.bf16.mxu0 0
    %788 = vmatpush1.bf16.msra.mxu0 0
    %789 = vmatprep.subr.bf16.mxu0 0
    %790 = vmatpush1.bf16.msra.mxu0 0
    %791 = vmatprep.subr.bf16.mxu0 0
    %792 = vmatpush1.bf16.msra.mxu0 0
    %793 = vmatprep.subr.bf16.mxu0 0
    %794 = vmatpush1.bf16.msra.mxu0 0
    %795 = vmatprep.subr.bf16.mxu0 0
    %796 = vmatpush1.bf16.msra.mxu0 0
    %797 = vmatprep.subr.bf16.mxu0 0
    %798 = vmatpush1.bf16.msra.mxu0 0
    %799 = vmatprep.subr.bf16.mxu0 0
    %800 = vmatpush1.bf16.msra.mxu0 0
    %801 = vmatprep.subr.bf16.mxu0 0
    %802 = vmatpush1.bf16.msra.mxu0 0
    %803 = vmatprep.subr.bf16.mxu0 0
    %804 = vmatpush1.bf16.msra.mxu0 0
    %805 = vmatprep.subr.bf16.mxu0 0
    %806 = vmatpush1.bf16.msra.mxu0 0
    %807 = vmatprep.subr.bf16.mxu0 0
    %808 = vmatpush1.bf16.msra.mxu0 0
    %809 = vmatprep.mubr.bf16.mxu0 0
    %810 = vmatmul.mubr.bf16.gmra.mrb[0].mxu0 %v719
    %v811 = vpop.f32.mrb[0].mxu0
    %v812 = vadd.f32 0.0, %v811
    %v813 = vpop.f32.mrb[0].mxu0
    %v814 = vadd.f32 0.0, %v813
    %v815 = vpop.f32.mrb[0].mxu0
    %v816 = vadd.f32 0.0, %v815
    %v817 = vpop.f32.mrb[0].mxu0
    %v818 = vadd.f32 0.0, %v817
    %819 = vmatprep.mubr.bf16.mxu0 0
    %820 = vmatmul.mubr.bf16.gmra.mrb[0].mxu0 %v722
    %v821 = vpop.f32.mrb[0].mxu0
    %v822 = vadd.f32 0.0, %v821
    %v823 = vpop.f32.mrb[0].mxu0
    %v824 = vadd.f32 0.0, %v823
    %v825 = vpop.f32.mrb[0].mxu0
    %v826 = vadd.f32 0.0, %v825
    %v827 = vpop.f32.mrb[0].mxu0
    %v828 = vadd.f32 0.0, %v827
    %829 = vdwg.mxu0
    %830 = vmatprep.subr.bf16.mxu0 %v705
    %831 = vmatpush1.bf16.msra.mxu0 %v711
    %832 = vmatprep.subr.bf16.mxu0 0
    %833 = vmatpush1.bf16.msra.mxu0 0
    %834 = vmatprep.subr.bf16.mxu0 0
    %835 = vmatpush1.bf16.msra.mxu0 0
    %836 = vmatprep.subr.bf16.mxu0 0
    %837 = vmatpush1.bf16.msra.mxu0 0
    %838 = vmatprep.subr.bf16.mxu0 0
    %839 = vmatpush1.bf16.msra.mxu0 0
    %840 = vmatprep.subr.bf16.mxu0 0
    %841 = vmatpush1.bf16.msra.mxu0 0
    %842 = vmatprep.subr.bf16.mxu0 0
    %843 = vmatpush1.bf16.msra.mxu0 0
    %844 = vmatprep.subr.bf16.mxu0 0
    %845 = vmatpush1.bf16.msra.mxu0 0
    %846 = vmatprep.subr.bf16.mxu0 0
    %847 = vmatpush1.bf16.msra.mxu0 0
    %848 = vmatprep.subr.bf16.mxu0 0
    %849 = vmatpush1.bf16.msra.mxu0 0
    %850 = vmatprep.subr.bf16.mxu0 0
    %851 = vmatpush1.bf16.msra.mxu0 0
    %852 = vmatprep.subr.bf16.mxu0 0
    %853 = vmatpush1.bf16.msra.mxu0 0
    %854 = vmatprep.subr.bf16.mxu0 0
    %855 = vmatpush1.bf16.msra.mxu0 0
    %856 = vmatprep.subr.bf16.mxu0 0
    %857 = vmatpush1.bf16.msra.mxu0 0
    %858 = vmatprep.subr.bf16.mxu0 0
    %859 = vmatpush1.bf16.msra.mxu0 0
    %860 = vmatprep.subr.bf16.mxu0 0
    %861 = vmatpush1.bf16.msra.mxu0 0
    %862 = vmatprep.mubr.bf16.mxu0 0
    %863 = vmatmul.mubr.bf16.gmra.mrb[0].mxu0 %v719
    %v864 = vpop.f32.mrb[0].mxu0
    %v865 = vadd.f32 0.0, %v864
    %v866 = vpop.f32.mrb[0].mxu0
    %v867 = vadd.f32 0.0, %v866
    %v868 = vpop.f32.mrb[0].mxu0
    %v869 = vadd.f32 0.0, %v868
    %v870 = vpop.f32.mrb[0].mxu0
    %v871 = vadd.f32 0.0, %v870
    %872 = vmatprep.mubr.bf16.mxu0 0
    %873 = vmatmul.mubr.bf16.gmra.mrb[0].mxu0 %v722
    %v874 = vpop.f32.mrb[0].mxu0
    %v875 = vadd.f32 0.0, %v874
    %v876 = vpop.f32.mrb[0].mxu0
    %v877 = vadd.f32 0.0, %v876
    %v878 = vpop.f32.mrb[0].mxu0
    %v879 = vadd.f32 0.0, %v878
    %v880 = vpop.f32.mrb[0].mxu0
    %v881 = vadd.f32 0.0, %v880
    %882 = vdwg.mxu0
    %v883 = vadd.f32 %v564, %v759
    %v884 = vadd.f32 %v566, %v761
    %v885 = vadd.f32 %v617, %v812
    %v886 = vadd.f32 %v619, %v814
    %v887 = vadd.f32 %v670, %v865
    %v888 = vadd.f32 %v672, %v867
    %v889 = vadd.f32 %v568, %v763
    %v890 = vadd.f32 %v570, %v765
    %v891 = vadd.f32 %v621, %v816
    %v892 = vadd.f32 %v623, %v818
    %v893 = vadd.f32 %v674, %v869
    %v894 = vadd.f32 %v676, %v871
    %v895 = vadd.f32 %v574, %v769
    %v896 = vadd.f32 %v576, %v771
    %v897 = vadd.f32 %v627, %v822
    %v898 = vadd.f32 %v629, %v824
    %v899 = vadd.f32 %v680, %v875
    %v900 = vadd.f32 %v682, %v877
    %v901 = vadd.f32 %v578, %v773
    %v902 = vadd.f32 %v580, %v775
    %v903 = vadd.f32 %v631, %v826
    %v904 = vadd.f32 %v633, %v828
    %v905 = vadd.f32 %v684, %v879
    %v906 = vadd.f32 %v686, %v881
    %v907 = vld [vmem:[%s4 + $0x60] sm:$0xff]
    %v908 = vld [vmem:[%s4 + $0x68] sm:$0xff]
    %v909 = vld [vmem:[%s4 + $0x70] sm:$0xff]
    %v910 = vld [vmem:[%s4 + $0x78] sm:$0xff]
    %v911 = vpack.c.bf16 %v908, %v907
    %v912 = vpack.c.bf16 %v910, %v909
    %v913 = vld [vmem:[#allocation2] sm:$0xff]
    %v914 = vld [vmem:[#allocation2 + $0x8] sm:$0xff]
    %v915 = vld [vmem:[#allocation2 + $0x10] sm:$0xff]
    %v916 = vld [vmem:[#allocation2 + $0x18] sm:$0xff]
    %v917 = vld [vmem:[#allocation2 + $0x20] sm:$0xff]
    %v918 = vld [vmem:[#allocation2 + $0x28] sm:$0xff]
    %v919 = vld [vmem:[#allocation2 + $0x30] sm:$0xff]
    %v920 = vld [vmem:[#allocation2 + $0x40] sm:$0xff]
    %v921 = vld [vmem:[#allocation2 + $0x48] sm:$0xff]
    %v922 = vld [vmem:[#allocation2 + $0x50] sm:$0xff]
    %v923 = vld [vmem:[#allocation2 + $0x58] sm:$0xff]
    %v924 = vld [vmem:[#allocation2 + $0x60] sm:$0xff]
    %v925 = vld [vmem:[#allocation2 + $0x68] sm:$0xff]
    %v926 = vld [vmem:[#allocation2 + $0x70] sm:$0xff]
    %v927 = vpack.c.bf16 %v920, %v913
    %v928 = vpack.c.bf16 %v921, %v914
    %v929 = vpack.c.bf16 %v922, %v915
    %v930 = vpack.c.bf16 %v923, %v916
    %v931 = vpack.c.bf16 %v924, %v917
    %v932 = vpack.c.bf16 %v925, %v918
    %v933 = vpack.c.bf16 %v926, %v919
    %941 = vrot.lane.b32.xlu0 %v927, 1
    %v942 = vpop.permute.xlu0 %941
    %943 = vrot.lane.b32.xlu0 %v928, 1
    %v944 = vpop.permute.xlu0 %943
    %945 = vrot.lane.b32.xlu0 %v929, 1
    %v946 = vpop.permute.xlu0 %945
    %947 = vrot.lane.b32.xlu0 %v930, 1
    %v948 = vpop.permute.xlu0 %947
    %949 = vrot.lane.b32.xlu0 %v931, 1
    %v950 = vpop.permute.xlu0 %949
    %951 = vrot.lane.b32.xlu0 %v932, 1
    %v952 = vpop.permute.xlu0 %951
    %953 = vrot.lane.b32.xlu0 %v933, 1
    %v954 = vpop.permute.xlu0 %953
    %vm955 = vcmask 7168
    %v956 = vsel %vm955, %v942, %v944
    %v957 = vsel %vm955, %v944, %v946
    %v958 = vsel %vm955, %v946, %v948
    %v959 = vsel %vm955, %v948, %v950
    %v960 = vsel %vm955, %v950, %v952
    %v961 = vsel %vm955, %v952, %v954
    %v969 = vsel %vm333, %v911, 0
    %v972 = vsel %vm333, %v912, 0
    %974 = vmatprep.subr.bf16.mxu0 %v957
    %975 = vmatpush1.bf16.msra.mxu0 %v956
    %976 = vmatprep.subr.bf16.mxu0 0
    %977 = vmatpush1.bf16.msra.mxu0 0
    %978 = vmatprep.subr.bf16.mxu0 0
    %979 = vmatpush1.bf16.msra.mxu0 0
    %980 = vmatprep.subr.bf16.mxu0 0
    %981 = vmatpush1.bf16.msra.mxu0 0
    %982 = vmatprep.subr.bf16.mxu0 0
    %983 = vmatpush1.bf16.msra.mxu0 0
    %984 = vmatprep.subr.bf16.mxu0 0
    %985 = vmatpush1.bf16.msra.mxu0 0
    %986 = vmatprep.subr.bf16.mxu0 0
    %987 = vmatpush1.bf16.msra.mxu0 0
    %988 = vmatprep.subr.bf16.mxu0 0
    %989 = vmatpush1.bf16.msra.mxu0 0
    %990 = vmatprep.subr.bf16.mxu0 0
    %991 = vmatpush1.bf16.msra.mxu0 0
    %992 = vmatprep.subr.bf16.mxu0 0
    %993 = vmatpush1.bf16.msra.mxu0 0
    %994 = vmatprep.subr.bf16.mxu0 0
    %995 = vmatpush1.bf16.msra.mxu0 0
    %996 = vmatprep.subr.bf16.mxu0 0
    %997 = vmatpush1.bf16.msra.mxu0 0
    %998 = vmatprep.subr.bf16.mxu0 0
    %999 = vmatpush1.bf16.msra.mxu0 0
    %1000 = vmatprep.subr.bf16.mxu0 0
    %1001 = vmatpush1.bf16.msra.mxu0 0
    %1002 = vmatprep.subr.bf16.mxu0 0
    %1003 = vmatpush1.bf16.msra.mxu0 0
    %1004 = vmatprep.subr.bf16.mxu0 0
    %1005 = vmatpush1.bf16.msra.mxu0 0
    %1006 = vmatprep.mubr.bf16.mxu0 0
    %1007 = vmatmul.mubr.bf16.gmra.mrb[0].mxu0 %v969
    %v1008 = vpop.f32.mrb[0].mxu0
    %v1009 = vadd.f32 0.0, %v1008
    %v1010 = vpop.f32.mrb[0].mxu0
    %v1011 = vadd.f32 0.0, %v1010
    %v1012 = vpop.f32.mrb[0].mxu0
    %v1013 = vadd.f32 0.0, %v1012
    %v1014 = vpop.f32.mrb[0].mxu0
    %v1015 = vadd.f32 0.0, %v1014
    %1016 = vmatprep.mubr.bf16.mxu0 0
    %1017 = vmatmul.mubr.bf16.gmra.mrb[0].mxu0 %v972
    %v1018 = vpop.f32.mrb[0].mxu0
    %v1019 = vadd.f32 0.0, %v1018
    %v1020 = vpop.f32.mrb[0].mxu0
    %v1021 = vadd.f32 0.0, %v1020
    %v1022 = vpop.f32.mrb[0].mxu0
    %v1023 = vadd.f32 0.0, %v1022
    %v1024 = vpop.f32.mrb[0].mxu0
    %v1025 = vadd.f32 0.0, %v1024
    %1026 = vdwg.mxu0
    %1027 = vmatprep.subr.bf16.mxu0 %v959
    %1028 = vmatpush1.bf16.msra.mxu0 %v958
    %1029 = vmatprep.subr.bf16.mxu0 0
    %1030 = vmatpush1.bf16.msra.mxu0 0
    %1031 = vmatprep.subr.bf16.mxu0 0
    %1032 = vmatpush1.bf16.msra.mxu0 0
    %1033 = vmatprep.subr.bf16.mxu0 0
    %1034 = vmatpush1.bf16.msra.mxu0 0
    %1035 = vmatprep.subr.bf16.mxu0 0
    %1036 = vmatpush1.bf16.msra.mxu0 0
    %1037 = vmatprep.subr.bf16.mxu0 0
    %1038 = vmatpush1.bf16.msra.mxu0 0
    %1039 = vmatprep.subr.bf16.mxu0 0
    %1040 = vmatpush1.bf16.msra.mxu0 0
    %1041 = vmatprep.subr.bf16.mxu0 0
    %1042 = vmatpush1.bf16.msra.mxu0 0
    %1043 = vmatprep.subr.bf16.mxu0 0
    %1044 = vmatpush1.bf16.msra.mxu0 0
    %1045 = vmatprep.subr.bf16.mxu0 0
    %1046 = vmatpush1.bf16.msra.mxu0 0
    %1047 = vmatprep.subr.bf16.mxu0 0
    %1048 = vmatpush1.bf16.msra.mxu0 0
    %1049 = vmatprep.subr.bf16.mxu0 0
    %1050 = vmatpush1.bf16.msra.mxu0 0
    %1051 = vmatprep.subr.bf16.mxu0 0
    %1052 = vmatpush1.bf16.msra.mxu0 0
    %1053 = vmatprep.subr.bf16.mxu0 0
    %1054 = vmatpush1.bf16.msra.mxu0 0
    %1055 = vmatprep.subr.bf16.mxu0 0
    %1056 = vmatpush1.bf16.msra.mxu0 0
    %1057 = vmatprep.subr.bf16.mxu0 0
    %1058 = vmatpush1.bf16.msra.mxu0 0
    %1059 = vmatprep.mubr.bf16.mxu0 0
    %1060 = vmatmul.mubr.bf16.gmra.mrb[0].mxu0 %v969
    %v1061 = vpop.f32.mrb[0].mxu0
    %v1062 = vadd.f32 0.0, %v1061
    %v1063 = vpop.f32.mrb[0].mxu0
    %v1064 = vadd.f32 0.0, %v1063
    %v1065 = vpop.f32.mrb[0].mxu0
    %v1066 = vadd.f32 0.0, %v1065
    %v1067 = vpop.f32.mrb[0].mxu0
    %v1068 = vadd.f32 0.0, %v1067
    %1069 = vmatprep.mubr.bf16.mxu0 0
    %1070 = vmatmul.mubr.bf16.gmra.mrb[0].mxu0 %v972
    %v1071 = vpop.f32.mrb[0].mxu0
    %v1072 = vadd.f32 0.0, %v1071
    %v1073 = vpop.f32.mrb[0].mxu0
    %v1074 = vadd.f32 0.0, %v1073
    %v1075 = vpop.f32.mrb[0].mxu0
    %v1076 = vadd.f32 0.0, %v1075
    %v1077 = vpop.f32.mrb[0].mxu0
    %v1078 = vadd.f32 0.0, %v1077
    %1079 = vdwg.mxu0
    %1080 = vmatprep.subr.bf16.mxu0 %v961
    %1081 = vmatpush1.bf16.msra.mxu0 %v960
    %1082 = vmatprep.subr.bf16.mxu0 0
    %1083 = vmatpush1.bf16.msra.mxu0 0
    %1084 = vmatprep.subr.bf16.mxu0 0
    %1085 = vmatpush1.bf16.msra.mxu0 0
    %1086 = vmatprep.subr.bf16.mxu0 0
    %1087 = vmatpush1.bf16.msra.mxu0 0
    %1088 = vmatprep.subr.bf16.mxu0 0
    %1089 = vmatpush1.bf16.msra.mxu0 0
    %1090 = vmatprep.subr.bf16.mxu0 0
    %1091 = vmatpush1.bf16.msra.mxu0 0
    %1092 = vmatprep.subr.bf16.mxu0 0
    %1093 = vmatpush1.bf16.msra.mxu0 0
    %1094 = vmatprep.subr.bf16.mxu0 0
    %1095 = vmatpush1.bf16.msra.mxu0 0
    %1096 = vmatprep.subr.bf16.mxu0 0
    %1097 = vmatpush1.bf16.msra.mxu0 0
    %1098 = vmatprep.subr.bf16.mxu0 0
    %1099 = vmatpush1.bf16.msra.mxu0 0
    %1100 = vmatprep.subr.bf16.mxu0 0
    %1101 = vmatpush1.bf16.msra.mxu0 0
    %1102 = vmatprep.subr.bf16.mxu0 0
    %1103 = vmatpush1.bf16.msra.mxu0 0
    %1104 = vmatprep.subr.bf16.mxu0 0
    %1105 = vmatpush1.bf16.msra.mxu0 0
    %1106 = vmatprep.subr.bf16.mxu0 0
    %1107 = vmatpush1.bf16.msra.mxu0 0
    %1108 = vmatprep.subr.bf16.mxu0 0
    %1109 = vmatpush1.bf16.msra.mxu0 0
    %1110 = vmatprep.subr.bf16.mxu0 0
    %1111 = vmatpush1.bf16.msra.mxu0 0
    %1112 = vmatprep.mubr.bf16.mxu0 0
    %1113 = vmatmul.mubr.bf16.gmra.mrb[0].mxu0 %v969
    %v1114 = vpop.f32.mrb[0].mxu0
    %v1115 = vadd.f32 0.0, %v1114
    %v1116 = vpop.f32.mrb[0].mxu0
    %v1117 = vadd.f32 0.0, %v1116
    %v1118 = vpop.f32.mrb[0].mxu0
    %v1119 = vadd.f32 0.0, %v1118
    %v1120 = vpop.f32.mrb[0].mxu0
    %v1121 = vadd.f32 0.0, %v1120
    %1122 = vmatprep.mubr.bf16.mxu0 0
    %1123 = vmatmul.mubr.bf16.gmra.mrb[0].mxu0 %v972
    %v1124 = vpop.f32.mrb[0].mxu0
    %v1125 = vadd.f32 0.0, %v1124
    %v1126 = vpop.f32.mrb[0].mxu0
    %v1127 = vadd.f32 0.0, %v1126
    %v1128 = vpop.f32.mrb[0].mxu0
    %v1129 = vadd.f32 0.0, %v1128
    %v1130 = vpop.f32.mrb[0].mxu0
    %v1131 = vadd.f32 0.0, %v1130
    %1132 = vdwg.mxu0
    %v1133 = vadd.f32 %v883, %v1009
    %v1134 = vadd.f32 %v884, %v1011
    %v1135 = vadd.f32 %v885, %v1062
    %v1136 = vadd.f32 %v886, %v1064
    %v1137 = vadd.f32 %v887, %v1115
    %v1138 = vadd.f32 %v888, %v1117
    %v1139 = vadd.f32 %v889, %v1013
    %v1140 = vadd.f32 %v890, %v1015
    %v1141 = vadd.f32 %v891, %v1066
    %v1142 = vadd.f32 %v892, %v1068
    %v1143 = vadd.f32 %v893, %v1119
    %v1144 = vadd.f32 %v894, %v1121
    %v1145 = vadd.f32 %v895, %v1019
    %v1146 = vadd.f32 %v896, %v1021
    %v1147 = vadd.f32 %v897, %v1072
    %v1148 = vadd.f32 %v898, %v1074
    %v1149 = vadd.f32 %v899, %v1125
    %v1150 = vadd.f32 %v900, %v1127
    %v1151 = vadd.f32 %v901, %v1023
    %v1152 = vadd.f32 %v902, %v1025
    %v1153 = vadd.f32 %v903, %v1076
    %v1154 = vadd.f32 %v904, %v1078
    %v1155 = vadd.f32 %v905, %v1129
    %v1156 = vadd.f32 %v906, %v1131
    %v1157 = vld [vmem:[%s4 + $0x80] sm:$0xff]
    %v1158 = vld [vmem:[%s4 + $0x88] sm:$0xff]
    %v1159 = vld [vmem:[%s4 + $0x90] sm:$0xff]
    %v1160 = vld [vmem:[%s4 + $0x98] sm:$0xff]
    %v1161 = vpack.c.bf16 %v1158, %v1157
    %v1162 = vpack.c.bf16 %v1160, %v1159
    %v1164 = vsel %vm333, %v1161, 0
    %v1167 = vsel %vm333, %v1162, 0
    %1169 = vmatprep.subr.bf16.mxu0 %v929
    %1170 = vmatpush1.bf16.msra.mxu0 %v928
    %1171 = vmatprep.subr.bf16.mxu0 0
    %1172 = vmatpush1.bf16.msra.mxu0 0
    %1173 = vmatprep.subr.bf16.mxu0 0
    %1174 = vmatpush1.bf16.msra.mxu0 0
    %1175 = vmatprep.subr.bf16.mxu0 0
    %1176 = vmatpush1.bf16.msra.mxu0 0
    %1177 = vmatprep.subr.bf16.mxu0 0
    %1178 = vmatpush1.bf16.msra.mxu0 0
    %1179 = vmatprep.subr.bf16.mxu0 0
    %1180 = vmatpush1.bf16.msra.mxu0 0
    %1181 = vmatprep.subr.bf16.mxu0 0
    %1182 = vmatpush1.bf16.msra.mxu0 0
    %1183 = vmatprep.subr.bf16.mxu0 0
    %1184 = vmatpush1.bf16.msra.mxu0 0
    %1185 = vmatprep.subr.bf16.mxu0 0
    %1186 = vmatpush1.bf16.msra.mxu0 0
    %1187 = vmatprep.subr.bf16.mxu0 0
    %1188 = vmatpush1.bf16.msra.mxu0 0
    %1189 = vmatprep.subr.bf16.mxu0 0
    %1190 = vmatpush1.bf16.msra.mxu0 0
    %1191 = vmatprep.subr.bf16.mxu0 0
    %1192 = vmatpush1.bf16.msra.mxu0 0
    %1193 = vmatprep.subr.bf16.mxu0 0
    %1194 = vmatpush1.bf16.msra.mxu0 0
    %1195 = vmatprep.subr.bf16.mxu0 0
    %1196 = vmatpush1.bf16.msra.mxu0 0
    %1197 = vmatprep.subr.bf16.mxu0 0
    %1198 = vmatpush1.bf16.msra.mxu0 0
    %1199 = vmatprep.subr.bf16.mxu0 0
    %1200 = vmatpush1.bf16.msra.mxu0 0
    %1201 = vmatprep.mubr.bf16.mxu0 0
    %1202 = vmatmul.mubr.bf16.gmra.mrb[0].mxu0 %v1164
    %v1203 = vpop.f32.mrb[0].mxu0
    %v1204 = vadd.f32 0.0, %v1203
    %v1205 = vpop.f32.mrb[0].mxu0
    %v1206 = vadd.f32 0.0, %v1205
    %v1207 = vpop.f32.mrb[0].mxu0
    %v1208 = vadd.f32 0.0, %v1207
    %v1209 = vpop.f32.mrb[0].mxu0
    %v1210 = vadd.f32 0.0, %v1209
    %1211 = vmatprep.mubr.bf16.mxu0 0
    %1212 = vmatmul.mubr.bf16.gmra.mrb[0].mxu0 %v1167
    %v1213 = vpop.f32.mrb[0].mxu0
    %v1214 = vadd.f32 0.0, %v1213
    %v1215 = vpop.f32.mrb[0].mxu0
    %v1216 = vadd.f32 0.0, %v1215
    %v1217 = vpop.f32.mrb[0].mxu0
    %v1218 = vadd.f32 0.0, %v1217
    %v1219 = vpop.f32.mrb[0].mxu0
    %v1220 = vadd.f32 0.0, %v1219
    %1221 = vdwg.mxu0
    %1222 = vmatprep.subr.bf16.mxu0 %v931
    %1223 = vmatpush1.bf16.msra.mxu0 %v930
    %1224 = vmatprep.subr.bf16.mxu0 0
    %1225 = vmatpush1.bf16.msra.mxu0 0
    %1226 = vmatprep.subr.bf16.mxu0 0
    %1227 = vmatpush1.bf16.msra.mxu0 0
    %1228 = vmatprep.subr.bf16.mxu0 0
    %1229 = vmatpush1.bf16.msra.mxu0 0
    %1230 = vmatprep.subr.bf16.mxu0 0
    %1231 = vmatpush1.bf16.msra.mxu0 0
    %1232 = vmatprep.subr.bf16.mxu0 0
    %1233 = vmatpush1.bf16.msra.mxu0 0
    %1234 = vmatprep.subr.bf16.mxu0 0
    %1235 = vmatpush1.bf16.msra.mxu0 0
    %1236 = vmatprep.subr.bf16.mxu0 0
    %1237 = vmatpush1.bf16.msra.mxu0 0
    %1238 = vmatprep.subr.bf16.mxu0 0
    %1239 = vmatpush1.bf16.msra.mxu0 0
    %1240 = vmatprep.subr.bf16.mxu0 0
    %1241 = vmatpush1.bf16.msra.mxu0 0
    %1242 = vmatprep.subr.bf16.mxu0 0
    %1243 = vmatpush1.bf16.msra.mxu0 0
    %1244 = vmatprep.subr.bf16.mxu0 0
    %1245 = vmatpush1.bf16.msra.mxu0 0
    %1246 = vmatprep.subr.bf16.mxu0 0
    %1247 = vmatpush1.bf16.msra.mxu0 0
    %1248 = vmatprep.subr.bf16.mxu0 0
    %1249 = vmatpush1.bf16.msra.mxu0 0
    %1250 = vmatprep.subr.bf16.mxu0 0
    %1251 = vmatpush1.bf16.msra.mxu0 0
    %1252 = vmatprep.subr.bf16.mxu0 0
    %1253 = vmatpush1.bf16.msra.mxu0 0
    %1254 = vmatprep.mubr.bf16.mxu0 0
    %1255 = vmatmul.mubr.bf16.gmra.mrb[0].mxu0 %v1164
    %v1256 = vpop.f32.mrb[0].mxu0
    %v1257 = vadd.f32 0.0, %v1256
    %v1258 = vpop.f32.mrb[0].mxu0
    %v1259 = vadd.f32 0.0, %v1258
    %v1260 = vpop.f32.mrb[0].mxu0
    %v1261 = vadd.f32 0.0, %v1260
    %v1262 = vpop.f32.mrb[0].mxu0
    %v1263 = vadd.f32 0.0, %v1262
    %1264 = vmatprep.mubr.bf16.mxu0 0
    %1265 = vmatmul.mubr.bf16.gmra.mrb[0].mxu0 %v1167
    %v1266 = vpop.f32.mrb[0].mxu0
    %v1267 = vadd.f32 0.0, %v1266
    %v1268 = vpop.f32.mrb[0].mxu0
    %v1269 = vadd.f32 0.0, %v1268
    %v1270 = vpop.f32.mrb[0].mxu0
    %v1271 = vadd.f32 0.0, %v1270
    %v1272 = vpop.f32.mrb[0].mxu0
    %v1273 = vadd.f32 0.0, %v1272
    %1274 = vdwg.mxu0
    %1275 = vmatprep.subr.bf16.mxu0 %v933
    %1276 = vmatpush1.bf16.msra.mxu0 %v932
    %1277 = vmatprep.subr.bf16.mxu0 0
    %1278 = vmatpush1.bf16.msra.mxu0 0
    %1279 = vmatprep.subr.bf16.mxu0 0
    %1280 = vmatpush1.bf16.msra.mxu0 0
    %1281 = vmatprep.subr.bf16.mxu0 0
    %1282 = vmatpush1.bf16.msra.mxu0 0
    %1283 = vmatprep.subr.bf16.mxu0 0
    %1284 = vmatpush1.bf16.msra.mxu0 0
    %1285 = vmatprep.subr.bf16.mxu0 0
    %1286 = vmatpush1.bf16.msra.mxu0 0
    %1287 = vmatprep.subr.bf16.mxu0 0
    %1288 = vmatpush1.bf16.msra.mxu0 0
    %1289 = vmatprep.subr.bf16.mxu0 0
    %1290 = vmatpush1.bf16.msra.mxu0 0
    %1291 = vmatprep.subr.bf16.mxu0 0
    %1292 = vmatpush1.bf16.msra.mxu0 0
    %1293 = vmatprep.subr.bf16.mxu0 0
    %1294 = vmatpush1.bf16.msra.mxu0 0
    %1295 = vmatprep.subr.bf16.mxu0 0
    %1296 = vmatpush1.bf16.msra.mxu0 0
    %1297 = vmatprep.subr.bf16.mxu0 0
    %1298 = vmatpush1.bf16.msra.mxu0 0
    %1299 = vmatprep.subr.bf16.mxu0 0
    %1300 = vmatpush1.bf16.msra.mxu0 0
    %1301 = vmatprep.subr.bf16.mxu0 0
    %1302 = vmatpush1.bf16.msra.mxu0 0
    %1303 = vmatprep.subr.bf16.mxu0 0
    %1304 = vmatpush1.bf16.msra.mxu0 0
    %1305 = vmatprep.subr.bf16.mxu0 0
    %1306 = vmatpush1.bf16.msra.mxu0 0
    %1307 = vmatprep.mubr.bf16.mxu0 0
    %1308 = vmatmul.mubr.bf16.gmra.mrb[0].mxu0 %v1164
    %v1309 = vpop.f32.mrb[0].mxu0
    %v1310 = vadd.f32 0.0, %v1309
    %v1311 = vpop.f32.mrb[0].mxu0
    %v1312 = vadd.f32 0.0, %v1311
    %v1313 = vpop.f32.mrb[0].mxu0
    %v1314 = vadd.f32 0.0, %v1313
    %v1315 = vpop.f32.mrb[0].mxu0
    %v1316 = vadd.f32 0.0, %v1315
    %1317 = vmatprep.mubr.bf16.mxu0 0
    %1318 = vmatmul.mubr.bf16.gmra.mrb[0].mxu0 %v1167
    %v1319 = vpop.f32.mrb[0].mxu0
    %v1320 = vadd.f32 0.0, %v1319
    %v1321 = vpop.f32.mrb[0].mxu0
    %v1322 = vadd.f32 0.0, %v1321
    %v1323 = vpop.f32.mrb[0].mxu0
    %v1324 = vadd.f32 0.0, %v1323
    %v1325 = vpop.f32.mrb[0].mxu0
    %v1326 = vadd.f32 0.0, %v1325
    %1327 = vdwg.mxu0
    %v1328 = vadd.f32 %v1133, %v1204
    %v1329 = vadd.f32 %v1134, %v1206
    %v1330 = vadd.f32 %v1135, %v1257
    %v1331 = vadd.f32 %v1136, %v1259
    %v1332 = vadd.f32 %v1137, %v1310
    %v1333 = vadd.f32 %v1138, %v1312
    %v1334 = vadd.f32 %v1139, %v1208
    %v1335 = vadd.f32 %v1140, %v1210
    %v1336 = vadd.f32 %v1141, %v1261
    %v1337 = vadd.f32 %v1142, %v1263
    %v1338 = vadd.f32 %v1143, %v1314
    %v1339 = vadd.f32 %v1144, %v1316
    %v1340 = vadd.f32 %v1145, %v1214
    %v1341 = vadd.f32 %v1146, %v1216
    %v1342 = vadd.f32 %v1147, %v1267
    %v1343 = vadd.f32 %v1148, %v1269
    %v1344 = vadd.f32 %v1149, %v1320
    %v1345 = vadd.f32 %v1150, %v1322
    %v1346 = vadd.f32 %v1151, %v1218
    %v1347 = vadd.f32 %v1152, %v1220
    %v1348 = vadd.f32 %v1153, %v1271
    %v1349 = vadd.f32 %v1154, %v1273
    %v1350 = vadd.f32 %v1155, %v1324
    %v1351 = vadd.f32 %v1156, %v1326
    %v1352 = vld [vmem:[%s4 + $0xa0] sm:$0xff]
    %v1353 = vld [vmem:[%s4 + $0xa8] sm:$0xff]
    %v1354 = vld [vmem:[%s4 + $0xb0] sm:$0xff]
    %v1355 = vld [vmem:[%s4 + $0xb8] sm:$0xff]
    %v1356 = vpack.c.bf16 %v1353, %v1352
    %v1357 = vpack.c.bf16 %v1355, %v1354
    %1358 = vrot.lane.b32.xlu0 %v928, 127
    %v1359 = vpop.permute.xlu0 %1358
    %1360 = vrot.lane.b32.xlu0 %v929, 127
    %v1361 = vpop.permute.xlu0 %1360
    %1362 = vrot.lane.b32.xlu0 %v930, 127
    %v1363 = vpop.permute.xlu0 %1362
    %1364 = vrot.lane.b32.xlu0 %v931, 127
    %v1365 = vpop.permute.xlu0 %1364
    %1366 = vrot.lane.b32.xlu0 %v932, 127
    %v1367 = vpop.permute.xlu0 %1366
    %1368 = vrot.lane.b32.xlu0 %v933, 127
    %v1369 = vpop.permute.xlu0 %1368
    %vm1370 = vcmask 1039360
    %v1371 = vsel %vm1370, %v1359, %v1361
    %v1372 = vsel %vm1370, %v1361, %v1363
    %v1373 = vsel %vm1370, %v1363, %v1365
    %v1374 = vsel %vm1370, %v1365, %v1367
    %v1375 = vsel %vm1370, %v1367, %v1369
    %v1383 = vsel %vm333, %v1356, 0
    %v1386 = vsel %vm333, %v1357, 0
    %1388 = vmatprep.subr.bf16.mxu0 %v1372
    %1389 = vmatpush1.bf16.msra.mxu0 %v1371
    %1390 = vmatprep.subr.bf16.mxu0 0
    %1391 = vmatpush1.bf16.msra.mxu0 0
    %1392 = vmatprep.subr.bf16.mxu0 0
    %1393 = vmatpush1.bf16.msra.mxu0 0
    %1394 = vmatprep.subr.bf16.mxu0 0
    %1395 = vmatpush1.bf16.msra.mxu0 0
    %1396 = vmatprep.subr.bf16.mxu0 0
    %1397 = vmatpush1.bf16.msra.mxu0 0
    %1398 = vmatprep.subr.bf16.mxu0 0
    %1399 = vmatpush1.bf16.msra.mxu0 0
    %1400 = vmatprep.subr.bf16.mxu0 0
    %1401 = vmatpush1.bf16.msra.mxu0 0
    %1402 = vmatprep.subr.bf16.mxu0 0
    %1403 = vmatpush1.bf16.msra.mxu0 0
    %1404 = vmatprep.subr.bf16.mxu0 0
    %1405 = vmatpush1.bf16.msra.mxu0 0
    %1406 = vmatprep.subr.bf16.mxu0 0
    %1407 = vmatpush1.bf16.msra.mxu0 0
    %1408 = vmatprep.subr.bf16.mxu0 0
    %1409 = vmatpush1.bf16.msra.mxu0 0
    %1410 = vmatprep.subr.bf16.mxu0 0
    %1411 = vmatpush1.bf16.msra.mxu0 0
    %1412 = vmatprep.subr.bf16.mxu0 0
    %1413 = vmatpush1.bf16.msra.mxu0 0
    %1414 = vmatprep.subr.bf16.mxu0 0
    %1415 = vmatpush1.bf16.msra.mxu0 0
    %1416 = vmatprep.subr.bf16.mxu0 0
    %1417 = vmatpush1.bf16.msra.mxu0 0
    %1418 = vmatprep.subr.bf16.mxu0 0
    %1419 = vmatpush1.bf16.msra.mxu0 0
    %1420 = vmatprep.mubr.bf16.mxu0 0
    %1421 = vmatmul.mubr.bf16.gmra.mrb[0].mxu0 %v1383
    %v1422 = vpop.f32.mrb[0].mxu0
    %v1423 = vadd.f32 0.0, %v1422
    %v1424 = vpop.f32.mrb[0].mxu0
    %v1425 = vadd.f32 0.0, %v1424
    %v1426 = vpop.f32.mrb[0].mxu0
    %v1427 = vadd.f32 0.0, %v1426
    %v1428 = vpop.f32.mrb[0].mxu0
    %v1429 = vadd.f32 0.0, %v1428
    %1430 = vmatprep.mubr.bf16.mxu0 0
    %1431 = vmatmul.mubr.bf16.gmra.mrb[0].mxu0 %v1386
    %v1432 = vpop.f32.mrb[0].mxu0
    %v1433 = vadd.f32 0.0, %v1432
    %v1434 = vpop.f32.mrb[0].mxu0
    %v1435 = vadd.f32 0.0, %v1434
    %v1436 = vpop.f32.mrb[0].mxu0
    %v1437 = vadd.f32 0.0, %v1436
    %v1438 = vpop.f32.mrb[0].mxu0
    %v1439 = vadd.f32 0.0, %v1438
    %1440 = vdwg.mxu0
    %1441 = vmatprep.subr.bf16.mxu0 %v1374
    %1442 = vmatpush1.bf16.msra.mxu0 %v1373
    %1443 = vmatprep.subr.bf16.mxu0 0
    %1444 = vmatpush1.bf16.msra.mxu0 0
    %1445 = vmatprep.subr.bf16.mxu0 0
    %1446 = vmatpush1.bf16.msra.mxu0 0
    %1447 = vmatprep.subr.bf16.mxu0 0
    %1448 = vmatpush1.bf16.msra.mxu0 0
    %1449 = vmatprep.subr.bf16.mxu0 0
    %1450 = vmatpush1.bf16.msra.mxu0 0
    %1451 = vmatprep.subr.bf16.mxu0 0
    %1452 = vmatpush1.bf16.msra.mxu0 0
    %1453 = vmatprep.subr.bf16.mxu0 0
    %1454 = vmatpush1.bf16.msra.mxu0 0
    %1455 = vmatprep.subr.bf16.mxu0 0
    %1456 = vmatpush1.bf16.msra.mxu0 0
    %1457 = vmatprep.subr.bf16.mxu0 0
    %1458 = vmatpush1.bf16.msra.mxu0 0
    %1459 = vmatprep.subr.bf16.mxu0 0
    %1460 = vmatpush1.bf16.msra.mxu0 0
    %1461 = vmatprep.subr.bf16.mxu0 0
    %1462 = vmatpush1.bf16.msra.mxu0 0
    %1463 = vmatprep.subr.bf16.mxu0 0
    %1464 = vmatpush1.bf16.msra.mxu0 0
    %1465 = vmatprep.subr.bf16.mxu0 0
    %1466 = vmatpush1.bf16.msra.mxu0 0
    %1467 = vmatprep.subr.bf16.mxu0 0
    %1468 = vmatpush1.bf16.msra.mxu0 0
    %1469 = vmatprep.subr.bf16.mxu0 0
    %1470 = vmatpush1.bf16.msra.mxu0 0
    %1471 = vmatprep.subr.bf16.mxu0 0
    %1472 = vmatpush1.bf16.msra.mxu0 0
    %1473 = vmatprep.mubr.bf16.mxu0 0
    %1474 = vmatmul.mubr.bf16.gmra.mrb[0].mxu0 %v1383
    %v1475 = vpop.f32.mrb[0].mxu0
    %v1476 = vadd.f32 0.0, %v1475
    %v1477 = vpop.f32.mrb[0].mxu0
    %v1478 = vadd.f32 0.0, %v1477
    %v1479 = vpop.f32.mrb[0].mxu0
    %v1480 = vadd.f32 0.0, %v1479
    %v1481 = vpop.f32.mrb[0].mxu0
    %v1482 = vadd.f32 0.0, %v1481
    %1483 = vmatprep.mubr.bf16.mxu0 0
    %1484 = vmatmul.mubr.bf16.gmra.mrb[0].mxu0 %v1386
    %v1485 = vpop.f32.mrb[0].mxu0
    %v1486 = vadd.f32 0.0, %v1485
    %v1487 = vpop.f32.mrb[0].mxu0
    %v1488 = vadd.f32 0.0, %v1487
    %v1489 = vpop.f32.mrb[0].mxu0
    %v1490 = vadd.f32 0.0, %v1489
    %v1491 = vpop.f32.mrb[0].mxu0
    %v1492 = vadd.f32 0.0, %v1491
    %1493 = vdwg.mxu0
    %1494 = vmatprep.subr.bf16.mxu0 %v1369
    %1495 = vmatpush1.bf16.msra.mxu0 %v1375
    %1496 = vmatprep.subr.bf16.mxu0 0
    %1497 = vmatpush1.bf16.msra.mxu0 0
    %1498 = vmatprep.subr.bf16.mxu0 0
    %1499 = vmatpush1.bf16.msra.mxu0 0
    %1500 = vmatprep.subr.bf16.mxu0 0
    %1501 = vmatpush1.bf16.msra.mxu0 0
    %1502 = vmatprep.subr.bf16.mxu0 0
    %1503 = vmatpush1.bf16.msra.mxu0 0
    %1504 = vmatprep.subr.bf16.mxu0 0
    %1505 = vmatpush1.bf16.msra.mxu0 0
    %1506 = vmatprep.subr.bf16.mxu0 0
    %1507 = vmatpush1.bf16.msra.mxu0 0
    %1508 = vmatprep.subr.bf16.mxu0 0
    %1509 = vmatpush1.bf16.msra.mxu0 0
    %1510 = vmatprep.subr.bf16.mxu0 0
    %1511 = vmatpush1.bf16.msra.mxu0 0
    %1512 = vmatprep.subr.bf16.mxu0 0
    %1513 = vmatpush1.bf16.msra.mxu0 0
    %1514 = vmatprep.subr.bf16.mxu0 0
    %1515 = vmatpush1.bf16.msra.mxu0 0
    %1516 = vmatprep.subr.bf16.mxu0 0
    %1517 = vmatpush1.bf16.msra.mxu0 0
    %1518 = vmatprep.subr.bf16.mxu0 0
    %1519 = vmatpush1.bf16.msra.mxu0 0
    %1520 = vmatprep.subr.bf16.mxu0 0
    %1521 = vmatpush1.bf16.msra.mxu0 0
    %1522 = vmatprep.subr.bf16.mxu0 0
    %1523 = vmatpush1.bf16.msra.mxu0 0
    %1524 = vmatprep.subr.bf16.mxu0 0
    %1525 = vmatpush1.bf16.msra.mxu0 0
    %1526 = vmatprep.mubr.bf16.mxu0 0
    %1527 = vmatmul.mubr.bf16.gmra.mrb[0].mxu0 %v1383
    %v1528 = vpop.f32.mrb[0].mxu0
    %v1529 = vadd.f32 0.0, %v1528
    %v1530 = vpop.f32.mrb[0].mxu0
    %v1531 = vadd.f32 0.0, %v1530
    %v1532 = vpop.f32.mrb[0].mxu0
    %v1533 = vadd.f32 0.0, %v1532
    %v1534 = vpop.f32.mrb[0].mxu0
    %v1535 = vadd.f32 0.0, %v1534
    %1536 = vmatprep.mubr.bf16.mxu0 0
    %1537 = vmatmul.mubr.bf16.gmra.mrb[0].mxu0 %v1386
    %v1538 = vpop.f32.mrb[0].mxu0
    %v1539 = vadd.f32 0.0, %v1538
    %v1540 = vpop.f32.mrb[0].mxu0
    %v1541 = vadd.f32 0.0, %v1540
    %v1542 = vpop.f32.mrb[0].mxu0
    %v1543 = vadd.f32 0.0, %v1542
    %v1544 = vpop.f32.mrb[0].mxu0
    %v1545 = vadd.f32 0.0, %v1544
    %1546 = vdwg.mxu0
    %v1547 = vadd.f32 %v1328, %v1423
    %v1548 = vadd.f32 %v1329, %v1425
    %v1549 = vadd.f32 %v1330, %v1476
    %v1550 = vadd.f32 %v1331, %v1478
    %v1551 = vadd.f32 %v1332, %v1529
    %v1552 = vadd.f32 %v1333, %v1531
    %v1553 = vadd.f32 %v1334, %v1427
    %v1554 = vadd.f32 %v1335, %v1429
    %v1555 = vadd.f32 %v1336, %v1480
    %v1556 = vadd.f32 %v1337, %v1482
    %v1557 = vadd.f32 %v1338, %v1533
    %v1558 = vadd.f32 %v1339, %v1535
    %v1559 = vadd.f32 %v1340, %v1433
    %v1560 = vadd.f32 %v1341, %v1435
    %v1561 = vadd.f32 %v1342, %v1486
    %v1562 = vadd.f32 %v1343, %v1488
    %v1563 = vadd.f32 %v1344, %v1539
    %v1564 = vadd.f32 %v1345, %v1541
    %v1565 = vadd.f32 %v1346, %v1437
    %v1566 = vadd.f32 %v1347, %v1439
    %v1567 = vadd.f32 %v1348, %v1490
    %v1568 = vadd.f32 %v1349, %v1492
    %v1569 = vadd.f32 %v1350, %v1543
    %v1570 = vadd.f32 %v1351, %v1545
    %v1571 = vld [vmem:[%s4 + $0xc0] sm:$0xff]
    %v1572 = vld [vmem:[%s4 + $0xc8] sm:$0xff]
    %v1573 = vld [vmem:[%s4 + $0xd0] sm:$0xff]
    %v1574 = vld [vmem:[%s4 + $0xd8] sm:$0xff]
    %v1575 = vpack.c.bf16 %v1572, %v1571
    %v1576 = vpack.c.bf16 %v1574, %v1573
    %1577 = vrot.lane.b32.xlu0 %v928, 111
    %v1578 = vpop.permute.xlu0 %1577
    %1579 = vrot.lane.b32.xlu0 %v929, 111
    %v1580 = vpop.permute.xlu0 %1579
    %1581 = vrot.lane.b32.xlu0 %v930, 111
    %v1582 = vpop.permute.xlu0 %1581
    %1583 = vrot.lane.b32.xlu0 %v931, 111
    %v1584 = vpop.permute.xlu0 %1583
    %1585 = vrot.lane.b32.xlu0 %v932, 111
    %v1586 = vpop.permute.xlu0 %1585
    %1587 = vrot.lane.b32.xlu0 %v933, 111
    %v1588 = vpop.permute.xlu0 %1587
    %vm1589 = vcmask 908288
    %v1590 = vsel %vm1589, %v1578, %v1580
    %v1591 = vsel %vm1589, %v1580, %v1582
    %v1592 = vsel %vm1589, %v1582, %v1584
    %v1593 = vsel %vm1589, %v1584, %v1586
    %v1594 = vsel %vm1589, %v1586, %v1588
    %v1602 = vsel %vm333, %v1575, 0
    %v1605 = vsel %vm333, %v1576, 0
    %1607 = vmatprep.subr.bf16.mxu0 %v1591
    %1608 = vmatpush1.bf16.msra.mxu0 %v1590
    %1609 = vmatprep.subr.bf16.mxu0 0
    %1610 = vmatpush1.bf16.msra.mxu0 0
    %1611 = vmatprep.subr.bf16.mxu0 0
    %1612 = vmatpush1.bf16.msra.mxu0 0
    %1613 = vmatprep.subr.bf16.mxu0 0
    %1614 = vmatpush1.bf16.msra.mxu0 0
    %1615 = vmatprep.subr.bf16.mxu0 0
    %1616 = vmatpush1.bf16.msra.mxu0 0
    %1617 = vmatprep.subr.bf16.mxu0 0
    %1618 = vmatpush1.bf16.msra.mxu0 0
    %1619 = vmatprep.subr.bf16.mxu0 0
    %1620 = vmatpush1.bf16.msra.mxu0 0
    %1621 = vmatprep.subr.bf16.mxu0 0
    %1622 = vmatpush1.bf16.msra.mxu0 0
    %1623 = vmatprep.subr.bf16.mxu0 0
    %1624 = vmatpush1.bf16.msra.mxu0 0
    %1625 = vmatprep.subr.bf16.mxu0 0
    %1626 = vmatpush1.bf16.msra.mxu0 0
    %1627 = vmatprep.subr.bf16.mxu0 0
    %1628 = vmatpush1.bf16.msra.mxu0 0
    %1629 = vmatprep.subr.bf16.mxu0 0
    %1630 = vmatpush1.bf16.msra.mxu0 0
    %1631 = vmatprep.subr.bf16.mxu0 0
    %1632 = vmatpush1.bf16.msra.mxu0 0
    %1633 = vmatprep.subr.bf16.mxu0 0
    %1634 = vmatpush1.bf16.msra.mxu0 0
    %1635 = vmatprep.subr.bf16.mxu0 0
    %1636 = vmatpush1.bf16.msra.mxu0 0
    %1637 = vmatprep.subr.bf16.mxu0 0
    %1638 = vmatpush1.bf16.msra.mxu0 0
    %1639 = vmatprep.mubr.bf16.mxu0 0
    %1640 = vmatmul.mubr.bf16.gmra.mrb[0].mxu0 %v1602
    %v1641 = vpop.f32.mrb[0].mxu0
    %v1642 = vadd.f32 0.0, %v1641
    %v1643 = vpop.f32.mrb[0].mxu0
    %v1644 = vadd.f32 0.0, %v1643
    %v1645 = vpop.f32.mrb[0].mxu0
    %v1646 = vadd.f32 0.0, %v1645
    %v1647 = vpop.f32.mrb[0].mxu0
    %v1648 = vadd.f32 0.0, %v1647
    %1649 = vmatprep.mubr.bf16.mxu0 0
    %1650 = vmatmul.mubr.bf16.gmra.mrb[0].mxu0 %v1605
    %v1651 = vpop.f32.mrb[0].mxu0
    %v1652 = vadd.f32 0.0, %v1651
    %v1653 = vpop.f32.mrb[0].mxu0
    %v1654 = vadd.f32 0.0, %v1653
    %v1655 = vpop.f32.mrb[0].mxu0
    %v1656 = vadd.f32 0.0, %v1655
    %v1657 = vpop.f32.mrb[0].mxu0
    %v1658 = vadd.f32 0.0, %v1657
    %1659 = vdwg.mxu0
    %1660 = vmatprep.subr.bf16.mxu0 %v1593
    %1661 = vmatpush1.bf16.msra.mxu0 %v1592
    %1662 = vmatprep.subr.bf16.mxu0 0
    %1663 = vmatpush1.bf16.msra.mxu0 0
    %1664 = vmatprep.subr.bf16.mxu0 0
    %1665 = vmatpush1.bf16.msra.mxu0 0
    %1666 = vmatprep.subr.bf16.mxu0 0
    %1667 = vmatpush1.bf16.msra.mxu0 0
    %1668 = vmatprep.subr.bf16.mxu0 0
    %1669 = vmatpush1.bf16.msra.mxu0 0
    %1670 = vmatprep.subr.bf16.mxu0 0
    %1671 = vmatpush1.bf16.msra.mxu0 0
    %1672 = vmatprep.subr.bf16.mxu0 0
    %1673 = vmatpush1.bf16.msra.mxu0 0
    %1674 = vmatprep.subr.bf16.mxu0 0
    %1675 = vmatpush1.bf16.msra.mxu0 0
    %1676 = vmatprep.subr.bf16.mxu0 0
    %1677 = vmatpush1.bf16.msra.mxu0 0
    %1678 = vmatprep.subr.bf16.mxu0 0
    %1679 = vmatpush1.bf16.msra.mxu0 0
    %1680 = vmatprep.subr.bf16.mxu0 0
    %1681 = vmatpush1.bf16.msra.mxu0 0
    %1682 = vmatprep.subr.bf16.mxu0 0
    %1683 = vmatpush1.bf16.msra.mxu0 0
    %1684 = vmatprep.subr.bf16.mxu0 0
    %1685 = vmatpush1.bf16.msra.mxu0 0
    %1686 = vmatprep.subr.bf16.mxu0 0
    %1687 = vmatpush1.bf16.msra.mxu0 0
    %1688 = vmatprep.subr.bf16.mxu0 0
    %1689 = vmatpush1.bf16.msra.mxu0 0
    %1690 = vmatprep.subr.bf16.mxu0 0
    %1691 = vmatpush1.bf16.msra.mxu0 0
    %1692 = vmatprep.mubr.bf16.mxu0 0
    %1693 = vmatmul.mubr.bf16.gmra.mrb[0].mxu0 %v1602
    %v1694 = vpop.f32.mrb[0].mxu0
    %v1695 = vadd.f32 0.0, %v1694
    %v1696 = vpop.f32.mrb[0].mxu0
    %v1697 = vadd.f32 0.0, %v1696
    %v1698 = vpop.f32.mrb[0].mxu0
    %v1699 = vadd.f32 0.0, %v1698
    %v1700 = vpop.f32.mrb[0].mxu0
    %v1701 = vadd.f32 0.0, %v1700
    %1702 = vmatprep.mubr.bf16.mxu0 0
    %1703 = vmatmul.mubr.bf16.gmra.mrb[0].mxu0 %v1605
    %v1704 = vpop.f32.mrb[0].mxu0
    %v1705 = vadd.f32 0.0, %v1704
    %v1706 = vpop.f32.mrb[0].mxu0
    %v1707 = vadd.f32 0.0, %v1706
    %v1708 = vpop.f32.mrb[0].mxu0
    %v1709 = vadd.f32 0.0, %v1708
    %v1710 = vpop.f32.mrb[0].mxu0
    %v1711 = vadd.f32 0.0, %v1710
    %1712 = vdwg.mxu0
    %1713 = vmatprep.subr.bf16.mxu0 %v1588
    %1714 = vmatpush1.bf16.msra.mxu0 %v1594
    %1715 = vmatprep.subr.bf16.mxu0 0
    %1716 = vmatpush1.bf16.msra.mxu0 0
    %1717 = vmatprep.subr.bf16.mxu0 0
    %1718 = vmatpush1.bf16.msra.mxu0 0
    %1719 = vmatprep.subr.bf16.mxu0 0
    %1720 = vmatpush1.bf16.msra.mxu0 0
    %1721 = vmatprep.subr.bf16.mxu0 0
    %1722 = vmatpush1.bf16.msra.mxu0 0
    %1723 = vmatprep.subr.bf16.mxu0 0
    %1724 = vmatpush1.bf16.msra.mxu0 0
    %1725 = vmatprep.subr.bf16.mxu0 0
    %1726 = vmatpush1.bf16.msra.mxu0 0
    %1727 = vmatprep.subr.bf16.mxu0 0
    %1728 = vmatpush1.bf16.msra.mxu0 0
    %1729 = vmatprep.subr.bf16.mxu0 0
    %1730 = vmatpush1.bf16.msra.mxu0 0
    %1731 = vmatprep.subr.bf16.mxu0 0
    %1732 = vmatpush1.bf16.msra.mxu0 0
    %1733 = vmatprep.subr.bf16.mxu0 0
    %1734 = vmatpush1.bf16.msra.mxu0 0
    %1735 = vmatprep.subr.bf16.mxu0 0
    %1736 = vmatpush1.bf16.msra.mxu0 0
    %1737 = vmatprep.subr.bf16.mxu0 0
    %1738 = vmatpush1.bf16.msra.mxu0 0
    %1739 = vmatprep.subr.bf16.mxu0 0
    %1740 = vmatpush1.bf16.msra.mxu0 0
    %1741 = vmatprep.subr.bf16.mxu0 0
    %1742 = vmatpush1.bf16.msra.mxu0 0
    %1743 = vmatprep.subr.bf16.mxu0 0
    %1744 = vmatpush1.bf16.msra.mxu0 0
    %1745 = vmatprep.mubr.bf16.mxu0 0
    %1746 = vmatmul.mubr.bf16.gmra.mrb[0].mxu0 %v1602
    %v1747 = vpop.f32.mrb[0].mxu0
    %v1748 = vadd.f32 0.0, %v1747
    %v1749 = vpop.f32.mrb[0].mxu0
    %v1750 = vadd.f32 0.0, %v1749
    %v1751 = vpop.f32.mrb[0].mxu0
    %v1752 = vadd.f32 0.0, %v1751
    %v1753 = vpop.f32.mrb[0].mxu0
    %v1754 = vadd.f32 0.0, %v1753
    %1755 = vmatprep.mubr.bf16.mxu0 0
    %1756 = vmatmul.mubr.bf16.gmra.mrb[0].mxu0 %v1605
    %v1757 = vpop.f32.mrb[0].mxu0
    %v1758 = vadd.f32 0.0, %v1757
    %v1759 = vpop.f32.mrb[0].mxu0
    %v1760 = vadd.f32 0.0, %v1759
    %v1761 = vpop.f32.mrb[0].mxu0
    %v1762 = vadd.f32 0.0, %v1761
    %v1763 = vpop.f32.mrb[0].mxu0
    %v1764 = vadd.f32 0.0, %v1763
    %1765 = vdwg.mxu0
    %v1766 = vadd.f32 %v1547, %v1642
    %v1767 = vadd.f32 %v1548, %v1644
    %v1768 = vadd.f32 %v1549, %v1695
    %v1769 = vadd.f32 %v1550, %v1697
    %v1770 = vadd.f32 %v1551, %v1748
    %v1771 = vadd.f32 %v1552, %v1750
    %v1772 = vadd.f32 %v1553, %v1646
    %v1773 = vadd.f32 %v1554, %v1648
    %v1774 = vadd.f32 %v1555, %v1699
    %v1775 = vadd.f32 %v1556, %v1701
    %v1776 = vadd.f32 %v1557, %v1752
    %v1777 = vadd.f32 %v1558, %v1754
    %v1778 = vadd.f32 %v1559, %v1652
    %v1779 = vadd.f32 %v1560, %v1654
    %v1780 = vadd.f32 %v1561, %v1705
    %v1781 = vadd.f32 %v1562, %v1707
    %v1782 = vadd.f32 %v1563, %v1758
    %v1783 = vadd.f32 %v1564, %v1760
    %v1784 = vadd.f32 %v1565, %v1656
    %v1785 = vadd.f32 %v1566, %v1658
    %v1786 = vadd.f32 %v1567, %v1709
    %v1787 = vadd.f32 %v1568, %v1711
    %v1788 = vadd.f32 %v1569, %v1762
    %v1789 = vadd.f32 %v1570, %v1764
    %v1790 = vld [vmem:[%s4 + $0xe0] sm:$0xff]
    %v1791 = vld [vmem:[%s4 + $0xe8] sm:$0xff]
    %v1792 = vld [vmem:[%s4 + $0xf0] sm:$0xff]
    %v1793 = vld [vmem:[%s4 + $0xf8] sm:$0xff]
    %v1794 = vpack.c.bf16 %v1791, %v1790
    %v1795 = vpack.c.bf16 %v1793, %v1792
    %1796 = vrot.lane.b32.xlu0 %v928, 110
    %v1797 = vpop.permute.xlu0 %1796
    %1798 = vrot.lane.b32.xlu0 %v929, 110
    %v1799 = vpop.permute.xlu0 %1798
    %1800 = vrot.lane.b32.xlu0 %v930, 110
    %v1801 = vpop.permute.xlu0 %1800
    %1802 = vrot.lane.b32.xlu0 %v931, 110
    %v1803 = vpop.permute.xlu0 %1802
    %1804 = vrot.lane.b32.xlu0 %v932, 110
    %v1805 = vpop.permute.xlu0 %1804
    %1806 = vrot.lane.b32.xlu0 %v933, 110
    %v1807 = vpop.permute.xlu0 %1806
    %vm1808 = vcmask 900096
    %v1809 = vsel %vm1808, %v1797, %v1799
    %v1810 = vsel %vm1808, %v1799, %v1801
    %v1811 = vsel %vm1808, %v1801, %v1803
    %v1812 = vsel %vm1808, %v1803, %v1805
    %v1813 = vsel %vm1808, %v1805, %v1807
    %v1821 = vsel %vm333, %v1794, 0
    %v1824 = vsel %vm333, %v1795, 0
    %1826 = vmatprep.subr.bf16.mxu0 %v1810
    %1827 = vmatpush1.bf16.msra.mxu0 %v1809
    %1828 = vmatprep.subr.bf16.mxu0 0
    %1829 = vmatpush1.bf16.msra.mxu0 0
    %1830 = vmatprep.subr.bf16.mxu0 0
    %1831 = vmatpush1.bf16.msra.mxu0 0
    %1832 = vmatprep.subr.bf16.mxu0 0
    %1833 = vmatpush1.bf16.msra.mxu0 0
    %1834 = vmatprep.subr.bf16.mxu0 0
    %1835 = vmatpush1.bf16.msra.mxu0 0
    %1836 = vmatprep.subr.bf16.mxu0 0
    %1837 = vmatpush1.bf16.msra.mxu0 0
    %1838 = vmatprep.subr.bf16.mxu0 0
    %1839 = vmatpush1.bf16.msra.mxu0 0
    %1840 = vmatprep.subr.bf16.mxu0 0
    %1841 = vmatpush1.bf16.msra.mxu0 0
    %1842 = vmatprep.subr.bf16.mxu0 0
    %1843 = vmatpush1.bf16.msra.mxu0 0
    %1844 = vmatprep.subr.bf16.mxu0 0
    %1845 = vmatpush1.bf16.msra.mxu0 0
    %1846 = vmatprep.subr.bf16.mxu0 0
    %1847 = vmatpush1.bf16.msra.mxu0 0
    %1848 = vmatprep.subr.bf16.mxu0 0
    %1849 = vmatpush1.bf16.msra.mxu0 0
    %1850 = vmatprep.subr.bf16.mxu0 0
    %1851 = vmatpush1.bf16.msra.mxu0 0
    %1852 = vmatprep.subr.bf16.mxu0 0
    %1853 = vmatpush1.bf16.msra.mxu0 0
    %1854 = vmatprep.subr.bf16.mxu0 0
    %1855 = vmatpush1.bf16.msra.mxu0 0
    %1856 = vmatprep.subr.bf16.mxu0 0
    %1857 = vmatpush1.bf16.msra.mxu0 0
    %1858 = vmatprep.mubr.bf16.mxu0 0
    %1859 = vmatmul.mubr.bf16.gmra.mrb[0].mxu0 %v1821
    %v1860 = vpop.f32.mrb[0].mxu0
    %v1861 = vadd.f32 0.0, %v1860
    %v1862 = vpop.f32.mrb[0].mxu0
    %v1863 = vadd.f32 0.0, %v1862
    %v1864 = vpop.f32.mrb[0].mxu0
    %v1865 = vadd.f32 0.0, %v1864
    %v1866 = vpop.f32.mrb[0].mxu0
    %v1867 = vadd.f32 0.0, %v1866
    %1868 = vmatprep.mubr.bf16.mxu0 0
    %1869 = vmatmul.mubr.bf16.gmra.mrb[0].mxu0 %v1824
    %v1870 = vpop.f32.mrb[0].mxu0
    %v1871 = vadd.f32 0.0, %v1870
    %v1872 = vpop.f32.mrb[0].mxu0
    %v1873 = vadd.f32 0.0, %v1872
    %v1874 = vpop.f32.mrb[0].mxu0
    %v1875 = vadd.f32 0.0, %v1874
    %v1876 = vpop.f32.mrb[0].mxu0
    %v1877 = vadd.f32 0.0, %v1876
    %1878 = vdwg.mxu0
    %1879 = vmatprep.subr.bf16.mxu0 %v1812
    %1880 = vmatpush1.bf16.msra.mxu0 %v1811
    %1881 = vmatprep.subr.bf16.mxu0 0
    %1882 = vmatpush1.bf16.msra.mxu0 0
    %1883 = vmatprep.subr.bf16.mxu0 0
    %1884 = vmatpush1.bf16.msra.mxu0 0
    %1885 = vmatprep.subr.bf16.mxu0 0
    %1886 = vmatpush1.bf16.msra.mxu0 0
    %1887 = vmatprep.subr.bf16.mxu0 0
    %1888 = vmatpush1.bf16.msra.mxu0 0
    %1889 = vmatprep.subr.bf16.mxu0 0
    %1890 = vmatpush1.bf16.msra.mxu0 0
    %1891 = vmatprep.subr.bf16.mxu0 0
    %1892 = vmatpush1.bf16.msra.mxu0 0
    %1893 = vmatprep.subr.bf16.mxu0 0
    %1894 = vmatpush1.bf16.msra.mxu0 0
    %1895 = vmatprep.subr.bf16.mxu0 0
    %1896 = vmatpush1.bf16.msra.mxu0 0
    %1897 = vmatprep.subr.bf16.mxu0 0
    %1898 = vmatpush1.bf16.msra.mxu0 0
    %1899 = vmatprep.subr.bf16.mxu0 0
    %1900 = vmatpush1.bf16.msra.mxu0 0
    %1901 = vmatprep.subr.bf16.mxu0 0
    %1902 = vmatpush1.bf16.msra.mxu0 0
    %1903 = vmatprep.subr.bf16.mxu0 0
    %1904 = vmatpush1.bf16.msra.mxu0 0
    %1905 = vmatprep.subr.bf16.mxu0 0
    %1906 = vmatpush1.bf16.msra.mxu0 0
    %1907 = vmatprep.subr.bf16.mxu0 0
    %1908 = vmatpush1.bf16.msra.mxu0 0
    %1909 = vmatprep.subr.bf16.mxu0 0
    %1910 = vmatpush1.bf16.msra.mxu0 0
    %1911 = vmatprep.mubr.bf16.mxu0 0
    %1912 = vmatmul.mubr.bf16.gmra.mrb[0].mxu0 %v1821
    %v1913 = vpop.f32.mrb[0].mxu0
    %v1914 = vadd.f32 0.0, %v1913
    %v1915 = vpop.f32.mrb[0].mxu0
    %v1916 = vadd.f32 0.0, %v1915
    %v1917 = vpop.f32.mrb[0].mxu0
    %v1918 = vadd.f32 0.0, %v1917
    %v1919 = vpop.f32.mrb[0].mxu0
    %v1920 = vadd.f32 0.0, %v1919
    %1921 = vmatprep.mubr.bf16.mxu0 0
    %1922 = vmatmul.mubr.bf16.gmra.mrb[0].mxu0 %v1824
    %v1923 = vpop.f32.mrb[0].mxu0
    %v1924 = vadd.f32 0.0, %v1923
    %v1925 = vpop.f32.mrb[0].mxu0
    %v1926 = vadd.f32 0.0, %v1925
    %v1927 = vpop.f32.mrb[0].mxu0
    %v1928 = vadd.f32 0.0, %v1927
    %v1929 = vpop.f32.mrb[0].mxu0
    %v1930 = vadd.f32 0.0, %v1929
    %1931 = vdwg.mxu0
    %1932 = vmatprep.subr.bf16.mxu0 %v1807
    %1933 = vmatpush1.bf16.msra.mxu0 %v1813
    %1934 = vmatprep.subr.bf16.mxu0 0
    %1935 = vmatpush1.bf16.msra.mxu0 0
    %1936 = vmatprep.subr.bf16.mxu0 0
    %1937 = vmatpush1.bf16.msra.mxu0 0
    %1938 = vmatprep.subr.bf16.mxu0 0
    %1939 = vmatpush1.bf16.msra.mxu0 0
    %1940 = vmatprep.subr.bf16.mxu0 0
    %1941 = vmatpush1.bf16.msra.mxu0 0
    %1942 = vmatprep.subr.bf16.mxu0 0
    %1943 = vmatpush1.bf16.msra.mxu0 0
    %1944 = vmatprep.subr.bf16.mxu0 0
    %1945 = vmatpush1.bf16.msra.mxu0 0
    %1946 = vmatprep.subr.bf16.mxu0 0
    %1947 = vmatpush1.bf16.msra.mxu0 0
    %1948 = vmatprep.subr.bf16.mxu0 0
    %1949 = vmatpush1.bf16.msra.mxu0 0
    %1950 = vmatprep.subr.bf16.mxu0 0
    %1951 = vmatpush1.bf16.msra.mxu0 0
    %1952 = vmatprep.subr.bf16.mxu0 0
    %1953 = vmatpush1.bf16.msra.mxu0 0
    %1954 = vmatprep.subr.bf16.mxu0 0
    %1955 = vmatpush1.bf16.msra.mxu0 0
    %1956 = vmatprep.subr.bf16.mxu0 0
    %1957 = vmatpush1.bf16.msra.mxu0 0
    %1958 = vmatprep.subr.bf16.mxu0 0
    %1959 = vmatpush1.bf16.msra.mxu0 0
    %1960 = vmatprep.subr.bf16.mxu0 0
    %1961 = vmatpush1.bf16.msra.mxu0 0
    %1962 = vmatprep.subr.bf16.mxu0 0
    %1963 = vmatpush1.bf16.msra.mxu0 0
    %1964 = vmatprep.mubr.bf16.mxu0 0
    %1965 = vmatmul.mubr.bf16.gmra.mrb[0].mxu0 %v1821
    %v1966 = vpop.f32.mrb[0].mxu0
    %v1967 = vadd.f32 0.0, %v1966
    %v1968 = vpop.f32.mrb[0].mxu0
    %v1969 = vadd.f32 0.0, %v1968
    %v1970 = vpop.f32.mrb[0].mxu0
    %v1971 = vadd.f32 0.0, %v1970
    %v1972 = vpop.f32.mrb[0].mxu0
    %v1973 = vadd.f32 0.0, %v1972
    %1974 = vmatprep.mubr.bf16.mxu0 0
    %1975 = vmatmul.mubr.bf16.gmra.mrb[0].mxu0 %v1824
    %v1976 = vpop.f32.mrb[0].mxu0
    %v1977 = vadd.f32 0.0, %v1976
    %v1978 = vpop.f32.mrb[0].mxu0
    %v1979 = vadd.f32 0.0, %v1978
    %v1980 = vpop.f32.mrb[0].mxu0
    %v1981 = vadd.f32 0.0, %v1980
    %v1982 = vpop.f32.mrb[0].mxu0
    %v1983 = vadd.f32 0.0, %v1982
    %1984 = vdwg.mxu0
    %v1985 = vadd.f32 %v1766, %v1861
    %v1986 = vadd.f32 %v1767, %v1863
    %v1987 = vadd.f32 %v1768, %v1914
    %v1988 = vadd.f32 %v1769, %v1916
    %v1989 = vadd.f32 %v1770, %v1967
    %v1990 = vadd.f32 %v1771, %v1969
    %v1991 = vadd.f32 %v1772, %v1865
    %v1992 = vadd.f32 %v1773, %v1867
    %v1993 = vadd.f32 %v1774, %v1918
    %v1994 = vadd.f32 %v1775, %v1920
    %v1995 = vadd.f32 %v1776, %v1971
    %v1996 = vadd.f32 %v1777, %v1973
    %v1997 = vadd.f32 %v1778, %v1871
    %v1998 = vadd.f32 %v1779, %v1873
    %v1999 = vadd.f32 %v1780, %v1924
    %v2000 = vadd.f32 %v1781, %v1926
    %v2001 = vadd.f32 %v1782, %v1977
    %v2002 = vadd.f32 %v1783, %v1979
    %v2003 = vadd.f32 %v1784, %v1875
    %v2004 = vadd.f32 %v1785, %v1877
    %v2005 = vadd.f32 %v1786, %v1928
    %v2006 = vadd.f32 %v1787, %v1930
    %v2007 = vadd.f32 %v1788, %v1981
    %v2008 = vadd.f32 %v1789, %v1983
    %v2009 = vld [vmem:[%s4 + $0x100] sm:$0xff]
    %v2010 = vld [vmem:[%s4 + $0x108] sm:$0xff]
    %v2011 = vld [vmem:[%s4 + $0x110] sm:$0xff]
    %v2012 = vld [vmem:[%s4 + $0x118] sm:$0xff]
    %v2013 = vpack.c.bf16 %v2010, %v2009
    %v2014 = vpack.c.bf16 %v2012, %v2011
    %2015 = vrot.lane.b32.xlu0 %v928, 109
    %v2016 = vpop.permute.xlu0 %2015
    %2017 = vrot.lane.b32.xlu0 %v929, 109
    %v2018 = vpop.permute.xlu0 %2017
    %2019 = vrot.lane.b32.xlu0 %v930, 109
    %v2020 = vpop.permute.xlu0 %2019
    %2021 = vrot.lane.b32.xlu0 %v931, 109
    %v2022 = vpop.permute.xlu0 %2021
    %2023 = vrot.lane.b32.xlu0 %v932, 109
    %v2024 = vpop.permute.xlu0 %2023
    %2025 = vrot.lane.b32.xlu0 %v933, 109
    %v2026 = vpop.permute.xlu0 %2025
    %vm2027 = vcmask 891904
    %v2028 = vsel %vm2027, %v2016, %v2018
    %v2029 = vsel %vm2027, %v2018, %v2020
    %v2030 = vsel %vm2027, %v2020, %v2022
    %v2031 = vsel %vm2027, %v2022, %v2024
    %v2032 = vsel %vm2027, %v2024, %v2026
    %v2040 = vsel %vm333, %v2013, 0
    %v2043 = vsel %vm333, %v2014, 0
    %2045 = vmatprep.subr.bf16.mxu0 %v2029
    %2046 = vmatpush1.bf16.msra.mxu0 %v2028
    %2047 = vmatprep.subr.bf16.mxu0 0
    %2048 = vmatpush1.bf16.msra.mxu0 0
    %2049 = vmatprep.subr.bf16.mxu0 0
    %2050 = vmatpush1.bf16.msra.mxu0 0
    %2051 = vmatprep.subr.bf16.mxu0 0
    %2052 = vmatpush1.bf16.msra.mxu0 0
    %2053 = vmatprep.subr.bf16.mxu0 0
    %2054 = vmatpush1.bf16.msra.mxu0 0
    %2055 = vmatprep.subr.bf16.mxu0 0
    %2056 = vmatpush1.bf16.msra.mxu0 0
    %2057 = vmatprep.subr.bf16.mxu0 0
    %2058 = vmatpush1.bf16.msra.mxu0 0
    %2059 = vmatprep.subr.bf16.mxu0 0
    %2060 = vmatpush1.bf16.msra.mxu0 0
    %2061 = vmatprep.subr.bf16.mxu0 0
    %2062 = vmatpush1.bf16.msra.mxu0 0
    %2063 = vmatprep.subr.bf16.mxu0 0
    %2064 = vmatpush1.bf16.msra.mxu0 0
    %2065 = vmatprep.subr.bf16.mxu0 0
    %2066 = vmatpush1.bf16.msra.mxu0 0
    %2067 = vmatprep.subr.bf16.mxu0 0
    %2068 = vmatpush1.bf16.msra.mxu0 0
    %2069 = vmatprep.subr.bf16.mxu0 0
    %2070 = vmatpush1.bf16.msra.mxu0 0
    %2071 = vmatprep.subr.bf16.mxu0 0
    %2072 = vmatpush1.bf16.msra.mxu0 0
    %2073 = vmatprep.subr.bf16.mxu0 0
    %2074 = vmatpush1.bf16.msra.mxu0 0
    %2075 = vmatprep.subr.bf16.mxu0 0
    %2076 = vmatpush1.bf16.msra.mxu0 0
    %2077 = vmatprep.mubr.bf16.mxu0 0
    %2078 = vmatmul.mubr.bf16.gmra.mrb[0].mxu0 %v2040
    %v2079 = vpop.f32.mrb[0].mxu0
    %v2080 = vadd.f32 0.0, %v2079
    %v2081 = vpop.f32.mrb[0].mxu0
    %v2082 = vadd.f32 0.0, %v2081
    %v2083 = vpop.f32.mrb[0].mxu0
    %v2084 = vadd.f32 0.0, %v2083
    %v2085 = vpop.f32.mrb[0].mxu0
    %v2086 = vadd.f32 0.0, %v2085
    %2087 = vmatprep.mubr.bf16.mxu0 0
    %2088 = vmatmul.mubr.bf16.gmra.mrb[0].mxu0 %v2043
    %v2089 = vpop.f32.mrb[0].mxu0
    %v2090 = vadd.f32 0.0, %v2089
    %v2091 = vpop.f32.mrb[0].mxu0
    %v2092 = vadd.f32 0.0, %v2091
    %v2093 = vpop.f32.mrb[0].mxu0
    %v2094 = vadd.f32 0.0, %v2093
    %v2095 = vpop.f32.mrb[0].mxu0
    %v2096 = vadd.f32 0.0, %v2095
    %2097 = vdwg.mxu0
    %2098 = vmatprep.subr.bf16.mxu0 %v2031
    %2099 = vmatpush1.bf16.msra.mxu0 %v2030
    %2100 = vmatprep.subr.bf16.mxu0 0
    %2101 = vmatpush1.bf16.msra.mxu0 0
    %2102 = vmatprep.subr.bf16.mxu0 0
    %2103 = vmatpush1.bf16.msra.mxu0 0
    %2104 = vmatprep.subr.bf16.mxu0 0
    %2105 = vmatpush1.bf16.msra.mxu0 0
    %2106 = vmatprep.subr.bf16.mxu0 0
    %2107 = vmatpush1.bf16.msra.mxu0 0
    %2108 = vmatprep.subr.bf16.mxu0 0
    %2109 = vmatpush1.bf16.msra.mxu0 0
    %2110 = vmatprep.subr.bf16.mxu0 0
    %2111 = vmatpush1.bf16.msra.mxu0 0
    %2112 = vmatprep.subr.bf16.mxu0 0
    %2113 = vmatpush1.bf16.msra.mxu0 0
    %2114 = vmatprep.subr.bf16.mxu0 0
    %2115 = vmatpush1.bf16.msra.mxu0 0
    %2116 = vmatprep.subr.bf16.mxu0 0
    %2117 = vmatpush1.bf16.msra.mxu0 0
    %2118 = vmatprep.subr.bf16.mxu0 0
    %2119 = vmatpush1.bf16.msra.mxu0 0
    %2120 = vmatprep.subr.bf16.mxu0 0
    %2121 = vmatpush1.bf16.msra.mxu0 0
    %2122 = vmatprep.subr.bf16.mxu0 0
    %2123 = vmatpush1.bf16.msra.mxu0 0
    %2124 = vmatprep.subr.bf16.mxu0 0
    %2125 = vmatpush1.bf16.msra.mxu0 0
    %2126 = vmatprep.subr.bf16.mxu0 0
    %2127 = vmatpush1.bf16.msra.mxu0 0
    %2128 = vmatprep.subr.bf16.mxu0 0
    %2129 = vmatpush1.bf16.msra.mxu0 0
    %2130 = vmatprep.mubr.bf16.mxu0 0
    %2131 = vmatmul.mubr.bf16.gmra.mrb[0].mxu0 %v2040
    %v2132 = vpop.f32.mrb[0].mxu0
    %v2133 = vadd.f32 0.0, %v2132
    %v2134 = vpop.f32.mrb[0].mxu0
    %v2135 = vadd.f32 0.0, %v2134
    %v2136 = vpop.f32.mrb[0].mxu0
    %v2137 = vadd.f32 0.0, %v2136
    %v2138 = vpop.f32.mrb[0].mxu0
    %v2139 = vadd.f32 0.0, %v2138
    %2140 = vmatprep.mubr.bf16.mxu0 0
    %2141 = vmatmul.mubr.bf16.gmra.mrb[0].mxu0 %v2043
    %v2142 = vpop.f32.mrb[0].mxu0
    %v2143 = vadd.f32 0.0, %v2142
    %v2144 = vpop.f32.mrb[0].mxu0
    %v2145 = vadd.f32 0.0, %v2144
    %v2146 = vpop.f32.mrb[0].mxu0
    %v2147 = vadd.f32 0.0, %v2146
    %v2148 = vpop.f32.mrb[0].mxu0
    %v2149 = vadd.f32 0.0, %v2148
    %2150 = vdwg.mxu0
    %2151 = vmatprep.subr.bf16.mxu0 %v2026
    %2152 = vmatpush1.bf16.msra.mxu0 %v2032
    %2153 = vmatprep.subr.bf16.mxu0 0
    %2154 = vmatpush1.bf16.msra.mxu0 0
    %2155 = vmatprep.subr.bf16.mxu0 0
    %2156 = vmatpush1.bf16.msra.mxu0 0
    %2157 = vmatprep.subr.bf16.mxu0 0
    %2158 = vmatpush1.bf16.msra.mxu0 0
    %2159 = vmatprep.subr.bf16.mxu0 0
    %2160 = vmatpush1.bf16.msra.mxu0 0
    %2161 = vmatprep.subr.bf16.mxu0 0
    %2162 = vmatpush1.bf16.msra.mxu0 0
    %2163 = vmatprep.subr.bf16.mxu0 0
    %2164 = vmatpush1.bf16.msra.mxu0 0
    %2165 = vmatprep.subr.bf16.mxu0 0
    %2166 = vmatpush1.bf16.msra.mxu0 0
    %2167 = vmatprep.subr.bf16.mxu0 0
    %2168 = vmatpush1.bf16.msra.mxu0 0
    %2169 = vmatprep.subr.bf16.mxu0 0
    %2170 = vmatpush1.bf16.msra.mxu0 0
    %2171 = vmatprep.subr.bf16.mxu0 0
    %2172 = vmatpush1.bf16.msra.mxu0 0
    %2173 = vmatprep.subr.bf16.mxu0 0
    %2174 = vmatpush1.bf16.msra.mxu0 0
    %2175 = vmatprep.subr.bf16.mxu0 0
    %2176 = vmatpush1.bf16.msra.mxu0 0
    %2177 = vmatprep.subr.bf16.mxu0 0
    %2178 = vmatpush1.bf16.msra.mxu0 0
    %2179 = vmatprep.subr.bf16.mxu0 0
    %2180 = vmatpush1.bf16.msra.mxu0 0
    %2181 = vmatprep.subr.bf16.mxu0 0
    %2182 = vmatpush1.bf16.msra.mxu0 0
    %2183 = vmatprep.mubr.bf16.mxu0 0
    %2184 = vmatmul.mubr.bf16.gmra.mrb[0].mxu0 %v2040
    %v2185 = vpop.f32.mrb[0].mxu0
    %v2186 = vadd.f32 0.0, %v2185
    %v2187 = vpop.f32.mrb[0].mxu0
    %v2188 = vadd.f32 0.0, %v2187
    %v2189 = vpop.f32.mrb[0].mxu0
    %v2190 = vadd.f32 0.0, %v2189
    %v2191 = vpop.f32.mrb[0].mxu0
    %v2192 = vadd.f32 0.0, %v2191
    %2193 = vmatprep.mubr.bf16.mxu0 0
    %2194 = vmatmul.mubr.bf16.gmra.mrb[0].mxu0 %v2043
    %v2195 = vpop.f32.mrb[0].mxu0
    %v2196 = vadd.f32 0.0, %v2195
    %v2197 = vpop.f32.mrb[0].mxu0
    %v2198 = vadd.f32 0.0, %v2197
    %v2199 = vpop.f32.mrb[0].mxu0
    %v2200 = vadd.f32 0.0, %v2199
    %v2201 = vpop.f32.mrb[0].mxu0
    %v2202 = vadd.f32 0.0, %v2201
    %2203 = vdwg.mxu0
    %v2204 = vadd.f32 %v1985, %v2080
    %v2205 = vadd.f32 %v1986, %v2082
    %v2206 = vadd.f32 %v1987, %v2133
    %v2207 = vadd.f32 %v1988, %v2135
    %v2208 = vadd.f32 %v1989, %v2186
    %v2209 = vadd.f32 %v1990, %v2188
    %v2210 = vadd.f32 %v1991, %v2084
    %v2211 = vadd.f32 %v1992, %v2086
    %v2212 = vadd.f32 %v1993, %v2137
    %v2213 = vadd.f32 %v1994, %v2139
    %v2214 = vadd.f32 %v1995, %v2190
    %v2215 = vadd.f32 %v1996, %v2192
    %v2216 = vadd.f32 %v1997, %v2090
    %v2217 = vadd.f32 %v1998, %v2092
    %v2218 = vadd.f32 %v1999, %v2143
    %v2219 = vadd.f32 %v2000, %v2145
    %v2220 = vadd.f32 %v2001, %v2196
    %v2221 = vadd.f32 %v2002, %v2198
    %v2222 = vadd.f32 %v2003, %v2094
    %v2223 = vadd.f32 %v2004, %v2096
    %v2224 = vadd.f32 %v2005, %v2147
    %v2225 = vadd.f32 %v2006, %v2149
    %v2226 = vadd.f32 %v2007, %v2200
    %v2227 = vadd.f32 %v2008, %v2202
    %v2228 = vld [vmem:[%s5] sm:$0xff]
    %v2229 = vld [vmem:[%s5 + $0x8] sm:$0xff]
    %v2230 = vld [vmem:[%s5 + $0x10] sm:$0xff]
    %v2231 = vld [vmem:[%s5 + $0x18] sm:$0xff]
    %2233 = vset.pattern.permute.xlu0 0
    %2234 = vperm.xlu0 %2233, %v2228
    %v2235 = vpop.permute.xlu0 %2234
    %2238 = vset.pattern.permute.xlu0 0
    %2239 = vperm.xlu0 %2238, %v2229
    %v2240 = vpop.permute.xlu0 %2239
    %2243 = vset.pattern.permute.xlu0 0
    %2244 = vperm.xlu0 %2243, %v2230
    %v2245 = vpop.permute.xlu0 %2244
    %2248 = vset.pattern.permute.xlu0 0
    %2249 = vperm.xlu0 %2248, %v2231
    %v2250 = vpop.permute.xlu0 %2249
    %v2252 = vadd.f32 %v2204, %v2235
    %v2253 = vadd.f32 %v2205, %v2235
    %v2254 = vadd.f32 %v2206, %v2235
    %v2255 = vadd.f32 %v2207, %v2235
    %v2256 = vadd.f32 %v2208, %v2235
    %v2257 = vadd.f32 %v2209, %v2235
    %v2258 = vadd.f32 %v2210, %v2240
    %v2259 = vadd.f32 %v2211, %v2240
    %v2260 = vadd.f32 %v2212, %v2240
    %v2261 = vadd.f32 %v2213, %v2240
    %v2262 = vadd.f32 %v2214, %v2240
    %v2263 = vadd.f32 %v2215, %v2240
    %v2264 = vadd.f32 %v2216, %v2245
    %v2265 = vadd.f32 %v2217, %v2245
    %v2266 = vadd.f32 %v2218, %v2245
    %v2267 = vadd.f32 %v2219, %v2245
    %v2268 = vadd.f32 %v2220, %v2245
    %v2269 = vadd.f32 %v2221, %v2245
    %v2270 = vadd.f32 %v2222, %v2250
    %v2271 = vadd.f32 %v2223, %v2250
    %v2272 = vadd.f32 %v2224, %v2250
    %v2273 = vadd.f32 %v2225, %v2250
    %v2274 = vadd.f32 %v2226, %v2250
    %v2275 = vadd.f32 %v2227, %v2250
    %v2276 = vld [vmem:[%s6] sm:$0xff]
    %v2277 = vld [vmem:[%s6 + $0x8] sm:$0xff]
    %v2278 = vld [vmem:[%s6 + $0x10] sm:$0xff]
    %v2279 = vld [vmem:[%s6 + $0x18] sm:$0xff]
    %v2280 = vld [vmem:[%s7] sm:$0xff]
    %v2281 = vld [vmem:[%s7 + $0x8] sm:$0xff]
    %v2282 = vld [vmem:[%s7 + $0x10] sm:$0xff]
    %v2283 = vld [vmem:[%s7 + $0x18] sm:$0xff]
    %v2284 = vmul.f32 %v2252, %v67
    %v2285 = vmul.f32 %v2253, %v71
    %v2286 = vmul.f32 %v2254, %v75
    %v2287 = vmul.f32 %v2255, %v79
    %v2288 = vmul.f32 %v2256, %v83
    %v2289 = vmul.f32 %v2257, %v87
    %v2290 = vmul.f32 %v2258, %v67
    %v2291 = vmul.f32 %v2259, %v71
    %v2292 = vmul.f32 %v2260, %v75
    %v2293 = vmul.f32 %v2261, %v79
    %v2294 = vmul.f32 %v2262, %v83
    %v2295 = vmul.f32 %v2263, %v87
    %v2296 = vmul.f32 %v2264, %v67
    %v2297 = vmul.f32 %v2265, %v71
    %v2298 = vmul.f32 %v2266, %v75
    %v2299 = vmul.f32 %v2267, %v79
    %v2300 = vmul.f32 %v2268, %v83
    %v2301 = vmul.f32 %v2269, %v87
    %v2302 = vmul.f32 %v2270, %v67
    %v2303 = vmul.f32 %v2271, %v71
    %v2304 = vmul.f32 %v2272, %v75
    %v2305 = vmul.f32 %v2273, %v79
    %v2306 = vmul.f32 %v2274, %v83
    %v2307 = vmul.f32 %v2275, %v87
    %v2308 = vadd.f32 %v2284, %v2285
    %v2309 = vadd.f32 %v2308, %v2286
    %v2310 = vadd.f32 %v2309, %v2287
    %v2311 = vadd.f32 %v2310, %v2288
    %v2312 = vsel %vm110, %v2289, 0.0
    %v2313 = vadd.f32 %v2311, %v2312
    %2314 = vadd.xlane.f32.xlu0 %v2313
    %v2315 = vpop.xlane.xlu0 %2314
    %v2316 = vadd.f32 %v2290, %v2291
    %v2317 = vadd.f32 %v2316, %v2292
    %v2318 = vadd.f32 %v2317, %v2293
    %v2319 = vadd.f32 %v2318, %v2294
    %v2320 = vsel %vm110, %v2295, 0.0
    %v2321 = vadd.f32 %v2319, %v2320
    %2322 = vadd.xlane.f32.xlu0 %v2321
    %v2323 = vpop.xlane.xlu0 %2322
    %v2324 = vadd.f32 %v2296, %v2297
    %v2325 = vadd.f32 %v2324, %v2298
    %v2326 = vadd.f32 %v2325, %v2299
    %v2327 = vadd.f32 %v2326, %v2300
    %v2328 = vsel %vm110, %v2301, 0.0
    %v2329 = vadd.f32 %v2327, %v2328
    %2330 = vadd.xlane.f32.xlu0 %v2329
    %v2331 = vpop.xlane.xlu0 %2330
    %v2332 = vadd.f32 %v2302, %v2303
    %v2333 = vadd.f32 %v2332, %v2304
    %v2334 = vadd.f32 %v2333, %v2305
    %v2335 = vadd.f32 %v2334, %v2306
    %v2336 = vsel %vm110, %v2307, 0.0
    %v2337 = vadd.f32 %v2335, %v2336
    %2338 = vadd.xlane.f32.xlu0 %v2337
    %v2339 = vpop.xlane.xlu0 %2338
    %v2340 = vmul.f32 %v2315, 0.001953125
    %v2341 = vmul.f32 %v2323, 0.001953125
    %v2342 = vmul.f32 %v2331, 0.001953125
    %v2343 = vmul.f32 %v2339, 0.001953125
    %v2344 = vmul.f32 %v2284, %v2284
    %v2345 = vmul.f32 %v2285, %v2285
    %v2346 = vmul.f32 %v2286, %v2286
    %v2347 = vmul.f32 %v2287, %v2287
    %v2348 = vmul.f32 %v2288, %v2288
    %v2349 = vmul.f32 %v2289, %v2289
    %v2350 = vmul.f32 %v2290, %v2290
    %v2351 = vmul.f32 %v2291, %v2291
    %v2352 = vmul.f32 %v2292, %v2292
    %v2353 = vmul.f32 %v2293, %v2293
    %v2354 = vmul.f32 %v2294, %v2294
    %v2355 = vmul.f32 %v2295, %v2295
    %v2356 = vmul.f32 %v2296, %v2296
    %v2357 = vmul.f32 %v2297, %v2297
    %v2358 = vmul.f32 %v2298, %v2298
    %v2359 = vmul.f32 %v2299, %v2299
    %v2360 = vmul.f32 %v2300, %v2300
    %v2361 = vmul.f32 %v2301, %v2301
    %v2362 = vmul.f32 %v2302, %v2302
    %v2363 = vmul.f32 %v2303, %v2303
    %v2364 = vmul.f32 %v2304, %v2304
    %v2365 = vmul.f32 %v2305, %v2305
    %v2366 = vmul.f32 %v2306, %v2306
    %v2367 = vmul.f32 %v2307, %v2307
    %v2368 = vadd.f32 %v2344, %v2345
    %v2369 = vadd.f32 %v2368, %v2346
    %v2370 = vadd.f32 %v2369, %v2347
    %v2371 = vadd.f32 %v2370, %v2348
    %v2372 = vsel %vm110, %v2349, 0.0
    %v2373 = vadd.f32 %v2371, %v2372
    %2374 = vadd.xlane.f32.xlu0 %v2373
    %v2375 = vpop.xlane.xlu0 %2374
    %v2376 = vadd.f32 %v2350, %v2351
    %v2377 = vadd.f32 %v2376, %v2352
    %v2378 = vadd.f32 %v2377, %v2353
    %v2379 = vadd.f32 %v2378, %v2354
    %v2380 = vsel %vm110, %v2355, 0.0
    %v2381 = vadd.f32 %v2379, %v2380
    %2382 = vadd.xlane.f32.xlu0 %v2381
    %v2383 = vpop.xlane.xlu0 %2382
    %v2384 = vadd.f32 %v2356, %v2357
    %v2385 = vadd.f32 %v2384, %v2358
    %v2386 = vadd.f32 %v2385, %v2359
    %v2387 = vadd.f32 %v2386, %v2360
    %v2388 = vsel %vm110, %v2361, 0.0
    %v2389 = vadd.f32 %v2387, %v2388
    %2390 = vadd.xlane.f32.xlu0 %v2389
    %v2391 = vpop.xlane.xlu0 %2390
    %v2392 = vadd.f32 %v2362, %v2363
    %v2393 = vadd.f32 %v2392, %v2364
    %v2394 = vadd.f32 %v2393, %v2365
    %v2395 = vadd.f32 %v2394, %v2366
    %v2396 = vsel %vm110, %v2367, 0.0
    %v2397 = vadd.f32 %v2395, %v2396
    %2398 = vadd.xlane.f32.xlu0 %v2397
    %v2399 = vpop.xlane.xlu0 %2398
    %v2400 = vmul.f32 %v2375, 0.001953125
    %v2401 = vmul.f32 %v2383, 0.001953125
    %v2402 = vmul.f32 %v2391, 0.001953125
    %v2403 = vmul.f32 %v2399, 0.001953125
    %v2404 = vmul.f32 %v2340, %v2340
    %v2405 = vmul.f32 %v2341, %v2341
    %v2406 = vmul.f32 %v2342, %v2342
    %v2407 = vmul.f32 %v2343, %v2343
    %v2408 = vsub.f32 %v2400, %v2404
    %v2409 = vsub.f32 %v2401, %v2405
    %v2410 = vsub.f32 %v2402, %v2406
    %v2411 = vsub.f32 %v2403, %v2407
    %v2412 = vadd.f32 %v2408, 1e-05
    %v2413 = vadd.f32 %v2409, 1e-05
    %v2414 = vadd.f32 %v2410, 1e-05
    %v2415 = vadd.f32 %v2411, 1e-05
    %v2416 = vrsqrt.pop %v2412
    %v2417 = vrsqrt.pop %v2413
    %v2418 = vrsqrt.pop %v2414
    %v2419 = vrsqrt.pop %v2415
    %v2420 = vsub.f32 %v2252, %v2340
    %v2421 = vsub.f32 %v2253, %v2340
    %v2422 = vsub.f32 %v2254, %v2340
    %v2423 = vsub.f32 %v2255, %v2340
    %v2424 = vsub.f32 %v2256, %v2340
    %v2425 = vsub.f32 %v2257, %v2340
    %v2426 = vsub.f32 %v2258, %v2341
    %v2427 = vsub.f32 %v2259, %v2341
    %v2428 = vsub.f32 %v2260, %v2341
    %v2429 = vsub.f32 %v2261, %v2341
    %v2430 = vsub.f32 %v2262, %v2341
    %v2431 = vsub.f32 %v2263, %v2341
    %v2432 = vsub.f32 %v2264, %v2342
    %v2433 = vsub.f32 %v2265, %v2342
    %v2434 = vsub.f32 %v2266, %v2342
    %v2435 = vsub.f32 %v2267, %v2342
    %v2436 = vsub.f32 %v2268, %v2342
    %v2437 = vsub.f32 %v2269, %v2342
    %v2438 = vsub.f32 %v2270, %v2343
    %v2439 = vsub.f32 %v2271, %v2343
    %v2440 = vsub.f32 %v2272, %v2343
    %v2441 = vsub.f32 %v2273, %v2343
    %v2442 = vsub.f32 %v2274, %v2343
    %v2443 = vsub.f32 %v2275, %v2343
    %v2444 = vmul.f32 %v2416, %v2276
    %v2445 = vmul.f32 %v2417, %v2277
    %v2446 = vmul.f32 %v2418, %v2278
    %v2447 = vmul.f32 %v2419, %v2279
    %2449 = vset.pattern.permute.xlu0 0
    %2450 = vperm.xlu0 %2449, %v2444
    %v2451 = vpop.permute.xlu0 %2450
    %2454 = vset.pattern.permute.xlu0 0
    %2455 = vperm.xlu0 %2454, %v2445
    %v2456 = vpop.permute.xlu0 %2455
    %2459 = vset.pattern.permute.xlu0 0
    %2460 = vperm.xlu0 %2459, %v2446
    %v2461 = vpop.permute.xlu0 %2460
    %2464 = vset.pattern.permute.xlu0 0
    %2465 = vperm.xlu0 %2464, %v2447
    %v2466 = vpop.permute.xlu0 %2465
    %v2468 = vmul.f32 %v2420, %v2451
    %v2469 = vmul.f32 %v2421, %v2451
    %v2470 = vmul.f32 %v2422, %v2451
    %v2471 = vmul.f32 %v2423, %v2451
    %v2472 = vmul.f32 %v2424, %v2451
    %v2473 = vmul.f32 %v2425, %v2451
    %v2474 = vmul.f32 %v2426, %v2456
    %v2475 = vmul.f32 %v2427, %v2456
    %v2476 = vmul.f32 %v2428, %v2456
    %v2477 = vmul.f32 %v2429, %v2456
    %v2478 = vmul.f32 %v2430, %v2456
    %v2479 = vmul.f32 %v2431, %v2456
    %v2480 = vmul.f32 %v2432, %v2461
    %v2481 = vmul.f32 %v2433, %v2461
    %v2482 = vmul.f32 %v2434, %v2461
    %v2483 = vmul.f32 %v2435, %v2461
    %v2484 = vmul.f32 %v2436, %v2461
    %v2485 = vmul.f32 %v2437, %v2461
    %v2486 = vmul.f32 %v2438, %v2466
    %v2487 = vmul.f32 %v2439, %v2466
    %v2488 = vmul.f32 %v2440, %v2466
    %v2489 = vmul.f32 %v2441, %v2466
    %v2490 = vmul.f32 %v2442, %v2466
    %v2491 = vmul.f32 %v2443, %v2466
    %2493 = vset.pattern.permute.xlu0 0
    %2494 = vperm.xlu0 %2493, %v2280
    %v2495 = vpop.permute.xlu0 %2494
    %2498 = vset.pattern.permute.xlu0 0
    %2499 = vperm.xlu0 %2498, %v2281
    %v2500 = vpop.permute.xlu0 %2499
    %2503 = vset.pattern.permute.xlu0 0
    %2504 = vperm.xlu0 %2503, %v2282
    %v2505 = vpop.permute.xlu0 %2504
    %2508 = vset.pattern.permute.xlu0 0
    %2509 = vperm.xlu0 %2508, %v2283
    %v2510 = vpop.permute.xlu0 %2509
    %v2512 = vadd.f32 %v2468, %v2495
    %v2513 = vadd.f32 %v2469, %v2495
    %v2514 = vadd.f32 %v2470, %v2495
    %v2515 = vadd.f32 %v2471, %v2495
    %v2516 = vadd.f32 %v2472, %v2495
    %v2517 = vadd.f32 %v2473, %v2495
    %v2518 = vadd.f32 %v2474, %v2500
    %v2519 = vadd.f32 %v2475, %v2500
    %v2520 = vadd.f32 %v2476, %v2500
    %v2521 = vadd.f32 %v2477, %v2500
    %v2522 = vadd.f32 %v2478, %v2500
    %v2523 = vadd.f32 %v2479, %v2500
    %v2524 = vadd.f32 %v2480, %v2505
    %v2525 = vadd.f32 %v2481, %v2505
    %v2526 = vadd.f32 %v2482, %v2505
    %v2527 = vadd.f32 %v2483, %v2505
    %v2528 = vadd.f32 %v2484, %v2505
    %v2529 = vadd.f32 %v2485, %v2505
    %v2530 = vadd.f32 %v2486, %v2510
    %v2531 = vadd.f32 %v2487, %v2510
    %v2532 = vadd.f32 %v2488, %v2510
    %v2533 = vadd.f32 %v2489, %v2510
    %v2534 = vadd.f32 %v2490, %v2510
    %v2535 = vadd.f32 %v2491, %v2510
    %v2536 = vmax.f32 %v2512, 0.0
    %v2537 = vmax.f32 %v2513, 0.0
    %v2538 = vmax.f32 %v2514, 0.0
    %v2539 = vmax.f32 %v2515, 0.0
    %v2540 = vmax.f32 %v2516, 0.0
    %v2541 = vmax.f32 %v2517, 0.0
    %v2542 = vmax.f32 %v2518, 0.0
    %v2543 = vmax.f32 %v2519, 0.0
    %v2544 = vmax.f32 %v2520, 0.0
    %v2545 = vmax.f32 %v2521, 0.0
    %v2546 = vmax.f32 %v2522, 0.0
    %v2547 = vmax.f32 %v2523, 0.0
    %v2548 = vmax.f32 %v2524, 0.0
    %v2549 = vmax.f32 %v2525, 0.0
    %v2550 = vmax.f32 %v2526, 0.0
    %v2551 = vmax.f32 %v2527, 0.0
    %v2552 = vmax.f32 %v2528, 0.0
    %v2553 = vmax.f32 %v2529, 0.0
    %v2554 = vmax.f32 %v2530, 0.0
    %v2555 = vmax.f32 %v2531, 0.0
    %v2556 = vmax.f32 %v2532, 0.0
    %v2557 = vmax.f32 %v2533, 0.0
    %v2558 = vmax.f32 %v2534, 0.0
    %v2559 = vmax.f32 %v2535, 0.0
    %v2560 = vmul.f32 %v2536, %v67
    %v2561 = vmul.f32 %v2537, %v71
    %v2562 = vmul.f32 %v2538, %v75
    %v2563 = vmul.f32 %v2539, %v79
    %v2564 = vmul.f32 %v2540, %v83
    %v2565 = vmul.f32 %v2541, %v87
    %v2566 = vmul.f32 %v2542, %v67
    %v2567 = vmul.f32 %v2543, %v71
    %v2568 = vmul.f32 %v2544, %v75
    %v2569 = vmul.f32 %v2545, %v79
    %v2570 = vmul.f32 %v2546, %v83
    %v2571 = vmul.f32 %v2547, %v87
    %v2572 = vmul.f32 %v2548, %v67
    %v2573 = vmul.f32 %v2549, %v71
    %v2574 = vmul.f32 %v2550, %v75
    %v2575 = vmul.f32 %v2551, %v79
    %v2576 = vmul.f32 %v2552, %v83
    %v2577 = vmul.f32 %v2553, %v87
    %v2578 = vmul.f32 %v2554, %v67
    %v2579 = vmul.f32 %v2555, %v71
    %v2580 = vmul.f32 %v2556, %v75
    %v2581 = vmul.f32 %v2557, %v79
    %v2582 = vmul.f32 %v2558, %v83
    %v2583 = vmul.f32 %v2559, %v87
    %2584 = vst [vmem:[#allocation3] sm:$0xff] 0.0
    %2585 = vst [vmem:[#allocation3 + $0x8] sm:$0xff] 0.0
    %2586 = vst [vmem:[#allocation3 + $0x10] sm:$0xff] 0.0
    %2587 = vst [vmem:[#allocation3 + $0x18] sm:$0xff] 0.0
    %2588 = vst [vmem:[#allocation3 + $0x20] sm:$0xff] 0.0
    %2589 = vst [vmem:[#allocation3 + $0x28] sm:$0xff] 0.0
    %2590 = vst [vmem:[#allocation3 + $0x30] sm:$0xff] 0.0
    %2591 = vst.msk [vmem:[#allocation3 + $0x38] sm:$0xff] %vm110, 0.0
    %2592 = vst [vmem:[#allocation3 + $0x40] sm:$0xff] 0.0
    %2593 = vst [vmem:[#allocation3 + $0x48] sm:$0xff] 0.0
    %2594 = vst [vmem:[#allocation3 + $0x50] sm:$0xff] 0.0
    %2595 = vst [vmem:[#allocation3 + $0x58] sm:$0xff] 0.0
    %2596 = vst [vmem:[#allocation3 + $0x60] sm:$0xff] 0.0
    %2597 = vst [vmem:[#allocation3 + $0x68] sm:$0xff] 0.0
    %2598 = vst [vmem:[#allocation3 + $0x70] sm:$0xff] 0.0
    %2599 = vst.msk [vmem:[#allocation3 + $0x78] sm:$0xff] %vm110, 0.0
    %2600 = vst [vmem:[#allocation3 + $0x80] sm:$0xff] 0.0
    %2601 = vst [vmem:[#allocation3 + $0x88] sm:$0xff] 0.0
    %2602 = vst [vmem:[#allocation3 + $0x90] sm:$0xff] 0.0
    %2603 = vst [vmem:[#allocation3 + $0x98] sm:$0xff] 0.0
    %2604 = vst [vmem:[#allocation3 + $0xa0] sm:$0xff] 0.0
    %2605 = vst [vmem:[#allocation3 + $0xa8] sm:$0xff] 0.0
    %2606 = vst [vmem:[#allocation3 + $0xb0] sm:$0xff] 0.0
    %2607 = vst.msk [vmem:[#allocation3 + $0xb8] sm:$0xff] %vm110, 0.0
    %2608 = vst [vmem:[#allocation3 + $0xc0] sm:$0xff] 0.0
    %2609 = vst [vmem:[#allocation3 + $0xc8] sm:$0xff] 0.0
    %2610 = vst [vmem:[#allocation3 + $0xd0] sm:$0xff] 0.0
    %2611 = vst [vmem:[#allocation3 + $0xd8] sm:$0xff] 0.0
    %2612 = vst [vmem:[#allocation3 + $0xe0] sm:$0xff] 0.0
    %2613 = vst [vmem:[#allocation3 + $0xe8] sm:$0xff] 0.0
    %2614 = vst [vmem:[#allocation3 + $0xf0] sm:$0xff] 0.0
    %2615 = vst.msk [vmem:[#allocation3 + $0xf8] sm:$0xff] %vm110, 0.0
    %2616 = vst [vmem:[#allocation3 + $0x8] sm:$0xff] %v2560
    %2617 = vst [vmem:[#allocation3 + $0x10] sm:$0xff] %v2561
    %2618 = vst [vmem:[#allocation3 + $0x18] sm:$0xff] %v2562
    %2619 = vst [vmem:[#allocation3 + $0x20] sm:$0xff] %v2563
    %2620 = vst [vmem:[#allocation3 + $0x28] sm:$0xff] %v2564
    %2621 = vst.msk [vmem:[#allocation3 + $0x30] sm:$0xff] %vm110, %v2565
    %2622 = vst [vmem:[#allocation3 + $0x48] sm:$0xff] %v2566
    %2623 = vst [vmem:[#allocation3 + $0x50] sm:$0xff] %v2567
    %2624 = vst [vmem:[#allocation3 + $0x58] sm:$0xff] %v2568
    %2625 = vst [vmem:[#allocation3 + $0x60] sm:$0xff] %v2569
    %2626 = vst [vmem:[#allocation3 + $0x68] sm:$0xff] %v2570
    %2627 = vst.msk [vmem:[#allocation3 + $0x70] sm:$0xff] %vm110, %v2571
    %2628 = vst [vmem:[#allocation3 + $0x88] sm:$0xff] %v2572
    %2629 = vst [vmem:[#allocation3 + $0x90] sm:$0xff] %v2573
    %2630 = vst [vmem:[#allocation3 + $0x98] sm:$0xff] %v2574
    %2631 = vst [vmem:[#allocation3 + $0xa0] sm:$0xff] %v2575
    %2632 = vst [vmem:[#allocation3 + $0xa8] sm:$0xff] %v2576
    %2633 = vst.msk [vmem:[#allocation3 + $0xb0] sm:$0xff] %vm110, %v2577
    %2634 = vst [vmem:[#allocation3 + $0xc8] sm:$0xff] %v2578
    %2635 = vst [vmem:[#allocation3 + $0xd0] sm:$0xff] %v2579
    %2636 = vst [vmem:[#allocation3 + $0xd8] sm:$0xff] %v2580
    %2637 = vst [vmem:[#allocation3 + $0xe0] sm:$0xff] %v2581
    %2638 = vst [vmem:[#allocation3 + $0xe8] sm:$0xff] %v2582
    %2639 = vst.msk [vmem:[#allocation3 + $0xf0] sm:$0xff] %vm110, %v2583
    %v2640 = vld [vmem:[%s8] sm:$0xff]
    %v2641 = vld [vmem:[%s8 + $0x8] sm:$0xff]
    %v2642 = vld [vmem:[%s8 + $0x10] sm:$0xff]
    %v2643 = vld [vmem:[%s8 + $0x18] sm:$0xff]
    %v2644 = vpack.c.bf16 %v2641, %v2640
    %v2645 = vpack.c.bf16 %v2643, %v2642
    %v2646 = vld [vmem:[#allocation3] sm:$0xff]
    %v2647 = vld [vmem:[#allocation3 + $0x8] sm:$0xff]
    %v2648 = vld [vmem:[#allocation3 + $0x10] sm:$0xff]
    %v2649 = vld [vmem:[#allocation3 + $0x18] sm:$0xff]
    %v2650 = vld [vmem:[#allocation3 + $0x20] sm:$0xff]
    %v2651 = vld [vmem:[#allocation3 + $0x28] sm:$0xff]
    %v2652 = vld [vmem:[#allocation3 + $0x40] sm:$0xff]
    %v2653 = vld [vmem:[#allocation3 + $0x48] sm:$0xff]
    %v2654 = vld [vmem:[#allocation3 + $0x50] sm:$0xff]
    %v2655 = vld [vmem:[#allocation3 + $0x58] sm:$0xff]
    %v2656 = vld [vmem:[#allocation3 + $0x60] sm:$0xff]
    %v2657 = vld [vmem:[#allocation3 + $0x68] sm:$0xff]
    %v2658 = vld [vmem:[#allocation3 + $0x80] sm:$0xff]
    %v2659 = vld [vmem:[#allocation3 + $0x88] sm:$0xff]
    %v2660 = vld [vmem:[#allocation3 + $0x90] sm:$0xff]
    %v2661 = vld [vmem:[#allocation3 + $0x98] sm:$0xff]
    %v2662 = vld [vmem:[#allocation3 + $0xa0] sm:$0xff]
    %v2663 = vld [vmem:[#allocation3 + $0xa8] sm:$0xff]
    %v2664 = vld [vmem:[#allocation3 + $0xc0] sm:$0xff]
    %v2665 = vld [vmem:[#allocation3 + $0xc8] sm:$0xff]
    %v2666 = vld [vmem:[#allocation3 + $0xd0] sm:$0xff]
    %v2667 = vld [vmem:[#allocation3 + $0xd8] sm:$0xff]
    %v2668 = vld [vmem:[#allocation3 + $0xe0] sm:$0xff]
    %v2669 = vld [vmem:[#allocation3 + $0xe8] sm:$0xff]
    %v2670 = vpack.c.bf16 %v2652, %v2646
    %v2671 = vpack.c.bf16 %v2653, %v2647
    %v2672 = vpack.c.bf16 %v2654, %v2648
    %v2673 = vpack.c.bf16 %v2655, %v2649
    %v2674 = vpack.c.bf16 %v2656, %v2650
    %v2675 = vpack.c.bf16 %v2657, %v2651
    %v2676 = vpack.c.bf16 %v2664, %v2658
    %v2677 = vpack.c.bf16 %v2665, %v2659
    %v2678 = vpack.c.bf16 %v2666, %v2660
    %v2679 = vpack.c.bf16 %v2667, %v2661
    %v2680 = vpack.c.bf16 %v2668, %v2662
    %v2681 = vpack.c.bf16 %v2669, %v2663
    %v2682 = vld [vmem:[%s8 + $0x20] sm:$0xff]
    %v2683 = vld [vmem:[%s8 + $0x28] sm:$0xff]
    %v2684 = vld [vmem:[%s8 + $0x30] sm:$0xff]
    %v2685 = vld [vmem:[%s8 + $0x38] sm:$0xff]
    %v2686 = vpack.c.bf16 %v2683, %v2682
    %v2687 = vpack.c.bf16 %v2685, %v2684
    %2700 = vrot.lane.b32.xlu0 %v2670, 18
    %v2701 = vpop.permute.xlu0 %2700
    %2702 = vrot.lane.b32.xlu0 %v2671, 18
    %v2703 = vpop.permute.xlu0 %2702
    %2704 = vrot.lane.b32.xlu0 %v2672, 18
    %v2705 = vpop.permute.xlu0 %2704
    %2706 = vrot.lane.b32.xlu0 %v2673, 18
    %v2707 = vpop.permute.xlu0 %2706
    %2708 = vrot.lane.b32.xlu0 %v2674, 18
    %v2709 = vpop.permute.xlu0 %2708
    %2710 = vrot.lane.b32.xlu0 %v2675, 18
    %v2711 = vpop.permute.xlu0 %2710
    %2712 = vrot.lane.b32.xlu0 %v2676, 18
    %v2713 = vpop.permute.xlu0 %2712
    %2714 = vrot.lane.b32.xlu0 %v2677, 18
    %v2715 = vpop.permute.xlu0 %2714
    %2716 = vrot.lane.b32.xlu0 %v2678, 18
    %v2717 = vpop.permute.xlu0 %2716
    %2718 = vrot.lane.b32.xlu0 %v2679, 18
    %v2719 = vpop.permute.xlu0 %2718
    %2720 = vrot.lane.b32.xlu0 %v2680, 18
    %v2721 = vpop.permute.xlu0 %2720
    %2722 = vrot.lane.b32.xlu0 %v2681, 18
    %v2723 = vpop.permute.xlu0 %2722
    %v2724 = vsel %vm321, %v2701, %v2703
    %v2725 = vsel %vm321, %v2703, %v2705
    %v2726 = vsel %vm321, %v2705, %v2707
    %v2727 = vsel %vm321, %v2707, %v2709
    %v2728 = vsel %vm321, %v2709, %v2711
    %v2729 = vsel %vm321, %v2713, %v2715
    %v2730 = vsel %vm321, %v2715, %v2717
    %v2731 = vsel %vm321, %v2717, %v2719
    %v2732 = vsel %vm321, %v2719, %v2721
    %v2733 = vsel %vm321, %v2721, %v2723
    %vm2746 = vcmask 261120
    %v2748 = vsel %vm2746, %v2686, 0
    %v2751 = vsel %vm2746, %v2687, 0
    %2753 = vmatprep.subr.bf16.mxu0 %v2725
    %2754 = vmatpush1.bf16.msra.mxu0 %v2724
    %2755 = vmatprep.subr.bf16.mxu0 %v2730
    %2756 = vmatpush1.bf16.msra.mxu0 %v2729
    %2757 = vmatprep.subr.bf16.mxu0 0
    %2758 = vmatpush1.bf16.msra.mxu0 0
    %2759 = vmatprep.subr.bf16.mxu0 0
    %2760 = vmatpush1.bf16.msra.mxu0 0
    %2761 = vmatprep.subr.bf16.mxu0 0
    %2762 = vmatpush1.bf16.msra.mxu0 0
    %2763 = vmatprep.subr.bf16.mxu0 0
    %2764 = vmatpush1.bf16.msra.mxu0 0
    %2765 = vmatprep.subr.bf16.mxu0 0
    %2766 = vmatpush1.bf16.msra.mxu0 0
    %2767 = vmatprep.subr.bf16.mxu0 0
    %2768 = vmatpush1.bf16.msra.mxu0 0
    %2769 = vmatprep.subr.bf16.mxu0 0
    %2770 = vmatpush1.bf16.msra.mxu0 0
    %2771 = vmatprep.subr.bf16.mxu0 0
    %2772 = vmatpush1.bf16.msra.mxu0 0
    %2773 = vmatprep.subr.bf16.mxu0 0
    %2774 = vmatpush1.bf16.msra.mxu0 0
    %2775 = vmatprep.subr.bf16.mxu0 0
    %2776 = vmatpush1.bf16.msra.mxu0 0
    %2777 = vmatprep.subr.bf16.mxu0 0
    %2778 = vmatpush1.bf16.msra.mxu0 0
    %2779 = vmatprep.subr.bf16.mxu0 0
    %2780 = vmatpush1.bf16.msra.mxu0 0
    %2781 = vmatprep.subr.bf16.mxu0 0
    %2782 = vmatpush1.bf16.msra.mxu0 0
    %2783 = vmatprep.subr.bf16.mxu0 0
    %2784 = vmatpush1.bf16.msra.mxu0 0
    %2785 = vmatprep.mubr.bf16.mxu0 0
    %2786 = vmatmul.mubr.bf16.gmra.mrb[0].mxu0 %v2748
    %v2787 = vpop.f32.mrb[0].mxu0
    %v2788 = vadd.f32 0.0, %v2787
    %v2789 = vpop.f32.mrb[0].mxu0
    %v2790 = vadd.f32 0.0, %v2789
    %v2791 = vpop.f32.mrb[0].mxu0
    %v2792 = vadd.f32 0.0, %v2791
    %v2793 = vpop.f32.mrb[0].mxu0
    %v2794 = vadd.f32 0.0, %v2793
    %2795 = vmatprep.mubr.bf16.mxu0 0
    %2796 = vmatmul.mubr.bf16.gmra.mrb[0].mxu0 %v2751
    %v2797 = vpop.f32.mrb[0].mxu0
    %v2798 = vadd.f32 0.0, %v2797
    %v2799 = vpop.f32.mrb[0].mxu0
    %v2800 = vadd.f32 0.0, %v2799
    %v2801 = vpop.f32.mrb[0].mxu0
    %v2802 = vadd.f32 0.0, %v2801
    %v2803 = vpop.f32.mrb[0].mxu0
    %v2804 = vadd.f32 0.0, %v2803
    %2805 = vdwg.mxu0
    %2806 = vmatprep.subr.bf16.mxu0 %v2727
    %2807 = vmatpush1.bf16.msra.mxu0 %v2726
    %2808 = vmatprep.subr.bf16.mxu0 %v2732
    %2809 = vmatpush1.bf16.msra.mxu0 %v2731
    %2810 = vmatprep.subr.bf16.mxu0 0
    %2811 = vmatpush1.bf16.msra.mxu0 0
    %2812 = vmatprep.subr.bf16.mxu0 0
    %2813 = vmatpush1.bf16.msra.mxu0 0
    %2814 = vmatprep.subr.bf16.mxu0 0
    %2815 = vmatpush1.bf16.msra.mxu0 0
    %2816 = vmatprep.subr.bf16.mxu0 0
    %2817 = vmatpush1.bf16.msra.mxu0 0
    %2818 = vmatprep.subr.bf16.mxu0 0
    %2819 = vmatpush1.bf16.msra.mxu0 0
    %2820 = vmatprep.subr.bf16.mxu0 0
    %2821 = vmatpush1.bf16.msra.mxu0 0
    %2822 = vmatprep.subr.bf16.mxu0 0
    %2823 = vmatpush1.bf16.msra.mxu0 0
    %2824 = vmatprep.subr.bf16.mxu0 0
    %2825 = vmatpush1.bf16.msra.mxu0 0
    %2826 = vmatprep.subr.bf16.mxu0 0
    %2827 = vmatpush1.bf16.msra.mxu0 0
    %2828 = vmatprep.subr.bf16.mxu0 0
    %2829 = vmatpush1.bf16.msra.mxu0 0
    %2830 = vmatprep.subr.bf16.mxu0 0
    %2831 = vmatpush1.bf16.msra.mxu0 0
    %2832 = vmatprep.subr.bf16.mxu0 0
    %2833 = vmatpush1.bf16.msra.mxu0 0
    %2834 = vmatprep.subr.bf16.mxu0 0
    %2835 = vmatpush1.bf16.msra.mxu0 0
    %2836 = vmatprep.subr.bf16.mxu0 0
    %2837 = vmatpush1.bf16.msra.mxu0 0
    %2838 = vmatprep.mubr.bf16.mxu0 0
    %2839 = vmatmul.mubr.bf16.gmra.mrb[0].mxu0 %v2748
    %v2840 = vpop.f32.mrb[0].mxu0
    %v2841 = vadd.f32 0.0, %v2840
    %v2842 = vpop.f32.mrb[0].mxu0
    %v2843 = vadd.f32 0.0, %v2842
    %v2844 = vpop.f32.mrb[0].mxu0
    %v2845 = vadd.f32 0.0, %v2844
    %v2846 = vpop.f32.mrb[0].mxu0
    %v2847 = vadd.f32 0.0, %v2846
    %2848 = vmatprep.mubr.bf16.mxu0 0
    %2849 = vmatmul.mubr.bf16.gmra.mrb[0].mxu0 %v2751
    %v2850 = vpop.f32.mrb[0].mxu0
    %v2851 = vadd.f32 0.0, %v2850
    %v2852 = vpop.f32.mrb[0].mxu0
    %v2853 = vadd.f32 0.0, %v2852
    %v2854 = vpop.f32.mrb[0].mxu0
    %v2855 = vadd.f32 0.0, %v2854
    %v2856 = vpop.f32.mrb[0].mxu0
    %v2857 = vadd.f32 0.0, %v2856
    %2858 = vdwg.mxu0
    %2859 = vmatprep.subr.bf16.mxu0 %v2711
    %2860 = vmatpush1.bf16.msra.mxu0 %v2728
    %2861 = vmatprep.subr.bf16.mxu0 %v2723
    %2862 = vmatpush1.bf16.msra.mxu0 %v2733
    %2863 = vmatprep.subr.bf16.mxu0 0
    %2864 = vmatpush1.bf16.msra.mxu0 0
    %2865 = vmatprep.subr.bf16.mxu0 0
    %2866 = vmatpush1.bf16.msra.mxu0 0
    %2867 = vmatprep.subr.bf16.mxu0 0
    %2868 = vmatpush1.bf16.msra.mxu0 0
    %2869 = vmatprep.subr.bf16.mxu0 0
    %2870 = vmatpush1.bf16.msra.mxu0 0
    %2871 = vmatprep.subr.bf16.mxu0 0
    %2872 = vmatpush1.bf16.msra.mxu0 0
    %2873 = vmatprep.subr.bf16.mxu0 0
    %2874 = vmatpush1.bf16.msra.mxu0 0
    %2875 = vmatprep.subr.bf16.mxu0 0
    %2876 = vmatpush1.bf16.msra.mxu0 0
    %2877 = vmatprep.subr.bf16.mxu0 0
    %2878 = vmatpush1.bf16.msra.mxu0 0
    %2879 = vmatprep.subr.bf16.mxu0 0
    %2880 = vmatpush1.bf16.msra.mxu0 0
    %2881 = vmatprep.subr.bf16.mxu0 0
    %2882 = vmatpush1.bf16.msra.mxu0 0
    %2883 = vmatprep.subr.bf16.mxu0 0
    %2884 = vmatpush1.bf16.msra.mxu0 0
    %2885 = vmatprep.subr.bf16.mxu0 0
    %2886 = vmatpush1.bf16.msra.mxu0 0
    %2887 = vmatprep.subr.bf16.mxu0 0
    %2888 = vmatpush1.bf16.msra.mxu0 0
    %2889 = vmatprep.subr.bf16.mxu0 0
    %2890 = vmatpush1.bf16.msra.mxu0 0
    %2891 = vmatprep.mubr.bf16.mxu0 0
    %2892 = vmatmul.mubr.bf16.gmra.mrb[0].mxu0 %v2748
    %v2893 = vpop.f32.mrb[0].mxu0
    %v2894 = vadd.f32 0.0, %v2893
    %v2895 = vpop.f32.mrb[0].mxu0
    %v2896 = vadd.f32 0.0, %v2895
    %v2897 = vpop.f32.mrb[0].mxu0
    %v2898 = vadd.f32 0.0, %v2897
    %v2899 = vpop.f32.mrb[0].mxu0
    %v2900 = vadd.f32 0.0, %v2899
    %2901 = vmatprep.mubr.bf16.mxu0 0
    %2902 = vmatmul.mubr.bf16.gmra.mrb[0].mxu0 %v2751
    %v2903 = vpop.f32.mrb[0].mxu0
    %v2904 = vadd.f32 0.0, %v2903
    %v2905 = vpop.f32.mrb[0].mxu0
    %v2906 = vadd.f32 0.0, %v2905
    %v2907 = vpop.f32.mrb[0].mxu0
    %v2908 = vadd.f32 0.0, %v2907
    %v2909 = vpop.f32.mrb[0].mxu0
    %v2910 = vadd.f32 0.0, %v2909
    %2911 = vdwg.mxu0
    %2912 = vrot.lane.b32.xlu0 %v2670, 19
    %v2913 = vpop.permute.xlu0 %2912
    %2914 = vrot.lane.b32.xlu0 %v2671, 19
    %v2915 = vpop.permute.xlu0 %2914
    %2916 = vrot.lane.b32.xlu0 %v2672, 19
    %v2917 = vpop.permute.xlu0 %2916
    %2918 = vrot.lane.b32.xlu0 %v2673, 19
    %v2919 = vpop.permute.xlu0 %2918
    %2920 = vrot.lane.b32.xlu0 %v2674, 19
    %v2921 = vpop.permute.xlu0 %2920
    %2922 = vrot.lane.b32.xlu0 %v2675, 19
    %v2923 = vpop.permute.xlu0 %2922
    %2924 = vrot.lane.b32.xlu0 %v2676, 19
    %v2925 = vpop.permute.xlu0 %2924
    %2926 = vrot.lane.b32.xlu0 %v2677, 19
    %v2927 = vpop.permute.xlu0 %2926
    %2928 = vrot.lane.b32.xlu0 %v2678, 19
    %v2929 = vpop.permute.xlu0 %2928
    %2930 = vrot.lane.b32.xlu0 %v2679, 19
    %v2931 = vpop.permute.xlu0 %2930
    %2932 = vrot.lane.b32.xlu0 %v2680, 19
    %v2933 = vpop.permute.xlu0 %2932
    %2934 = vrot.lane.b32.xlu0 %v2681, 19
    %v2935 = vpop.permute.xlu0 %2934
    %v2936 = vsel %vm511, %v2913, %v2915
    %v2937 = vsel %vm511, %v2915, %v2917
    %v2938 = vsel %vm511, %v2917, %v2919
    %v2939 = vsel %vm511, %v2919, %v2921
    %v2940 = vsel %vm511, %v2921, %v2923
    %v2941 = vsel %vm511, %v2925, %v2927
    %v2942 = vsel %vm511, %v2927, %v2929
    %v2943 = vsel %vm511, %v2929, %v2931
    %v2944 = vsel %vm511, %v2931, %v2933
    %v2945 = vsel %vm511, %v2933, %v2935
    %v2959 = vsel %vm2746, %v2644, 0
    %v2962 = vsel %vm2746, %v2645, 0
    %2964 = vmatprep.subr.bf16.mxu0 %v2937
    %2965 = vmatpush1.bf16.msra.mxu0 %v2936
    %2966 = vmatprep.subr.bf16.mxu0 %v2942
    %2967 = vmatpush1.bf16.msra.mxu0 %v2941
    %2968 = vmatprep.subr.bf16.mxu0 0
    %2969 = vmatpush1.bf16.msra.mxu0 0
    %2970 = vmatprep.subr.bf16.mxu0 0
    %2971 = vmatpush1.bf16.msra.mxu0 0
    %2972 = vmatprep.subr.bf16.mxu0 0
    %2973 = vmatpush1.bf16.msra.mxu0 0
    %2974 = vmatprep.subr.bf16.mxu0 0
    %2975 = vmatpush1.bf16.msra.mxu0 0
    %2976 = vmatprep.subr.bf16.mxu0 0
    %2977 = vmatpush1.bf16.msra.mxu0 0
    %2978 = vmatprep.subr.bf16.mxu0 0
    %2979 = vmatpush1.bf16.msra.mxu0 0
    %2980 = vmatprep.subr.bf16.mxu0 0
    %2981 = vmatpush1.bf16.msra.mxu0 0
    %2982 = vmatprep.subr.bf16.mxu0 0
    %2983 = vmatpush1.bf16.msra.mxu0 0
    %2984 = vmatprep.subr.bf16.mxu0 0
    %2985 = vmatpush1.bf16.msra.mxu0 0
    %2986 = vmatprep.subr.bf16.mxu0 0
    %2987 = vmatpush1.bf16.msra.mxu0 0
    %2988 = vmatprep.subr.bf16.mxu0 0
    %2989 = vmatpush1.bf16.msra.mxu0 0
    %2990 = vmatprep.subr.bf16.mxu0 0
    %2991 = vmatpush1.bf16.msra.mxu0 0
    %2992 = vmatprep.subr.bf16.mxu0 0
    %2993 = vmatpush1.bf16.msra.mxu0 0
    %2994 = vmatprep.subr.bf16.mxu0 0
    %2995 = vmatpush1.bf16.msra.mxu0 0
    %2996 = vmatprep.mubr.bf16.mxu0 0
    %2997 = vmatmul.mubr.bf16.gmra.mrb[0].mxu0 %v2959
    %v2998 = vpop.f32.mrb[0].mxu0
    %v2999 = vadd.f32 %v2788, %v2998
    %v3000 = vpop.f32.mrb[0].mxu0
    %v3001 = vadd.f32 %v2790, %v3000
    %v3002 = vpop.f32.mrb[0].mxu0
    %v3003 = vadd.f32 %v2792, %v3002
    %v3004 = vpop.f32.mrb[0].mxu0
    %v3005 = vadd.f32 %v2794, %v3004
    %3006 = vmatprep.mubr.bf16.mxu0 0
    %3007 = vmatmul.mubr.bf16.gmra.mrb[0].mxu0 %v2962
    %v3008 = vpop.f32.mrb[0].mxu0
    %v3009 = vadd.f32 %v2798, %v3008
    %v3010 = vpop.f32.mrb[0].mxu0
    %v3011 = vadd.f32 %v2800, %v3010
    %v3012 = vpop.f32.mrb[0].mxu0
    %v3013 = vadd.f32 %v2802, %v3012
    %v3014 = vpop.f32.mrb[0].mxu0
    %v3015 = vadd.f32 %v2804, %v3014
    %3016 = vdwg.mxu0
    %3017 = vmatprep.subr.bf16.mxu0 %v2939
    %3018 = vmatpush1.bf16.msra.mxu0 %v2938
    %3019 = vmatprep.subr.bf16.mxu0 %v2944
    %3020 = vmatpush1.bf16.msra.mxu0 %v2943
    %3021 = vmatprep.subr.bf16.mxu0 0
    %3022 = vmatpush1.bf16.msra.mxu0 0
    %3023 = vmatprep.subr.bf16.mxu0 0
    %3024 = vmatpush1.bf16.msra.mxu0 0
    %3025 = vmatprep.subr.bf16.mxu0 0
    %3026 = vmatpush1.bf16.msra.mxu0 0
    %3027 = vmatprep.subr.bf16.mxu0 0
    %3028 = vmatpush1.bf16.msra.mxu0 0
    %3029 = vmatprep.subr.bf16.mxu0 0
    %3030 = vmatpush1.bf16.msra.mxu0 0
    %3031 = vmatprep.subr.bf16.mxu0 0
    %3032 = vmatpush1.bf16.msra.mxu0 0
    %3033 = vmatprep.subr.bf16.mxu0 0
    %3034 = vmatpush1.bf16.msra.mxu0 0
    %3035 = vmatprep.subr.bf16.mxu0 0
    %3036 = vmatpush1.bf16.msra.mxu0 0
    %3037 = vmatprep.subr.bf16.mxu0 0
    %3038 = vmatpush1.bf16.msra.mxu0 0
    %3039 = vmatprep.subr.bf16.mxu0 0
    %3040 = vmatpush1.bf16.msra.mxu0 0
    %3041 = vmatprep.subr.bf16.mxu0 0
    %3042 = vmatpush1.bf16.msra.mxu0 0
    %3043 = vmatprep.subr.bf16.mxu0 0
    %3044 = vmatpush1.bf16.msra.mxu0 0
    %3045 = vmatprep.subr.bf16.mxu0 0
    %3046 = vmatpush1.bf16.msra.mxu0 0
    %3047 = vmatprep.subr.bf16.mxu0 0
    %3048 = vmatpush1.bf16.msra.mxu0 0
    %3049 = vmatprep.mubr.bf16.mxu0 0
    %3050 = vmatmul.mubr.bf16.gmra.mrb[0].mxu0 %v2959
    %v3051 = vpop.f32.mrb[0].mxu0
    %v3052 = vadd.f32 %v2841, %v3051
    %v3053 = vpop.f32.mrb[0].mxu0
    %v3054 = vadd.f32 %v2843, %v3053
    %v3055 = vpop.f32.mrb[0].mxu0
    %v3056 = vadd.f32 %v2845, %v3055
    %v3057 = vpop.f32.mrb[0].mxu0
    %v3058 = vadd.f32 %v2847, %v3057
    %3059 = vmatprep.mubr.bf16.mxu0 0
    %3060 = vmatmul.mubr.bf16.gmra.mrb[0].mxu0 %v2962
    %v3061 = vpop.f32.mrb[0].mxu0
    %v3062 = vadd.f32 %v2851, %v3061
    %v3063 = vpop.f32.mrb[0].mxu0
    %v3064 = vadd.f32 %v2853, %v3063
    %v3065 = vpop.f32.mrb[0].mxu0
    %v3066 = vadd.f32 %v2855, %v3065
    %v3067 = vpop.f32.mrb[0].mxu0
    %v3068 = vadd.f32 %v2857, %v3067
    %3069 = vdwg.mxu0
    %3070 = vmatprep.subr.bf16.mxu0 %v2923
    %3071 = vmatpush1.bf16.msra.mxu0 %v2940
    %3072 = vmatprep.subr.bf16.mxu0 %v2935
    %3073 = vmatpush1.bf16.msra.mxu0 %v2945
    %3074 = vmatprep.subr.bf16.mxu0 0
    %3075 = vmatpush1.bf16.msra.mxu0 0
    %3076 = vmatprep.subr.bf16.mxu0 0
    %3077 = vmatpush1.bf16.msra.mxu0 0
    %3078 = vmatprep.subr.bf16.mxu0 0
    %3079 = vmatpush1.bf16.msra.mxu0 0
    %3080 = vmatprep.subr.bf16.mxu0 0
    %3081 = vmatpush1.bf16.msra.mxu0 0
    %3082 = vmatprep.subr.bf16.mxu0 0
    %3083 = vmatpush1.bf16.msra.mxu0 0
    %3084 = vmatprep.subr.bf16.mxu0 0
    %3085 = vmatpush1.bf16.msra.mxu0 0
    %3086 = vmatprep.subr.bf16.mxu0 0
    %3087 = vmatpush1.bf16.msra.mxu0 0
    %3088 = vmatprep.subr.bf16.mxu0 0
    %3089 = vmatpush1.bf16.msra.mxu0 0
    %3090 = vmatprep.subr.bf16.mxu0 0
    %3091 = vmatpush1.bf16.msra.mxu0 0
    %3092 = vmatprep.subr.bf16.mxu0 0
    %3093 = vmatpush1.bf16.msra.mxu0 0
    %3094 = vmatprep.subr.bf16.mxu0 0
    %3095 = vmatpush1.bf16.msra.mxu0 0
    %3096 = vmatprep.subr.bf16.mxu0 0
    %3097 = vmatpush1.bf16.msra.mxu0 0
    %3098 = vmatprep.subr.bf16.mxu0 0
    %3099 = vmatpush1.bf16.msra.mxu0 0
    %3100 = vmatprep.subr.bf16.mxu0 0
    %3101 = vmatpush1.bf16.msra.mxu0 0
    %3102 = vmatprep.mubr.bf16.mxu0 0
    %3103 = vmatmul.mubr.bf16.gmra.mrb[0].mxu0 %v2959
    %v3104 = vpop.f32.mrb[0].mxu0
    %v3105 = vadd.f32 %v2894, %v3104
    %v3106 = vpop.f32.mrb[0].mxu0
    %v3107 = vadd.f32 %v2896, %v3106
    %v3108 = vpop.f32.mrb[0].mxu0
    %v3109 = vadd.f32 %v2898, %v3108
    %v3110 = vpop.f32.mrb[0].mxu0
    %v3111 = vadd.f32 %v2900, %v3110
    %3112 = vmatprep.mubr.bf16.mxu0 0
    %3113 = vmatmul.mubr.bf16.gmra.mrb[0].mxu0 %v2962
    %v3114 = vpop.f32.mrb[0].mxu0
    %v3115 = vadd.f32 %v2904, %v3114
    %v3116 = vpop.f32.mrb[0].mxu0
    %v3117 = vadd.f32 %v2906, %v3116
    %v3118 = vpop.f32.mrb[0].mxu0
    %v3119 = vadd.f32 %v2908, %v3118
    %v3120 = vpop.f32.mrb[0].mxu0
    %v3121 = vadd.f32 %v2910, %v3120
    %3122 = vdwg.mxu0
    %v3123 = vld [vmem:[%s8 + $0x40] sm:$0xff]
    %v3124 = vld [vmem:[%s8 + $0x48] sm:$0xff]
    %v3125 = vld [vmem:[%s8 + $0x50] sm:$0xff]
    %v3126 = vld [vmem:[%s8 + $0x58] sm:$0xff]
    %v3127 = vpack.c.bf16 %v3124, %v3123
    %v3128 = vpack.c.bf16 %v3126, %v3125
    %3129 = vrot.lane.b32.xlu0 %v2670, 17
    %v3130 = vpop.permute.xlu0 %3129
    %3131 = vrot.lane.b32.xlu0 %v2671, 17
    %v3132 = vpop.permute.xlu0 %3131
    %3133 = vrot.lane.b32.xlu0 %v2672, 17
    %v3134 = vpop.permute.xlu0 %3133
    %3135 = vrot.lane.b32.xlu0 %v2673, 17
    %v3136 = vpop.permute.xlu0 %3135
    %3137 = vrot.lane.b32.xlu0 %v2674, 17
    %v3138 = vpop.permute.xlu0 %3137
    %3139 = vrot.lane.b32.xlu0 %v2675, 17
    %v3140 = vpop.permute.xlu0 %3139
    %3141 = vrot.lane.b32.xlu0 %v2676, 17
    %v3142 = vpop.permute.xlu0 %3141
    %3143 = vrot.lane.b32.xlu0 %v2677, 17
    %v3144 = vpop.permute.xlu0 %3143
    %3145 = vrot.lane.b32.xlu0 %v2678, 17
    %v3146 = vpop.permute.xlu0 %3145
    %3147 = vrot.lane.b32.xlu0 %v2679, 17
    %v3148 = vpop.permute.xlu0 %3147
    %3149 = vrot.lane.b32.xlu0 %v2680, 17
    %v3150 = vpop.permute.xlu0 %3149
    %3151 = vrot.lane.b32.xlu0 %v2681, 17
    %v3152 = vpop.permute.xlu0 %3151
    %v3153 = vsel %vm706, %v3130, %v3132
    %v3154 = vsel %vm706, %v3132, %v3134
    %v3155 = vsel %vm706, %v3134, %v3136
    %v3156 = vsel %vm706, %v3136, %v3138
    %v3157 = vsel %vm706, %v3138, %v3140
    %v3158 = vsel %vm706, %v3142, %v3144
    %v3159 = vsel %vm706, %v3144, %v3146
    %v3160 = vsel %vm706, %v3146, %v3148
    %v3161 = vsel %vm706, %v3148, %v3150
    %v3162 = vsel %vm706, %v3150, %v3152
    %v3176 = vsel %vm2746, %v3127, 0
    %v3179 = vsel %vm2746, %v3128, 0
    %3181 = vmatprep.subr.bf16.mxu0 %v3154
    %3182 = vmatpush1.bf16.msra.mxu0 %v3153
    %3183 = vmatprep.subr.bf16.mxu0 %v3159
    %3184 = vmatpush1.bf16.msra.mxu0 %v3158
    %3185 = vmatprep.subr.bf16.mxu0 0
    %3186 = vmatpush1.bf16.msra.mxu0 0
    %3187 = vmatprep.subr.bf16.mxu0 0
    %3188 = vmatpush1.bf16.msra.mxu0 0
    %3189 = vmatprep.subr.bf16.mxu0 0
    %3190 = vmatpush1.bf16.msra.mxu0 0
    %3191 = vmatprep.subr.bf16.mxu0 0
    %3192 = vmatpush1.bf16.msra.mxu0 0
    %3193 = vmatprep.subr.bf16.mxu0 0
    %3194 = vmatpush1.bf16.msra.mxu0 0
    %3195 = vmatprep.subr.bf16.mxu0 0
    %3196 = vmatpush1.bf16.msra.mxu0 0
    %3197 = vmatprep.subr.bf16.mxu0 0
    %3198 = vmatpush1.bf16.msra.mxu0 0
    %3199 = vmatprep.subr.bf16.mxu0 0
    %3200 = vmatpush1.bf16.msra.mxu0 0
    %3201 = vmatprep.subr.bf16.mxu0 0
    %3202 = vmatpush1.bf16.msra.mxu0 0
    %3203 = vmatprep.subr.bf16.mxu0 0
    %3204 = vmatpush1.bf16.msra.mxu0 0
    %3205 = vmatprep.subr.bf16.mxu0 0
    %3206 = vmatpush1.bf16.msra.mxu0 0
    %3207 = vmatprep.subr.bf16.mxu0 0
    %3208 = vmatpush1.bf16.msra.mxu0 0
    %3209 = vmatprep.subr.bf16.mxu0 0
    %3210 = vmatpush1.bf16.msra.mxu0 0
    %3211 = vmatprep.subr.bf16.mxu0 0
    %3212 = vmatpush1.bf16.msra.mxu0 0
    %3213 = vmatprep.mubr.bf16.mxu0 0
    %3214 = vmatmul.mubr.bf16.gmra.mrb[0].mxu0 %v3176
    %v3215 = vpop.f32.mrb[0].mxu0
    %v3216 = vadd.f32 0.0, %v3215
    %v3217 = vpop.f32.mrb[0].mxu0
    %v3218 = vadd.f32 0.0, %v3217
    %v3219 = vpop.f32.mrb[0].mxu0
    %v3220 = vadd.f32 0.0, %v3219
    %v3221 = vpop.f32.mrb[0].mxu0
    %v3222 = vadd.f32 0.0, %v3221
    %3223 = vmatprep.mubr.bf16.mxu0 0
    %3224 = vmatmul.mubr.bf16.gmra.mrb[0].mxu0 %v3179
    %v3225 = vpop.f32.mrb[0].mxu0
    %v3226 = vadd.f32 0.0, %v3225
    %v3227 = vpop.f32.mrb[0].mxu0
    %v3228 = vadd.f32 0.0, %v3227
    %v3229 = vpop.f32.mrb[0].mxu0
    %v3230 = vadd.f32 0.0, %v3229
    %v3231 = vpop.f32.mrb[0].mxu0
    %v3232 = vadd.f32 0.0, %v3231
    %3233 = vdwg.mxu0
    %3234 = vmatprep.subr.bf16.mxu0 %v3156
    %3235 = vmatpush1.bf16.msra.mxu0 %v3155
    %3236 = vmatprep.subr.bf16.mxu0 %v3161
    %3237 = vmatpush1.bf16.msra.mxu0 %v3160
    %3238 = vmatprep.subr.bf16.mxu0 0
    %3239 = vmatpush1.bf16.msra.mxu0 0
    %3240 = vmatprep.subr.bf16.mxu0 0
    %3241 = vmatpush1.bf16.msra.mxu0 0
    %3242 = vmatprep.subr.bf16.mxu0 0
    %3243 = vmatpush1.bf16.msra.mxu0 0
    %3244 = vmatprep.subr.bf16.mxu0 0
    %3245 = vmatpush1.bf16.msra.mxu0 0
    %3246 = vmatprep.subr.bf16.mxu0 0
    %3247 = vmatpush1.bf16.msra.mxu0 0
    %3248 = vmatprep.subr.bf16.mxu0 0
    %3249 = vmatpush1.bf16.msra.mxu0 0
    %3250 = vmatprep.subr.bf16.mxu0 0
    %3251 = vmatpush1.bf16.msra.mxu0 0
    %3252 = vmatprep.subr.bf16.mxu0 0
    %3253 = vmatpush1.bf16.msra.mxu0 0
    %3254 = vmatprep.subr.bf16.mxu0 0
    %3255 = vmatpush1.bf16.msra.mxu0 0
    %3256 = vmatprep.subr.bf16.mxu0 0
    %3257 = vmatpush1.bf16.msra.mxu0 0
    %3258 = vmatprep.subr.bf16.mxu0 0
    %3259 = vmatpush1.bf16.msra.mxu0 0
    %3260 = vmatprep.subr.bf16.mxu0 0
    %3261 = vmatpush1.bf16.msra.mxu0 0
    %3262 = vmatprep.subr.bf16.mxu0 0
    %3263 = vmatpush1.bf16.msra.mxu0 0
    %3264 = vmatprep.subr.bf16.mxu0 0
    %3265 = vmatpush1.bf16.msra.mxu0 0
    %3266 = vmatprep.mubr.bf16.mxu0 0
    %3267 = vmatmul.mubr.bf16.gmra.mrb[0].mxu0 %v3176
    %v3268 = vpop.f32.mrb[0].mxu0
    %v3269 = vadd.f32 0.0, %v3268
    %v3270 = vpop.f32.mrb[0].mxu0
    %v3271 = vadd.f32 0.0, %v3270
    %v3272 = vpop.f32.mrb[0].mxu0
    %v3273 = vadd.f32 0.0, %v3272
    %v3274 = vpop.f32.mrb[0].mxu0
    %v3275 = vadd.f32 0.0, %v3274
    %3276 = vmatprep.mubr.bf16.mxu0 0
    %3277 = vmatmul.mubr.bf16.gmra.mrb[0].mxu0 %v3179
    %v3278 = vpop.f32.mrb[0].mxu0
    %v3279 = vadd.f32 0.0, %v3278
    %v3280 = vpop.f32.mrb[0].mxu0
    %v3281 = vadd.f32 0.0, %v3280
    %v3282 = vpop.f32.mrb[0].mxu0
    %v3283 = vadd.f32 0.0, %v3282
    %v3284 = vpop.f32.mrb[0].mxu0
    %v3285 = vadd.f32 0.0, %v3284
    %3286 = vdwg.mxu0
    %3287 = vmatprep.subr.bf16.mxu0 %v3140
    %3288 = vmatpush1.bf16.msra.mxu0 %v3157
    %3289 = vmatprep.subr.bf16.mxu0 %v3152
    %3290 = vmatpush1.bf16.msra.mxu0 %v3162
    %3291 = vmatprep.subr.bf16.mxu0 0
    %3292 = vmatpush1.bf16.msra.mxu0 0
    %3293 = vmatprep.subr.bf16.mxu0 0
    %3294 = vmatpush1.bf16.msra.mxu0 0
    %3295 = vmatprep.subr.bf16.mxu0 0
    %3296 = vmatpush1.bf16.msra.mxu0 0
    %3297 = vmatprep.subr.bf16.mxu0 0
    %3298 = vmatpush1.bf16.msra.mxu0 0
    %3299 = vmatprep.subr.bf16.mxu0 0
    %3300 = vmatpush1.bf16.msra.mxu0 0
    %3301 = vmatprep.subr.bf16.mxu0 0
    %3302 = vmatpush1.bf16.msra.mxu0 0
    %3303 = vmatprep.subr.bf16.mxu0 0
    %3304 = vmatpush1.bf16.msra.mxu0 0
    %3305 = vmatprep.subr.bf16.mxu0 0
    %3306 = vmatpush1.bf16.msra.mxu0 0
    %3307 = vmatprep.subr.bf16.mxu0 0
    %3308 = vmatpush1.bf16.msra.mxu0 0
    %3309 = vmatprep.subr.bf16.mxu0 0
    %3310 = vmatpush1.bf16.msra.mxu0 0
    %3311 = vmatprep.subr.bf16.mxu0 0
    %3312 = vmatpush1.bf16.msra.mxu0 0
    %3313 = vmatprep.subr.bf16.mxu0 0
    %3314 = vmatpush1.bf16.msra.mxu0 0
    %3315 = vmatprep.subr.bf16.mxu0 0
    %3316 = vmatpush1.bf16.msra.mxu0 0
    %3317 = vmatprep.subr.bf16.mxu0 0
    %3318 = vmatpush1.bf16.msra.mxu0 0
    %3319 = vmatprep.mubr.bf16.mxu0 0
    %3320 = vmatmul.mubr.bf16.gmra.mrb[0].mxu0 %v3176
    %v3321 = vpop.f32.mrb[0].mxu0
    %v3322 = vadd.f32 0.0, %v3321
    %v3323 = vpop.f32.mrb[0].mxu0
    %v3324 = vadd.f32 0.0, %v3323
    %v3325 = vpop.f32.mrb[0].mxu0
    %v3326 = vadd.f32 0.0, %v3325
    %v3327 = vpop.f32.mrb[0].mxu0
    %v3328 = vadd.f32 0.0, %v3327
    %3329 = vmatprep.mubr.bf16.mxu0 0
    %3330 = vmatmul.mubr.bf16.gmra.mrb[0].mxu0 %v3179
    %v3331 = vpop.f32.mrb[0].mxu0
    %v3332 = vadd.f32 0.0, %v3331
    %v3333 = vpop.f32.mrb[0].mxu0
    %v3334 = vadd.f32 0.0, %v3333
    %v3335 = vpop.f32.mrb[0].mxu0
    %v3336 = vadd.f32 0.0, %v3335
    %v3337 = vpop.f32.mrb[0].mxu0
    %v3338 = vadd.f32 0.0, %v3337
    %3339 = vdwg.mxu0
    %v3340 = vadd.f32 %v2999, %v3216
    %v3341 = vadd.f32 %v3001, %v3218
    %v3342 = vadd.f32 %v3052, %v3269
    %v3343 = vadd.f32 %v3054, %v3271
    %v3344 = vadd.f32 %v3105, %v3322
    %v3345 = vadd.f32 %v3107, %v3324
    %v3346 = vadd.f32 %v3003, %v3220
    %v3347 = vadd.f32 %v3005, %v3222
    %v3348 = vadd.f32 %v3056, %v3273
    %v3349 = vadd.f32 %v3058, %v3275
    %v3350 = vadd.f32 %v3109, %v3326
    %v3351 = vadd.f32 %v3111, %v3328
    %v3352 = vadd.f32 %v3009, %v3226
    %v3353 = vadd.f32 %v3011, %v3228
    %v3354 = vadd.f32 %v3062, %v3279
    %v3355 = vadd.f32 %v3064, %v3281
    %v3356 = vadd.f32 %v3115, %v3332
    %v3357 = vadd.f32 %v3117, %v3334
    %v3358 = vadd.f32 %v3013, %v3230
    %v3359 = vadd.f32 %v3015, %v3232
    %v3360 = vadd.f32 %v3066, %v3283
    %v3361 = vadd.f32 %v3068, %v3285
    %v3362 = vadd.f32 %v3119, %v3336
    %v3363 = vadd.f32 %v3121, %v3338
    %v3364 = vld [vmem:[%s8 + $0x60] sm:$0xff]
    %v3365 = vld [vmem:[%s8 + $0x68] sm:$0xff]
    %v3366 = vld [vmem:[%s8 + $0x70] sm:$0xff]
    %v3367 = vld [vmem:[%s8 + $0x78] sm:$0xff]
    %v3368 = vpack.c.bf16 %v3365, %v3364
    %v3369 = vpack.c.bf16 %v3367, %v3366
    %v3370 = vld [vmem:[#allocation3] sm:$0xff]
    %v3371 = vld [vmem:[#allocation3 + $0x8] sm:$0xff]
    %v3372 = vld [vmem:[#allocation3 + $0x10] sm:$0xff]
    %v3373 = vld [vmem:[#allocation3 + $0x18] sm:$0xff]
    %v3374 = vld [vmem:[#allocation3 + $0x20] sm:$0xff]
    %v3375 = vld [vmem:[#allocation3 + $0x28] sm:$0xff]
    %v3376 = vld [vmem:[#allocation3 + $0x30] sm:$0xff]
    %v3377 = vld [vmem:[#allocation3 + $0x40] sm:$0xff]
    %v3378 = vld [vmem:[#allocation3 + $0x48] sm:$0xff]
    %v3379 = vld [vmem:[#allocation3 + $0x50] sm:$0xff]
    %v3380 = vld [vmem:[#allocation3 + $0x58] sm:$0xff]
    %v3381 = vld [vmem:[#allocation3 + $0x60] sm:$0xff]
    %v3382 = vld [vmem:[#allocation3 + $0x68] sm:$0xff]
    %v3383 = vld [vmem:[#allocation3 + $0x70] sm:$0xff]
    %v3384 = vld [vmem:[#allocation3 + $0x80] sm:$0xff]
    %v3385 = vld [vmem:[#allocation3 + $0x88] sm:$0xff]
    %v3386 = vld [vmem:[#allocation3 + $0x90] sm:$0xff]
    %v3387 = vld [vmem:[#allocation3 + $0x98] sm:$0xff]
    %v3388 = vld [vmem:[#allocation3 + $0xa0] sm:$0xff]
    %v3389 = vld [vmem:[#allocation3 + $0xa8] sm:$0xff]
    %v3390 = vld [vmem:[#allocation3 + $0xb0] sm:$0xff]
    %v3391 = vld [vmem:[#allocation3 + $0xc0] sm:$0xff]
    %v3392 = vld [vmem:[#allocation3 + $0xc8] sm:$0xff]
    %v3393 = vld [vmem:[#allocation3 + $0xd0] sm:$0xff]
    %v3394 = vld [vmem:[#allocation3 + $0xd8] sm:$0xff]
    %v3395 = vld [vmem:[#allocation3 + $0xe0] sm:$0xff]
    %v3396 = vld [vmem:[#allocation3 + $0xe8] sm:$0xff]
    %v3397 = vld [vmem:[#allocation3 + $0xf0] sm:$0xff]
    %v3398 = vpack.c.bf16 %v3377, %v3370
    %v3399 = vpack.c.bf16 %v3378, %v3371
    %v3400 = vpack.c.bf16 %v3379, %v3372
    %v3401 = vpack.c.bf16 %v3380, %v3373
    %v3402 = vpack.c.bf16 %v3381, %v3374
    %v3403 = vpack.c.bf16 %v3382, %v3375
    %v3404 = vpack.c.bf16 %v3383, %v3376
    %v3405 = vpack.c.bf16 %v3391, %v3384
    %v3406 = vpack.c.bf16 %v3392, %v3385
    %v3407 = vpack.c.bf16 %v3393, %v3386
    %v3408 = vpack.c.bf16 %v3394, %v3387
    %v3409 = vpack.c.bf16 %v3395, %v3388
    %v3410 = vpack.c.bf16 %v3396, %v3389
    %v3411 = vpack.c.bf16 %v3397, %v3390
    %3426 = vrot.lane.b32.xlu0 %v3398, 1
    %v3427 = vpop.permute.xlu0 %3426
    %3428 = vrot.lane.b32.xlu0 %v3399, 1
    %v3429 = vpop.permute.xlu0 %3428
    %3430 = vrot.lane.b32.xlu0 %v3400, 1
    %v3431 = vpop.permute.xlu0 %3430
    %3432 = vrot.lane.b32.xlu0 %v3401, 1
    %v3433 = vpop.permute.xlu0 %3432
    %3434 = vrot.lane.b32.xlu0 %v3402, 1
    %v3435 = vpop.permute.xlu0 %3434
    %3436 = vrot.lane.b32.xlu0 %v3403, 1
    %v3437 = vpop.permute.xlu0 %3436
    %3438 = vrot.lane.b32.xlu0 %v3404, 1
    %v3439 = vpop.permute.xlu0 %3438
    %3440 = vrot.lane.b32.xlu0 %v3405, 1
    %v3441 = vpop.permute.xlu0 %3440
    %3442 = vrot.lane.b32.xlu0 %v3406, 1
    %v3443 = vpop.permute.xlu0 %3442
    %3444 = vrot.lane.b32.xlu0 %v3407, 1
    %v3445 = vpop.permute.xlu0 %3444
    %3446 = vrot.lane.b32.xlu0 %v3408, 1
    %v3447 = vpop.permute.xlu0 %3446
    %3448 = vrot.lane.b32.xlu0 %v3409, 1
    %v3449 = vpop.permute.xlu0 %3448
    %3450 = vrot.lane.b32.xlu0 %v3410, 1
    %v3451 = vpop.permute.xlu0 %3450
    %3452 = vrot.lane.b32.xlu0 %v3411, 1
    %v3453 = vpop.permute.xlu0 %3452
    %v3454 = vsel %vm955, %v3427, %v3429
    %v3455 = vsel %vm955, %v3429, %v3431
    %v3456 = vsel %vm955, %v3431, %v3433
    %v3457 = vsel %vm955, %v3433, %v3435
    %v3458 = vsel %vm955, %v3435, %v3437
    %v3459 = vsel %vm955, %v3437, %v3439
    %v3460 = vsel %vm955, %v3441, %v3443
    %v3461 = vsel %vm955, %v3443, %v3445
    %v3462 = vsel %vm955, %v3445, %v3447
    %v3463 = vsel %vm955, %v3447, %v3449
    %v3464 = vsel %vm955, %v3449, %v3451
    %v3465 = vsel %vm955, %v3451, %v3453
    %v3479 = vsel %vm2746, %v3368, 0
    %v3482 = vsel %vm2746, %v3369, 0
    %3484 = vmatprep.subr.bf16.mxu0 %v3455
    %3485 = vmatpush1.bf16.msra.mxu0 %v3454
    %3486 = vmatprep.subr.bf16.mxu0 %v3461
    %3487 = vmatpush1.bf16.msra.mxu0 %v3460
    %3488 = vmatprep.subr.bf16.mxu0 0
    %3489 = vmatpush1.bf16.msra.mxu0 0
    %3490 = vmatprep.subr.bf16.mxu0 0
    %3491 = vmatpush1.bf16.msra.mxu0 0
    %3492 = vmatprep.subr.bf16.mxu0 0
    %3493 = vmatpush1.bf16.msra.mxu0 0
    %3494 = vmatprep.subr.bf16.mxu0 0
    %3495 = vmatpush1.bf16.msra.mxu0 0
    %3496 = vmatprep.subr.bf16.mxu0 0
    %3497 = vmatpush1.bf16.msra.mxu0 0
    %3498 = vmatprep.subr.bf16.mxu0 0
    %3499 = vmatpush1.bf16.msra.mxu0 0
    %3500 = vmatprep.subr.bf16.mxu0 0
    %3501 = vmatpush1.bf16.msra.mxu0 0
    %3502 = vmatprep.subr.bf16.mxu0 0
    %3503 = vmatpush1.bf16.msra.mxu0 0
    %3504 = vmatprep.subr.bf16.mxu0 0
    %3505 = vmatpush1.bf16.msra.mxu0 0
    %3506 = vmatprep.subr.bf16.mxu0 0
    %3507 = vmatpush1.bf16.msra.mxu0 0
    %3508 = vmatprep.subr.bf16.mxu0 0
    %3509 = vmatpush1.bf16.msra.mxu0 0
    %3510 = vmatprep.subr.bf16.mxu0 0
    %3511 = vmatpush1.bf16.msra.mxu0 0
    %3512 = vmatprep.subr.bf16.mxu0 0
    %3513 = vmatpush1.bf16.msra.mxu0 0
    %3514 = vmatprep.subr.bf16.mxu0 0
    %3515 = vmatpush1.bf16.msra.mxu0 0
    %3516 = vmatprep.mubr.bf16.mxu0 0
    %3517 = vmatmul.mubr.bf16.gmra.mrb[0].mxu0 %v3479
    %v3518 = vpop.f32.mrb[0].mxu0
    %v3519 = vadd.f32 0.0, %v3518
    %v3520 = vpop.f32.mrb[0].mxu0
    %v3521 = vadd.f32 0.0, %v3520
    %v3522 = vpop.f32.mrb[0].mxu0
    %v3523 = vadd.f32 0.0, %v3522
    %v3524 = vpop.f32.mrb[0].mxu0
    %v3525 = vadd.f32 0.0, %v3524
    %3526 = vmatprep.mubr.bf16.mxu0 0
    %3527 = vmatmul.mubr.bf16.gmra.mrb[0].mxu0 %v3482
    %v3528 = vpop.f32.mrb[0].mxu0
    %v3529 = vadd.f32 0.0, %v3528
    %v3530 = vpop.f32.mrb[0].mxu0
    %v3531 = vadd.f32 0.0, %v3530
    %v3532 = vpop.f32.mrb[0].mxu0
    %v3533 = vadd.f32 0.0, %v3532
    %v3534 = vpop.f32.mrb[0].mxu0
    %v3535 = vadd.f32 0.0, %v3534
    %3536 = vdwg.mxu0
    %3537 = vmatprep.subr.bf16.mxu0 %v3457
    %3538 = vmatpush1.bf16.msra.mxu0 %v3456
    %3539 = vmatprep.subr.bf16.mxu0 %v3463
    %3540 = vmatpush1.bf16.msra.mxu0 %v3462
    %3541 = vmatprep.subr.bf16.mxu0 0
    %3542 = vmatpush1.bf16.msra.mxu0 0
    %3543 = vmatprep.subr.bf16.mxu0 0
    %3544 = vmatpush1.bf16.msra.mxu0 0
    %3545 = vmatprep.subr.bf16.mxu0 0
    %3546 = vmatpush1.bf16.msra.mxu0 0
    %3547 = vmatprep.subr.bf16.mxu0 0
    %3548 = vmatpush1.bf16.msra.mxu0 0
    %3549 = vmatprep.subr.bf16.mxu0 0
    %3550 = vmatpush1.bf16.msra.mxu0 0
    %3551 = vmatprep.subr.bf16.mxu0 0
    %3552 = vmatpush1.bf16.msra.mxu0 0
    %3553 = vmatprep.subr.bf16.mxu0 0
    %3554 = vmatpush1.bf16.msra.mxu0 0
    %3555 = vmatprep.subr.bf16.mxu0 0
    %3556 = vmatpush1.bf16.msra.mxu0 0
    %3557 = vmatprep.subr.bf16.mxu0 0
    %3558 = vmatpush1.bf16.msra.mxu0 0
    %3559 = vmatprep.subr.bf16.mxu0 0
    %3560 = vmatpush1.bf16.msra.mxu0 0
    %3561 = vmatprep.subr.bf16.mxu0 0
    %3562 = vmatpush1.bf16.msra.mxu0 0
    %3563 = vmatprep.subr.bf16.mxu0 0
    %3564 = vmatpush1.bf16.msra.mxu0 0
    %3565 = vmatprep.subr.bf16.mxu0 0
    %3566 = vmatpush1.bf16.msra.mxu0 0
    %3567 = vmatprep.subr.bf16.mxu0 0
    %3568 = vmatpush1.bf16.msra.mxu0 0
    %3569 = vmatprep.mubr.bf16.mxu0 0
    %3570 = vmatmul.mubr.bf16.gmra.mrb[0].mxu0 %v3479
    %v3571 = vpop.f32.mrb[0].mxu0
    %v3572 = vadd.f32 0.0, %v3571
    %v3573 = vpop.f32.mrb[0].mxu0
    %v3574 = vadd.f32 0.0, %v3573
    %v3575 = vpop.f32.mrb[0].mxu0
    %v3576 = vadd.f32 0.0, %v3575
    %v3577 = vpop.f32.mrb[0].mxu0
    %v3578 = vadd.f32 0.0, %v3577
    %3579 = vmatprep.mubr.bf16.mxu0 0
    %3580 = vmatmul.mubr.bf16.gmra.mrb[0].mxu0 %v3482
    %v3581 = vpop.f32.mrb[0].mxu0
    %v3582 = vadd.f32 0.0, %v3581
    %v3583 = vpop.f32.mrb[0].mxu0
    %v3584 = vadd.f32 0.0, %v3583
    %v3585 = vpop.f32.mrb[0].mxu0
    %v3586 = vadd.f32 0.0, %v3585
    %v3587 = vpop.f32.mrb[0].mxu0
    %v3588 = vadd.f32 0.0, %v3587
    %3589 = vdwg.mxu0
    %3590 = vmatprep.subr.bf16.mxu0 %v3459
    %3591 = vmatpush1.bf16.msra.mxu0 %v3458
    %3592 = vmatprep.subr.bf16.mxu0 %v3465
    %3593 = vmatpush1.bf16.msra.mxu0 %v3464
    %3594 = vmatprep.subr.bf16.mxu0 0
    %3595 = vmatpush1.bf16.msra.mxu0 0
    %3596 = vmatprep.subr.bf16.mxu0 0
    %3597 = vmatpush1.bf16.msra.mxu0 0
    %3598 = vmatprep.subr.bf16.mxu0 0
    %3599 = vmatpush1.bf16.msra.mxu0 0
    %3600 = vmatprep.subr.bf16.mxu0 0
    %3601 = vmatpush1.bf16.msra.mxu0 0
    %3602 = vmatprep.subr.bf16.mxu0 0
    %3603 = vmatpush1.bf16.msra.mxu0 0
    %3604 = vmatprep.subr.bf16.mxu0 0
    %3605 = vmatpush1.bf16.msra.mxu0 0
    %3606 = vmatprep.subr.bf16.mxu0 0
    %3607 = vmatpush1.bf16.msra.mxu0 0
    %3608 = vmatprep.subr.bf16.mxu0 0
    %3609 = vmatpush1.bf16.msra.mxu0 0
    %3610 = vmatprep.subr.bf16.mxu0 0
    %3611 = vmatpush1.bf16.msra.mxu0 0
    %3612 = vmatprep.subr.bf16.mxu0 0
    %3613 = vmatpush1.bf16.msra.mxu0 0
    %3614 = vmatprep.subr.bf16.mxu0 0
    %3615 = vmatpush1.bf16.msra.mxu0 0
    %3616 = vmatprep.subr.bf16.mxu0 0
    %3617 = vmatpush1.bf16.msra.mxu0 0
    %3618 = vmatprep.subr.bf16.mxu0 0
    %3619 = vmatpush1.bf16.msra.mxu0 0
    %3620 = vmatprep.subr.bf16.mxu0 0
    %3621 = vmatpush1.bf16.msra.mxu0 0
    %3622 = vmatprep.mubr.bf16.mxu0 0
    %3623 = vmatmul.mubr.bf16.gmra.mrb[0].mxu0 %v3479
    %v3624 = vpop.f32.mrb[0].mxu0
    %v3625 = vadd.f32 0.0, %v3624
    %v3626 = vpop.f32.mrb[0].mxu0
    %v3627 = vadd.f32 0.0, %v3626
    %v3628 = vpop.f32.mrb[0].mxu0
    %v3629 = vadd.f32 0.0, %v3628
    %v3630 = vpop.f32.mrb[0].mxu0
    %v3631 = vadd.f32 0.0, %v3630
    %3632 = vmatprep.mubr.bf16.mxu0 0
    %3633 = vmatmul.mubr.bf16.gmra.mrb[0].mxu0 %v3482
    %v3634 = vpop.f32.mrb[0].mxu0
    %v3635 = vadd.f32 0.0, %v3634
    %v3636 = vpop.f32.mrb[0].mxu0
    %v3637 = vadd.f32 0.0, %v3636
    %v3638 = vpop.f32.mrb[0].mxu0
    %v3639 = vadd.f32 0.0, %v3638
    %v3640 = vpop.f32.mrb[0].mxu0
    %v3641 = vadd.f32 0.0, %v3640
    %3642 = vdwg.mxu0
    %v3643 = vadd.f32 %v3340, %v3519
    %v3644 = vadd.f32 %v3341, %v3521
    %v3645 = vadd.f32 %v3342, %v3572
    %v3646 = vadd.f32 %v3343, %v3574
    %v3647 = vadd.f32 %v3344, %v3625
    %v3648 = vadd.f32 %v3345, %v3627
    %v3649 = vadd.f32 %v3346, %v3523
    %v3650 = vadd.f32 %v3347, %v3525
    %v3651 = vadd.f32 %v3348, %v3576
    %v3652 = vadd.f32 %v3349, %v3578
    %v3653 = vadd.f32 %v3350, %v3629
    %v3654 = vadd.f32 %v3351, %v3631
    %v3655 = vadd.f32 %v3352, %v3529
    %v3656 = vadd.f32 %v3353, %v3531
    %v3657 = vadd.f32 %v3354, %v3582
    %v3658 = vadd.f32 %v3355, %v3584
    %v3659 = vadd.f32 %v3356, %v3635
    %v3660 = vadd.f32 %v3357, %v3637
    %v3661 = vadd.f32 %v3358, %v3533
    %v3662 = vadd.f32 %v3359, %v3535
    %v3663 = vadd.f32 %v3360, %v3586
    %v3664 = vadd.f32 %v3361, %v3588
    %v3665 = vadd.f32 %v3362, %v3639
    %v3666 = vadd.f32 %v3363, %v3641
    %v3667 = vld [vmem:[%s8 + $0x80] sm:$0xff]
    %v3668 = vld [vmem:[%s8 + $0x88] sm:$0xff]
    %v3669 = vld [vmem:[%s8 + $0x90] sm:$0xff]
    %v3670 = vld [vmem:[%s8 + $0x98] sm:$0xff]
    %v3671 = vpack.c.bf16 %v3668, %v3667
    %v3672 = vpack.c.bf16 %v3670, %v3669
    %v3674 = vsel %vm2746, %v3671, 0
    %v3677 = vsel %vm2746, %v3672, 0
    %3679 = vmatprep.subr.bf16.mxu0 %v3400
    %3680 = vmatpush1.bf16.msra.mxu0 %v3399
    %3681 = vmatprep.subr.bf16.mxu0 %v3407
    %3682 = vmatpush1.bf16.msra.mxu0 %v3406
    %3683 = vmatprep.subr.bf16.mxu0 0
    %3684 = vmatpush1.bf16.msra.mxu0 0
    %3685 = vmatprep.subr.bf16.mxu0 0
    %3686 = vmatpush1.bf16.msra.mxu0 0
    %3687 = vmatprep.subr.bf16.mxu0 0
    %3688 = vmatpush1.bf16.msra.mxu0 0
    %3689 = vmatprep.subr.bf16.mxu0 0
    %3690 = vmatpush1.bf16.msra.mxu0 0
    %3691 = vmatprep.subr.bf16.mxu0 0
    %3692 = vmatpush1.bf16.msra.mxu0 0
    %3693 = vmatprep.subr.bf16.mxu0 0
    %3694 = vmatpush1.bf16.msra.mxu0 0
    %3695 = vmatprep.subr.bf16.mxu0 0
    %3696 = vmatpush1.bf16.msra.mxu0 0
    %3697 = vmatprep.subr.bf16.mxu0 0
    %3698 = vmatpush1.bf16.msra.mxu0 0
    %3699 = vmatprep.subr.bf16.mxu0 0
    %3700 = vmatpush1.bf16.msra.mxu0 0
    %3701 = vmatprep.subr.bf16.mxu0 0
    %3702 = vmatpush1.bf16.msra.mxu0 0
    %3703 = vmatprep.subr.bf16.mxu0 0
    %3704 = vmatpush1.bf16.msra.mxu0 0
    %3705 = vmatprep.subr.bf16.mxu0 0
    %3706 = vmatpush1.bf16.msra.mxu0 0
    %3707 = vmatprep.subr.bf16.mxu0 0
    %3708 = vmatpush1.bf16.msra.mxu0 0
    %3709 = vmatprep.subr.bf16.mxu0 0
    %3710 = vmatpush1.bf16.msra.mxu0 0
    %3711 = vmatprep.mubr.bf16.mxu0 0
    %3712 = vmatmul.mubr.bf16.gmra.mrb[0].mxu0 %v3674
    %v3713 = vpop.f32.mrb[0].mxu0
    %v3714 = vadd.f32 0.0, %v3713
    %v3715 = vpop.f32.mrb[0].mxu0
    %v3716 = vadd.f32 0.0, %v3715
    %v3717 = vpop.f32.mrb[0].mxu0
    %v3718 = vadd.f32 0.0, %v3717
    %v3719 = vpop.f32.mrb[0].mxu0
    %v3720 = vadd.f32 0.0, %v3719
    %3721 = vmatprep.mubr.bf16.mxu0 0
    %3722 = vmatmul.mubr.bf16.gmra.mrb[0].mxu0 %v3677
    %v3723 = vpop.f32.mrb[0].mxu0
    %v3724 = vadd.f32 0.0, %v3723
    %v3725 = vpop.f32.mrb[0].mxu0
    %v3726 = vadd.f32 0.0, %v3725
    %v3727 = vpop.f32.mrb[0].mxu0
    %v3728 = vadd.f32 0.0, %v3727
    %v3729 = vpop.f32.mrb[0].mxu0
    %v3730 = vadd.f32 0.0, %v3729
    %3731 = vdwg.mxu0
    %3732 = vmatprep.subr.bf16.mxu0 %v3402
    %3733 = vmatpush1.bf16.msra.mxu0 %v3401
    %3734 = vmatprep.subr.bf16.mxu0 %v3409
    %3735 = vmatpush1.bf16.msra.mxu0 %v3408
    %3736 = vmatprep.subr.bf16.mxu0 0
    %3737 = vmatpush1.bf16.msra.mxu0 0
    %3738 = vmatprep.subr.bf16.mxu0 0
    %3739 = vmatpush1.bf16.msra.mxu0 0
    %3740 = vmatprep.subr.bf16.mxu0 0
    %3741 = vmatpush1.bf16.msra.mxu0 0
    %3742 = vmatprep.subr.bf16.mxu0 0
    %3743 = vmatpush1.bf16.msra.mxu0 0
    %3744 = vmatprep.subr.bf16.mxu0 0
    %3745 = vmatpush1.bf16.msra.mxu0 0
    %3746 = vmatprep.subr.bf16.mxu0 0
    %3747 = vmatpush1.bf16.msra.mxu0 0
    %3748 = vmatprep.subr.bf16.mxu0 0
    %3749 = vmatpush1.bf16.msra.mxu0 0
    %3750 = vmatprep.subr.bf16.mxu0 0
    %3751 = vmatpush1.bf16.msra.mxu0 0
    %3752 = vmatprep.subr.bf16.mxu0 0
    %3753 = vmatpush1.bf16.msra.mxu0 0
    %3754 = vmatprep.subr.bf16.mxu0 0
    %3755 = vmatpush1.bf16.msra.mxu0 0
    %3756 = vmatprep.subr.bf16.mxu0 0
    %3757 = vmatpush1.bf16.msra.mxu0 0
    %3758 = vmatprep.subr.bf16.mxu0 0
    %3759 = vmatpush1.bf16.msra.mxu0 0
    %3760 = vmatprep.subr.bf16.mxu0 0
    %3761 = vmatpush1.bf16.msra.mxu0 0
    %3762 = vmatprep.subr.bf16.mxu0 0
    %3763 = vmatpush1.bf16.msra.mxu0 0
    %3764 = vmatprep.mubr.bf16.mxu0 0
    %3765 = vmatmul.mubr.bf16.gmra.mrb[0].mxu0 %v3674
    %v3766 = vpop.f32.mrb[0].mxu0
    %v3767 = vadd.f32 0.0, %v3766
    %v3768 = vpop.f32.mrb[0].mxu0
    %v3769 = vadd.f32 0.0, %v3768
    %v3770 = vpop.f32.mrb[0].mxu0
    %v3771 = vadd.f32 0.0, %v3770
    %v3772 = vpop.f32.mrb[0].mxu0
    %v3773 = vadd.f32 0.0, %v3772
    %3774 = vmatprep.mubr.bf16.mxu0 0
    %3775 = vmatmul.mubr.bf16.gmra.mrb[0].mxu0 %v3677
    %v3776 = vpop.f32.mrb[0].mxu0
    %v3777 = vadd.f32 0.0, %v3776
    %v3778 = vpop.f32.mrb[0].mxu0
    %v3779 = vadd.f32 0.0, %v3778
    %v3780 = vpop.f32.mrb[0].mxu0
    %v3781 = vadd.f32 0.0, %v3780
    %v3782 = vpop.f32.mrb[0].mxu0
    %v3783 = vadd.f32 0.0, %v3782
    %3784 = vdwg.mxu0
    %3785 = vmatprep.subr.bf16.mxu0 %v3404
    %3786 = vmatpush1.bf16.msra.mxu0 %v3403
    %3787 = vmatprep.subr.bf16.mxu0 %v3411
    %3788 = vmatpush1.bf16.msra.mxu0 %v3410
    %3789 = vmatprep.subr.bf16.mxu0 0
    %3790 = vmatpush1.bf16.msra.mxu0 0
    %3791 = vmatprep.subr.bf16.mxu0 0
    %3792 = vmatpush1.bf16.msra.mxu0 0
    %3793 = vmatprep.subr.bf16.mxu0 0
    %3794 = vmatpush1.bf16.msra.mxu0 0
    %3795 = vmatprep.subr.bf16.mxu0 0
    %3796 = vmatpush1.bf16.msra.mxu0 0
    %3797 = vmatprep.subr.bf16.mxu0 0
    %3798 = vmatpush1.bf16.msra.mxu0 0
    %3799 = vmatprep.subr.bf16.mxu0 0
    %3800 = vmatpush1.bf16.msra.mxu0 0
    %3801 = vmatprep.subr.bf16.mxu0 0
    %3802 = vmatpush1.bf16.msra.mxu0 0
    %3803 = vmatprep.subr.bf16.mxu0 0
    %3804 = vmatpush1.bf16.msra.mxu0 0
    %3805 = vmatprep.subr.bf16.mxu0 0
    %3806 = vmatpush1.bf16.msra.mxu0 0
    %3807 = vmatprep.subr.bf16.mxu0 0
    %3808 = vmatpush1.bf16.msra.mxu0 0
    %3809 = vmatprep.subr.bf16.mxu0 0
    %3810 = vmatpush1.bf16.msra.mxu0 0
    %3811 = vmatprep.subr.bf16.mxu0 0
    %3812 = vmatpush1.bf16.msra.mxu0 0
    %3813 = vmatprep.subr.bf16.mxu0 0
    %3814 = vmatpush1.bf16.msra.mxu0 0
    %3815 = vmatprep.subr.bf16.mxu0 0
    %3816 = vmatpush1.bf16.msra.mxu0 0
    %3817 = vmatprep.mubr.bf16.mxu0 0
    %3818 = vmatmul.mubr.bf16.gmra.mrb[0].mxu0 %v3674
    %v3819 = vpop.f32.mrb[0].mxu0
    %v3820 = vadd.f32 0.0, %v3819
    %v3821 = vpop.f32.mrb[0].mxu0
    %v3822 = vadd.f32 0.0, %v3821
    %v3823 = vpop.f32.mrb[0].mxu0
    %v3824 = vadd.f32 0.0, %v3823
    %v3825 = vpop.f32.mrb[0].mxu0
    %v3826 = vadd.f32 0.0, %v3825
    %3827 = vmatprep.mubr.bf16.mxu0 0
    %3828 = vmatmul.mubr.bf16.gmra.mrb[0].mxu0 %v3677
    %v3829 = vpop.f32.mrb[0].mxu0
    %v3830 = vadd.f32 0.0, %v3829
    %v3831 = vpop.f32.mrb[0].mxu0
    %v3832 = vadd.f32 0.0, %v3831
    %v3833 = vpop.f32.mrb[0].mxu0
    %v3834 = vadd.f32 0.0, %v3833
    %v3835 = vpop.f32.mrb[0].mxu0
    %v3836 = vadd.f32 0.0, %v3835
    %3837 = vdwg.mxu0
    %v3838 = vadd.f32 %v3643, %v3714
    %v3839 = vadd.f32 %v3644, %v3716
    %v3840 = vadd.f32 %v3645, %v3767
    %v3841 = vadd.f32 %v3646, %v3769
    %v3842 = vadd.f32 %v3647, %v3820
    %v3843 = vadd.f32 %v3648, %v3822
    %v3844 = vadd.f32 %v3649, %v3718
    %v3845 = vadd.f32 %v3650, %v3720
    %v3846 = vadd.f32 %v3651, %v3771
    %v3847 = vadd.f32 %v3652, %v3773
    %v3848 = vadd.f32 %v3653, %v3824
    %v3849 = vadd.f32 %v3654, %v3826
    %v3850 = vadd.f32 %v3655, %v3724
    %v3851 = vadd.f32 %v3656, %v3726
    %v3852 = vadd.f32 %v3657, %v3777
    %v3853 = vadd.f32 %v3658, %v3779
    %v3854 = vadd.f32 %v3659, %v3830
    %v3855 = vadd.f32 %v3660, %v3832
    %v3856 = vadd.f32 %v3661, %v3728
    %v3857 = vadd.f32 %v3662, %v3730
    %v3858 = vadd.f32 %v3663, %v3781
    %v3859 = vadd.f32 %v3664, %v3783
    %v3860 = vadd.f32 %v3665, %v3834
    %v3861 = vadd.f32 %v3666, %v3836
    %v3862 = vld [vmem:[%s8 + $0xa0] sm:$0xff]
    %v3863 = vld [vmem:[%s8 + $0xa8] sm:$0xff]
    %v3864 = vld [vmem:[%s8 + $0xb0] sm:$0xff]
    %v3865 = vld [vmem:[%s8 + $0xb8] sm:$0xff]
    %v3866 = vpack.c.bf16 %v3863, %v3862
    %v3867 = vpack.c.bf16 %v3865, %v3864
    %3868 = vrot.lane.b32.xlu0 %v3399, 127
    %v3869 = vpop.permute.xlu0 %3868
    %3870 = vrot.lane.b32.xlu0 %v3400, 127
    %v3871 = vpop.permute.xlu0 %3870
    %3872 = vrot.lane.b32.xlu0 %v3401, 127
    %v3873 = vpop.permute.xlu0 %3872
    %3874 = vrot.lane.b32.xlu0 %v3402, 127
    %v3875 = vpop.permute.xlu0 %3874
    %3876 = vrot.lane.b32.xlu0 %v3403, 127
    %v3877 = vpop.permute.xlu0 %3876
    %3878 = vrot.lane.b32.xlu0 %v3404, 127
    %v3879 = vpop.permute.xlu0 %3878
    %3880 = vrot.lane.b32.xlu0 %v3406, 127
    %v3881 = vpop.permute.xlu0 %3880
    %3882 = vrot.lane.b32.xlu0 %v3407, 127
    %v3883 = vpop.permute.xlu0 %3882
    %3884 = vrot.lane.b32.xlu0 %v3408, 127
    %v3885 = vpop.permute.xlu0 %3884
    %3886 = vrot.lane.b32.xlu0 %v3409, 127
    %v3887 = vpop.permute.xlu0 %3886
    %3888 = vrot.lane.b32.xlu0 %v3410, 127
    %v3889 = vpop.permute.xlu0 %3888
    %3890 = vrot.lane.b32.xlu0 %v3411, 127
    %v3891 = vpop.permute.xlu0 %3890
    %v3892 = vsel %vm1370, %v3869, %v3871
    %v3893 = vsel %vm1370, %v3871, %v3873
    %v3894 = vsel %vm1370, %v3873, %v3875
    %v3895 = vsel %vm1370, %v3875, %v3877
    %v3896 = vsel %vm1370, %v3877, %v3879
    %v3897 = vsel %vm1370, %v3881, %v3883
    %v3898 = vsel %vm1370, %v3883, %v3885
    %v3899 = vsel %vm1370, %v3885, %v3887
    %v3900 = vsel %vm1370, %v3887, %v3889
    %v3901 = vsel %vm1370, %v3889, %v3891
    %v3915 = vsel %vm2746, %v3866, 0
    %v3918 = vsel %vm2746, %v3867, 0
    %3920 = vmatprep.subr.bf16.mxu0 %v3893
    %3921 = vmatpush1.bf16.msra.mxu0 %v3892
    %3922 = vmatprep.subr.bf16.mxu0 %v3898
    %3923 = vmatpush1.bf16.msra.mxu0 %v3897
    %3924 = vmatprep.subr.bf16.mxu0 0
    %3925 = vmatpush1.bf16.msra.mxu0 0
    %3926 = vmatprep.subr.bf16.mxu0 0
    %3927 = vmatpush1.bf16.msra.mxu0 0
    %3928 = vmatprep.subr.bf16.mxu0 0
    %3929 = vmatpush1.bf16.msra.mxu0 0
    %3930 = vmatprep.subr.bf16.mxu0 0
    %3931 = vmatpush1.bf16.msra.mxu0 0
    %3932 = vmatprep.subr.bf16.mxu0 0
    %3933 = vmatpush1.bf16.msra.mxu0 0
    %3934 = vmatprep.subr.bf16.mxu0 0
    %3935 = vmatpush1.bf16.msra.mxu0 0
    %3936 = vmatprep.subr.bf16.mxu0 0
    %3937 = vmatpush1.bf16.msra.mxu0 0
    %3938 = vmatprep.subr.bf16.mxu0 0
    %3939 = vmatpush1.bf16.msra.mxu0 0
    %3940 = vmatprep.subr.bf16.mxu0 0
    %3941 = vmatpush1.bf16.msra.mxu0 0
    %3942 = vmatprep.subr.bf16.mxu0 0
    %3943 = vmatpush1.bf16.msra.mxu0 0
    %3944 = vmatprep.subr.bf16.mxu0 0
    %3945 = vmatpush1.bf16.msra.mxu0 0
    %3946 = vmatprep.subr.bf16.mxu0 0
    %3947 = vmatpush1.bf16.msra.mxu0 0
    %3948 = vmatprep.subr.bf16.mxu0 0
    %3949 = vmatpush1.bf16.msra.mxu0 0
    %3950 = vmatprep.subr.bf16.mxu0 0
    %3951 = vmatpush1.bf16.msra.mxu0 0
    %3952 = vmatprep.mubr.bf16.mxu0 0
    %3953 = vmatmul.mubr.bf16.gmra.mrb[0].mxu0 %v3915
    %v3954 = vpop.f32.mrb[0].mxu0
    %v3955 = vadd.f32 0.0, %v3954
    %v3956 = vpop.f32.mrb[0].mxu0
    %v3957 = vadd.f32 0.0, %v3956
    %v3958 = vpop.f32.mrb[0].mxu0
    %v3959 = vadd.f32 0.0, %v3958
    %v3960 = vpop.f32.mrb[0].mxu0
    %v3961 = vadd.f32 0.0, %v3960
    %3962 = vmatprep.mubr.bf16.mxu0 0
    %3963 = vmatmul.mubr.bf16.gmra.mrb[0].mxu0 %v3918
    %v3964 = vpop.f32.mrb[0].mxu0
    %v3965 = vadd.f32 0.0, %v3964
    %v3966 = vpop.f32.mrb[0].mxu0
    %v3967 = vadd.f32 0.0, %v3966
    %v3968 = vpop.f32.mrb[0].mxu0
    %v3969 = vadd.f32 0.0, %v3968
    %v3970 = vpop.f32.mrb[0].mxu0
    %v3971 = vadd.f32 0.0, %v3970
    %3972 = vdwg.mxu0
    %3973 = vmatprep.subr.bf16.mxu0 %v3895
    %3974 = vmatpush1.bf16.msra.mxu0 %v3894
    %3975 = vmatprep.subr.bf16.mxu0 %v3900
    %3976 = vmatpush1.bf16.msra.mxu0 %v3899
    %3977 = vmatprep.subr.bf16.mxu0 0
    %3978 = vmatpush1.bf16.msra.mxu0 0
    %3979 = vmatprep.subr.bf16.mxu0 0
    %3980 = vmatpush1.bf16.msra.mxu0 0
    %3981 = vmatprep.subr.bf16.mxu0 0
    %3982 = vmatpush1.bf16.msra.mxu0 0
    %3983 = vmatprep.subr.bf16.mxu0 0
    %3984 = vmatpush1.bf16.msra.mxu0 0
    %3985 = vmatprep.subr.bf16.mxu0 0
    %3986 = vmatpush1.bf16.msra.mxu0 0
    %3987 = vmatprep.subr.bf16.mxu0 0
    %3988 = vmatpush1.bf16.msra.mxu0 0
    %3989 = vmatprep.subr.bf16.mxu0 0
    %3990 = vmatpush1.bf16.msra.mxu0 0
    %3991 = vmatprep.subr.bf16.mxu0 0
    %3992 = vmatpush1.bf16.msra.mxu0 0
    %3993 = vmatprep.subr.bf16.mxu0 0
    %3994 = vmatpush1.bf16.msra.mxu0 0
    %3995 = vmatprep.subr.bf16.mxu0 0
    %3996 = vmatpush1.bf16.msra.mxu0 0
    %3997 = vmatprep.subr.bf16.mxu0 0
    %3998 = vmatpush1.bf16.msra.mxu0 0
    %3999 = vmatprep.subr.bf16.mxu0 0
    %4000 = vmatpush1.bf16.msra.mxu0 0
    %4001 = vmatprep.subr.bf16.mxu0 0
    %4002 = vmatpush1.bf16.msra.mxu0 0
    %4003 = vmatprep.subr.bf16.mxu0 0
    %4004 = vmatpush1.bf16.msra.mxu0 0
    %4005 = vmatprep.mubr.bf16.mxu0 0
    %4006 = vmatmul.mubr.bf16.gmra.mrb[0].mxu0 %v3915
    %v4007 = vpop.f32.mrb[0].mxu0
    %v4008 = vadd.f32 0.0, %v4007
    %v4009 = vpop.f32.mrb[0].mxu0
    %v4010 = vadd.f32 0.0, %v4009
    %v4011 = vpop.f32.mrb[0].mxu0
    %v4012 = vadd.f32 0.0, %v4011
    %v4013 = vpop.f32.mrb[0].mxu0
    %v4014 = vadd.f32 0.0, %v4013
    %4015 = vmatprep.mubr.bf16.mxu0 0
    %4016 = vmatmul.mubr.bf16.gmra.mrb[0].mxu0 %v3918
    %v4017 = vpop.f32.mrb[0].mxu0
    %v4018 = vadd.f32 0.0, %v4017
    %v4019 = vpop.f32.mrb[0].mxu0
    %v4020 = vadd.f32 0.0, %v4019
    %v4021 = vpop.f32.mrb[0].mxu0
    %v4022 = vadd.f32 0.0, %v4021
    %v4023 = vpop.f32.mrb[0].mxu0
    %v4024 = vadd.f32 0.0, %v4023
    %4025 = vdwg.mxu0
    %4026 = vmatprep.subr.bf16.mxu0 %v3879
    %4027 = vmatpush1.bf16.msra.mxu0 %v3896
    %4028 = vmatprep.subr.bf16.mxu0 %v3891
    %4029 = vmatpush1.bf16.msra.mxu0 %v3901
    %4030 = vmatprep.subr.bf16.mxu0 0
    %4031 = vmatpush1.bf16.msra.mxu0 0
    %4032 = vmatprep.subr.bf16.mxu0 0
    %4033 = vmatpush1.bf16.msra.mxu0 0
    %4034 = vmatprep.subr.bf16.mxu0 0
    %4035 = vmatpush1.bf16.msra.mxu0 0
    %4036 = vmatprep.subr.bf16.mxu0 0
    %4037 = vmatpush1.bf16.msra.mxu0 0
    %4038 = vmatprep.subr.bf16.mxu0 0
    %4039 = vmatpush1.bf16.msra.mxu0 0
    %4040 = vmatprep.subr.bf16.mxu0 0
    %4041 = vmatpush1.bf16.msra.mxu0 0
    %4042 = vmatprep.subr.bf16.mxu0 0
    %4043 = vmatpush1.bf16.msra.mxu0 0
    %4044 = vmatprep.subr.bf16.mxu0 0
    %4045 = vmatpush1.bf16.msra.mxu0 0
    %4046 = vmatprep.subr.bf16.mxu0 0
    %4047 = vmatpush1.bf16.msra.mxu0 0
    %4048 = vmatprep.subr.bf16.mxu0 0
    %4049 = vmatpush1.bf16.msra.mxu0 0
    %4050 = vmatprep.subr.bf16.mxu0 0
    %4051 = vmatpush1.bf16.msra.mxu0 0
    %4052 = vmatprep.subr.bf16.mxu0 0
    %4053 = vmatpush1.bf16.msra.mxu0 0
    %4054 = vmatprep.subr.bf16.mxu0 0
    %4055 = vmatpush1.bf16.msra.mxu0 0
    %4056 = vmatprep.subr.bf16.mxu0 0
    %4057 = vmatpush1.bf16.msra.mxu0 0
    %4058 = vmatprep.mubr.bf16.mxu0 0
    %4059 = vmatmul.mubr.bf16.gmra.mrb[0].mxu0 %v3915
    %v4060 = vpop.f32.mrb[0].mxu0
    %v4061 = vadd.f32 0.0, %v4060
    %v4062 = vpop.f32.mrb[0].mxu0
    %v4063 = vadd.f32 0.0, %v4062
    %v4064 = vpop.f32.mrb[0].mxu0
    %v4065 = vadd.f32 0.0, %v4064
    %v4066 = vpop.f32.mrb[0].mxu0
    %v4067 = vadd.f32 0.0, %v4066
    %4068 = vmatprep.mubr.bf16.mxu0 0
    %4069 = vmatmul.mubr.bf16.gmra.mrb[0].mxu0 %v3918
    %v4070 = vpop.f32.mrb[0].mxu0
    %v4071 = vadd.f32 0.0, %v4070
    %v4072 = vpop.f32.mrb[0].mxu0
    %v4073 = vadd.f32 0.0, %v4072
    %v4074 = vpop.f32.mrb[0].mxu0
    %v4075 = vadd.f32 0.0, %v4074
    %v4076 = vpop.f32.mrb[0].mxu0
    %v4077 = vadd.f32 0.0, %v4076
    %4078 = vdwg.mxu0
    %v4079 = vadd.f32 %v3838, %v3955
    %v4080 = vadd.f32 %v3839, %v3957
    %v4081 = vadd.f32 %v3840, %v4008
    %v4082 = vadd.f32 %v3841, %v4010
    %v4083 = vadd.f32 %v3842, %v4061
    %v4084 = vadd.f32 %v3843, %v4063
    %v4085 = vadd.f32 %v3844, %v3959
    %v4086 = vadd.f32 %v3845, %v3961
    %v4087 = vadd.f32 %v3846, %v4012
    %v4088 = vadd.f32 %v3847, %v4014
    %v4089 = vadd.f32 %v3848, %v4065
    %v4090 = vadd.f32 %v3849, %v4067
    %v4091 = vadd.f32 %v3850, %v3965
    %v4092 = vadd.f32 %v3851, %v3967
    %v4093 = vadd.f32 %v3852, %v4018
    %v4094 = vadd.f32 %v3853, %v4020
    %v4095 = vadd.f32 %v3854, %v4071
    %v4096 = vadd.f32 %v3855, %v4073
    %v4097 = vadd.f32 %v3856, %v3969
    %v4098 = vadd.f32 %v3857, %v3971
    %v4099 = vadd.f32 %v3858, %v4022
    %v4100 = vadd.f32 %v3859, %v4024
    %v4101 = vadd.f32 %v3860, %v4075
    %v4102 = vadd.f32 %v3861, %v4077
    %v4103 = vld [vmem:[%s8 + $0xc0] sm:$0xff]
    %v4104 = vld [vmem:[%s8 + $0xc8] sm:$0xff]
    %v4105 = vld [vmem:[%s8 + $0xd0] sm:$0xff]
    %v4106 = vld [vmem:[%s8 + $0xd8] sm:$0xff]
    %v4107 = vpack.c.bf16 %v4104, %v4103
    %v4108 = vpack.c.bf16 %v4106, %v4105
    %4109 = vrot.lane.b32.xlu0 %v3399, 111
    %v4110 = vpop.permute.xlu0 %4109
    %4111 = vrot.lane.b32.xlu0 %v3400, 111
    %v4112 = vpop.permute.xlu0 %4111
    %4113 = vrot.lane.b32.xlu0 %v3401, 111
    %v4114 = vpop.permute.xlu0 %4113
    %4115 = vrot.lane.b32.xlu0 %v3402, 111
    %v4116 = vpop.permute.xlu0 %4115
    %4117 = vrot.lane.b32.xlu0 %v3403, 111
    %v4118 = vpop.permute.xlu0 %4117
    %4119 = vrot.lane.b32.xlu0 %v3404, 111
    %v4120 = vpop.permute.xlu0 %4119
    %4121 = vrot.lane.b32.xlu0 %v3406, 111
    %v4122 = vpop.permute.xlu0 %4121
    %4123 = vrot.lane.b32.xlu0 %v3407, 111
    %v4124 = vpop.permute.xlu0 %4123
    %4125 = vrot.lane.b32.xlu0 %v3408, 111
    %v4126 = vpop.permute.xlu0 %4125
    %4127 = vrot.lane.b32.xlu0 %v3409, 111
    %v4128 = vpop.permute.xlu0 %4127
    %4129 = vrot.lane.b32.xlu0 %v3410, 111
    %v4130 = vpop.permute.xlu0 %4129
    %4131 = vrot.lane.b32.xlu0 %v3411, 111
    %v4132 = vpop.permute.xlu0 %4131
    %v4133 = vsel %vm1589, %v4110, %v4112
    %v4134 = vsel %vm1589, %v4112, %v4114
    %v4135 = vsel %vm1589, %v4114, %v4116
    %v4136 = vsel %vm1589, %v4116, %v4118
    %v4137 = vsel %vm1589, %v4118, %v4120
    %v4138 = vsel %vm1589, %v4122, %v4124
    %v4139 = vsel %vm1589, %v4124, %v4126
    %v4140 = vsel %vm1589, %v4126, %v4128
    %v4141 = vsel %vm1589, %v4128, %v4130
    %v4142 = vsel %vm1589, %v4130, %v4132
    %v4156 = vsel %vm2746, %v4107, 0
    %v4159 = vsel %vm2746, %v4108, 0
    %4161 = vmatprep.subr.bf16.mxu0 %v4134
    %4162 = vmatpush1.bf16.msra.mxu0 %v4133
    %4163 = vmatprep.subr.bf16.mxu0 %v4139
    %4164 = vmatpush1.bf16.msra.mxu0 %v4138
    %4165 = vmatprep.subr.bf16.mxu0 0
    %4166 = vmatpush1.bf16.msra.mxu0 0
    %4167 = vmatprep.subr.bf16.mxu0 0
    %4168 = vmatpush1.bf16.msra.mxu0 0
    %4169 = vmatprep.subr.bf16.mxu0 0
    %4170 = vmatpush1.bf16.msra.mxu0 0
    %4171 = vmatprep.subr.bf16.mxu0 0
    %4172 = vmatpush1.bf16.msra.mxu0 0
    %4173 = vmatprep.subr.bf16.mxu0 0
    %4174 = vmatpush1.bf16.msra.mxu0 0
    %4175 = vmatprep.subr.bf16.mxu0 0
    %4176 = vmatpush1.bf16.msra.mxu0 0
    %4177 = vmatprep.subr.bf16.mxu0 0
    %4178 = vmatpush1.bf16.msra.mxu0 0
    %4179 = vmatprep.subr.bf16.mxu0 0
    %4180 = vmatpush1.bf16.msra.mxu0 0
    %4181 = vmatprep.subr.bf16.mxu0 0
    %4182 = vmatpush1.bf16.msra.mxu0 0
    %4183 = vmatprep.subr.bf16.mxu0 0
    %4184 = vmatpush1.bf16.msra.mxu0 0
    %4185 = vmatprep.subr.bf16.mxu0 0
    %4186 = vmatpush1.bf16.msra.mxu0 0
    %4187 = vmatprep.subr.bf16.mxu0 0
    %4188 = vmatpush1.bf16.msra.mxu0 0
    %4189 = vmatprep.subr.bf16.mxu0 0
    %4190 = vmatpush1.bf16.msra.mxu0 0
    %4191 = vmatprep.subr.bf16.mxu0 0
    %4192 = vmatpush1.bf16.msra.mxu0 0
    %4193 = vmatprep.mubr.bf16.mxu0 0
    %4194 = vmatmul.mubr.bf16.gmra.mrb[0].mxu0 %v4156
    %v4195 = vpop.f32.mrb[0].mxu0
    %v4196 = vadd.f32 0.0, %v4195
    %v4197 = vpop.f32.mrb[0].mxu0
    %v4198 = vadd.f32 0.0, %v4197
    %v4199 = vpop.f32.mrb[0].mxu0
    %v4200 = vadd.f32 0.0, %v4199
    %v4201 = vpop.f32.mrb[0].mxu0
    %v4202 = vadd.f32 0.0, %v4201
    %4203 = vmatprep.mubr.bf16.mxu0 0
    %4204 = vmatmul.mubr.bf16.gmra.mrb[0].mxu0 %v4159
    %v4205 = vpop.f32.mrb[0].mxu0
    %v4206 = vadd.f32 0.0, %v4205
    %v4207 = vpop.f32.mrb[0].mxu0
    %v4208 = vadd.f32 0.0, %v4207
    %v4209 = vpop.f32.mrb[0].mxu0
    %v4210 = vadd.f32 0.0, %v4209
    %v4211 = vpop.f32.mrb[0].mxu0
    %v4212 = vadd.f32 0.0, %v4211
    %4213 = vdwg.mxu0
    %4214 = vmatprep.subr.bf16.mxu0 %v4136
    %4215 = vmatpush1.bf16.msra.mxu0 %v4135
    %4216 = vmatprep.subr.bf16.mxu0 %v4141
    %4217 = vmatpush1.bf16.msra.mxu0 %v4140
    %4218 = vmatprep.subr.bf16.mxu0 0
    %4219 = vmatpush1.bf16.msra.mxu0 0
    %4220 = vmatprep.subr.bf16.mxu0 0
    %4221 = vmatpush1.bf16.msra.mxu0 0
    %4222 = vmatprep.subr.bf16.mxu0 0
    %4223 = vmatpush1.bf16.msra.mxu0 0
    %4224 = vmatprep.subr.bf16.mxu0 0
    %4225 = vmatpush1.bf16.msra.mxu0 0
    %4226 = vmatprep.subr.bf16.mxu0 0
    %4227 = vmatpush1.bf16.msra.mxu0 0
    %4228 = vmatprep.subr.bf16.mxu0 0
    %4229 = vmatpush1.bf16.msra.mxu0 0
    %4230 = vmatprep.subr.bf16.mxu0 0
    %4231 = vmatpush1.bf16.msra.mxu0 0
    %4232 = vmatprep.subr.bf16.mxu0 0
    %4233 = vmatpush1.bf16.msra.mxu0 0
    %4234 = vmatprep.subr.bf16.mxu0 0
    %4235 = vmatpush1.bf16.msra.mxu0 0
    %4236 = vmatprep.subr.bf16.mxu0 0
    %4237 = vmatpush1.bf16.msra.mxu0 0
    %4238 = vmatprep.subr.bf16.mxu0 0
    %4239 = vmatpush1.bf16.msra.mxu0 0
    %4240 = vmatprep.subr.bf16.mxu0 0
    %4241 = vmatpush1.bf16.msra.mxu0 0
    %4242 = vmatprep.subr.bf16.mxu0 0
    %4243 = vmatpush1.bf16.msra.mxu0 0
    %4244 = vmatprep.subr.bf16.mxu0 0
    %4245 = vmatpush1.bf16.msra.mxu0 0
    %4246 = vmatprep.mubr.bf16.mxu0 0
    %4247 = vmatmul.mubr.bf16.gmra.mrb[0].mxu0 %v4156
    %v4248 = vpop.f32.mrb[0].mxu0
    %v4249 = vadd.f32 0.0, %v4248
    %v4250 = vpop.f32.mrb[0].mxu0
    %v4251 = vadd.f32 0.0, %v4250
    %v4252 = vpop.f32.mrb[0].mxu0
    %v4253 = vadd.f32 0.0, %v4252
    %v4254 = vpop.f32.mrb[0].mxu0
    %v4255 = vadd.f32 0.0, %v4254
    %4256 = vmatprep.mubr.bf16.mxu0 0
    %4257 = vmatmul.mubr.bf16.gmra.mrb[0].mxu0 %v4159
    %v4258 = vpop.f32.mrb[0].mxu0
    %v4259 = vadd.f32 0.0, %v4258
    %v4260 = vpop.f32.mrb[0].mxu0
    %v4261 = vadd.f32 0.0, %v4260
    %v4262 = vpop.f32.mrb[0].mxu0
    %v4263 = vadd.f32 0.0, %v4262
    %v4264 = vpop.f32.mrb[0].mxu0
    %v4265 = vadd.f32 0.0, %v4264
    %4266 = vdwg.mxu0
    %4267 = vmatprep.subr.bf16.mxu0 %v4120
    %4268 = vmatpush1.bf16.msra.mxu0 %v4137
    %4269 = vmatprep.subr.bf16.mxu0 %v4132
    %4270 = vmatpush1.bf16.msra.mxu0 %v4142
    %4271 = vmatprep.subr.bf16.mxu0 0
    %4272 = vmatpush1.bf16.msra.mxu0 0
    %4273 = vmatprep.subr.bf16.mxu0 0
    %4274 = vmatpush1.bf16.msra.mxu0 0
    %4275 = vmatprep.subr.bf16.mxu0 0
    %4276 = vmatpush1.bf16.msra.mxu0 0
    %4277 = vmatprep.subr.bf16.mxu0 0
    %4278 = vmatpush1.bf16.msra.mxu0 0
    %4279 = vmatprep.subr.bf16.mxu0 0
    %4280 = vmatpush1.bf16.msra.mxu0 0
    %4281 = vmatprep.subr.bf16.mxu0 0
    %4282 = vmatpush1.bf16.msra.mxu0 0
    %4283 = vmatprep.subr.bf16.mxu0 0
    %4284 = vmatpush1.bf16.msra.mxu0 0
    %4285 = vmatprep.subr.bf16.mxu0 0
    %4286 = vmatpush1.bf16.msra.mxu0 0
    %4287 = vmatprep.subr.bf16.mxu0 0
    %4288 = vmatpush1.bf16.msra.mxu0 0
    %4289 = vmatprep.subr.bf16.mxu0 0
    %4290 = vmatpush1.bf16.msra.mxu0 0
    %4291 = vmatprep.subr.bf16.mxu0 0
    %4292 = vmatpush1.bf16.msra.mxu0 0
    %4293 = vmatprep.subr.bf16.mxu0 0
    %4294 = vmatpush1.bf16.msra.mxu0 0
    %4295 = vmatprep.subr.bf16.mxu0 0
    %4296 = vmatpush1.bf16.msra.mxu0 0
    %4297 = vmatprep.subr.bf16.mxu0 0
    %4298 = vmatpush1.bf16.msra.mxu0 0
    %4299 = vmatprep.mubr.bf16.mxu0 0
    %4300 = vmatmul.mubr.bf16.gmra.mrb[0].mxu0 %v4156
    %v4301 = vpop.f32.mrb[0].mxu0
    %v4302 = vadd.f32 0.0, %v4301
    %v4303 = vpop.f32.mrb[0].mxu0
    %v4304 = vadd.f32 0.0, %v4303
    %v4305 = vpop.f32.mrb[0].mxu0
    %v4306 = vadd.f32 0.0, %v4305
    %v4307 = vpop.f32.mrb[0].mxu0
    %v4308 = vadd.f32 0.0, %v4307
    %4309 = vmatprep.mubr.bf16.mxu0 0
    %4310 = vmatmul.mubr.bf16.gmra.mrb[0].mxu0 %v4159
    %v4311 = vpop.f32.mrb[0].mxu0
    %v4312 = vadd.f32 0.0, %v4311
    %v4313 = vpop.f32.mrb[0].mxu0
    %v4314 = vadd.f32 0.0, %v4313
    %v4315 = vpop.f32.mrb[0].mxu0
    %v4316 = vadd.f32 0.0, %v4315
    %v4317 = vpop.f32.mrb[0].mxu0
    %v4318 = vadd.f32 0.0, %v4317
    %4319 = vdwg.mxu0
    %v4320 = vadd.f32 %v4079, %v4196
    %v4321 = vadd.f32 %v4080, %v4198
    %v4322 = vadd.f32 %v4081, %v4249
    %v4323 = vadd.f32 %v4082, %v4251
    %v4324 = vadd.f32 %v4083, %v4302
    %v4325 = vadd.f32 %v4084, %v4304
    %v4326 = vadd.f32 %v4085, %v4200
    %v4327 = vadd.f32 %v4086, %v4202
    %v4328 = vadd.f32 %v4087, %v4253
    %v4329 = vadd.f32 %v4088, %v4255
    %v4330 = vadd.f32 %v4089, %v4306
    %v4331 = vadd.f32 %v4090, %v4308
    %v4332 = vadd.f32 %v4091, %v4206
    %v4333 = vadd.f32 %v4092, %v4208
    %v4334 = vadd.f32 %v4093, %v4259
    %v4335 = vadd.f32 %v4094, %v4261
    %v4336 = vadd.f32 %v4095, %v4312
    %v4337 = vadd.f32 %v4096, %v4314
    %v4338 = vadd.f32 %v4097, %v4210
    %v4339 = vadd.f32 %v4098, %v4212
    %v4340 = vadd.f32 %v4099, %v4263
    %v4341 = vadd.f32 %v4100, %v4265
    %v4342 = vadd.f32 %v4101, %v4316
    %v4343 = vadd.f32 %v4102, %v4318
    %v4344 = vld [vmem:[%s8 + $0xe0] sm:$0xff]
    %v4345 = vld [vmem:[%s8 + $0xe8] sm:$0xff]
    %v4346 = vld [vmem:[%s8 + $0xf0] sm:$0xff]
    %v4347 = vld [vmem:[%s8 + $0xf8] sm:$0xff]
    %v4348 = vpack.c.bf16 %v4345, %v4344
    %v4349 = vpack.c.bf16 %v4347, %v4346
    %4350 = vrot.lane.b32.xlu0 %v3399, 110
    %v4351 = vpop.permute.xlu0 %4350
    %4352 = vrot.lane.b32.xlu0 %v3400, 110
    %v4353 = vpop.permute.xlu0 %4352
    %4354 = vrot.lane.b32.xlu0 %v3401, 110
    %v4355 = vpop.permute.xlu0 %4354
    %4356 = vrot.lane.b32.xlu0 %v3402, 110
    %v4357 = vpop.permute.xlu0 %4356
    %4358 = vrot.lane.b32.xlu0 %v3403, 110
    %v4359 = vpop.permute.xlu0 %4358
    %4360 = vrot.lane.b32.xlu0 %v3404, 110
    %v4361 = vpop.permute.xlu0 %4360
    %4362 = vrot.lane.b32.xlu0 %v3406, 110
    %v4363 = vpop.permute.xlu0 %4362
    %4364 = vrot.lane.b32.xlu0 %v3407, 110
    %v4365 = vpop.permute.xlu0 %4364
    %4366 = vrot.lane.b32.xlu0 %v3408, 110
    %v4367 = vpop.permute.xlu0 %4366
    %4368 = vrot.lane.b32.xlu0 %v3409, 110
    %v4369 = vpop.permute.xlu0 %4368
    %4370 = vrot.lane.b32.xlu0 %v3410, 110
    %v4371 = vpop.permute.xlu0 %4370
    %4372 = vrot.lane.b32.xlu0 %v3411, 110
    %v4373 = vpop.permute.xlu0 %4372
    %v4374 = vsel %vm1808, %v4351, %v4353
    %v4375 = vsel %vm1808, %v4353, %v4355
    %v4376 = vsel %vm1808, %v4355, %v4357
    %v4377 = vsel %vm1808, %v4357, %v4359
    %v4378 = vsel %vm1808, %v4359, %v4361
    %v4379 = vsel %vm1808, %v4363, %v4365
    %v4380 = vsel %vm1808, %v4365, %v4367
    %v4381 = vsel %vm1808, %v4367, %v4369
    %v4382 = vsel %vm1808, %v4369, %v4371
    %v4383 = vsel %vm1808, %v4371, %v4373
    %v4397 = vsel %vm2746, %v4348, 0
    %v4400 = vsel %vm2746, %v4349, 0
    %4402 = vmatprep.subr.bf16.mxu0 %v4375
    %4403 = vmatpush1.bf16.msra.mxu0 %v4374
    %4404 = vmatprep.subr.bf16.mxu0 %v4380
    %4405 = vmatpush1.bf16.msra.mxu0 %v4379
    %4406 = vmatprep.subr.bf16.mxu0 0
    %4407 = vmatpush1.bf16.msra.mxu0 0
    %4408 = vmatprep.subr.bf16.mxu0 0
    %4409 = vmatpush1.bf16.msra.mxu0 0
    %4410 = vmatprep.subr.bf16.mxu0 0
    %4411 = vmatpush1.bf16.msra.mxu0 0
    %4412 = vmatprep.subr.bf16.mxu0 0
    %4413 = vmatpush1.bf16.msra.mxu0 0
    %4414 = vmatprep.subr.bf16.mxu0 0
    %4415 = vmatpush1.bf16.msra.mxu0 0
    %4416 = vmatprep.subr.bf16.mxu0 0
    %4417 = vmatpush1.bf16.msra.mxu0 0
    %4418 = vmatprep.subr.bf16.mxu0 0
    %4419 = vmatpush1.bf16.msra.mxu0 0
    %4420 = vmatprep.subr.bf16.mxu0 0
    %4421 = vmatpush1.bf16.msra.mxu0 0
    %4422 = vmatprep.subr.bf16.mxu0 0
    %4423 = vmatpush1.bf16.msra.mxu0 0
    %4424 = vmatprep.subr.bf16.mxu0 0
    %4425 = vmatpush1.bf16.msra.mxu0 0
    %4426 = vmatprep.subr.bf16.mxu0 0
    %4427 = vmatpush1.bf16.msra.mxu0 0
    %4428 = vmatprep.subr.bf16.mxu0 0
    %4429 = vmatpush1.bf16.msra.mxu0 0
    %4430 = vmatprep.subr.bf16.mxu0 0
    %4431 = vmatpush1.bf16.msra.mxu0 0
    %4432 = vmatprep.subr.bf16.mxu0 0
    %4433 = vmatpush1.bf16.msra.mxu0 0
    %4434 = vmatprep.mubr.bf16.mxu0 0
    %4435 = vmatmul.mubr.bf16.gmra.mrb[0].mxu0 %v4397
    %v4436 = vpop.f32.mrb[0].mxu0
    %v4437 = vadd.f32 0.0, %v4436
    %v4438 = vpop.f32.mrb[0].mxu0
    %v4439 = vadd.f32 0.0, %v4438
    %v4440 = vpop.f32.mrb[0].mxu0
    %v4441 = vadd.f32 0.0, %v4440
    %v4442 = vpop.f32.mrb[0].mxu0
    %v4443 = vadd.f32 0.0, %v4442
    %4444 = vmatprep.mubr.bf16.mxu0 0
    %4445 = vmatmul.mubr.bf16.gmra.mrb[0].mxu0 %v4400
    %v4446 = vpop.f32.mrb[0].mxu0
    %v4447 = vadd.f32 0.0, %v4446
    %v4448 = vpop.f32.mrb[0].mxu0
    %v4449 = vadd.f32 0.0, %v4448
    %v4450 = vpop.f32.mrb[0].mxu0
    %v4451 = vadd.f32 0.0, %v4450
    %v4452 = vpop.f32.mrb[0].mxu0
    %v4453 = vadd.f32 0.0, %v4452
    %4454 = vdwg.mxu0
    %4455 = vmatprep.subr.bf16.mxu0 %v4377
    %4456 = vmatpush1.bf16.msra.mxu0 %v4376
    %4457 = vmatprep.subr.bf16.mxu0 %v4382
    %4458 = vmatpush1.bf16.msra.mxu0 %v4381
    %4459 = vmatprep.subr.bf16.mxu0 0
    %4460 = vmatpush1.bf16.msra.mxu0 0
    %4461 = vmatprep.subr.bf16.mxu0 0
    %4462 = vmatpush1.bf16.msra.mxu0 0
    %4463 = vmatprep.subr.bf16.mxu0 0
    %4464 = vmatpush1.bf16.msra.mxu0 0
    %4465 = vmatprep.subr.bf16.mxu0 0
    %4466 = vmatpush1.bf16.msra.mxu0 0
    %4467 = vmatprep.subr.bf16.mxu0 0
    %4468 = vmatpush1.bf16.msra.mxu0 0
    %4469 = vmatprep.subr.bf16.mxu0 0
    %4470 = vmatpush1.bf16.msra.mxu0 0
    %4471 = vmatprep.subr.bf16.mxu0 0
    %4472 = vmatpush1.bf16.msra.mxu0 0
    %4473 = vmatprep.subr.bf16.mxu0 0
    %4474 = vmatpush1.bf16.msra.mxu0 0
    %4475 = vmatprep.subr.bf16.mxu0 0
    %4476 = vmatpush1.bf16.msra.mxu0 0
    %4477 = vmatprep.subr.bf16.mxu0 0
    %4478 = vmatpush1.bf16.msra.mxu0 0
    %4479 = vmatprep.subr.bf16.mxu0 0
    %4480 = vmatpush1.bf16.msra.mxu0 0
    %4481 = vmatprep.subr.bf16.mxu0 0
    %4482 = vmatpush1.bf16.msra.mxu0 0
    %4483 = vmatprep.subr.bf16.mxu0 0
    %4484 = vmatpush1.bf16.msra.mxu0 0
    %4485 = vmatprep.subr.bf16.mxu0 0
    %4486 = vmatpush1.bf16.msra.mxu0 0
    %4487 = vmatprep.mubr.bf16.mxu0 0
    %4488 = vmatmul.mubr.bf16.gmra.mrb[0].mxu0 %v4397
    %v4489 = vpop.f32.mrb[0].mxu0
    %v4490 = vadd.f32 0.0, %v4489
    %v4491 = vpop.f32.mrb[0].mxu0
    %v4492 = vadd.f32 0.0, %v4491
    %v4493 = vpop.f32.mrb[0].mxu0
    %v4494 = vadd.f32 0.0, %v4493
    %v4495 = vpop.f32.mrb[0].mxu0
    %v4496 = vadd.f32 0.0, %v4495
    %4497 = vmatprep.mubr.bf16.mxu0 0
    %4498 = vmatmul.mubr.bf16.gmra.mrb[0].mxu0 %v4400
    %v4499 = vpop.f32.mrb[0].mxu0
    %v4500 = vadd.f32 0.0, %v4499
    %v4501 = vpop.f32.mrb[0].mxu0
    %v4502 = vadd.f32 0.0, %v4501
    %v4503 = vpop.f32.mrb[0].mxu0
    %v4504 = vadd.f32 0.0, %v4503
    %v4505 = vpop.f32.mrb[0].mxu0
    %v4506 = vadd.f32 0.0, %v4505
    %4507 = vdwg.mxu0
    %4508 = vmatprep.subr.bf16.mxu0 %v4361
    %4509 = vmatpush1.bf16.msra.mxu0 %v4378
    %4510 = vmatprep.subr.bf16.mxu0 %v4373
    %4511 = vmatpush1.bf16.msra.mxu0 %v4383
    %4512 = vmatprep.subr.bf16.mxu0 0
    %4513 = vmatpush1.bf16.msra.mxu0 0
    %4514 = vmatprep.subr.bf16.mxu0 0
    %4515 = vmatpush1.bf16.msra.mxu0 0
    %4516 = vmatprep.subr.bf16.mxu0 0
    %4517 = vmatpush1.bf16.msra.mxu0 0
    %4518 = vmatprep.subr.bf16.mxu0 0
    %4519 = vmatpush1.bf16.msra.mxu0 0
    %4520 = vmatprep.subr.bf16.mxu0 0
    %4521 = vmatpush1.bf16.msra.mxu0 0
    %4522 = vmatprep.subr.bf16.mxu0 0
    %4523 = vmatpush1.bf16.msra.mxu0 0
    %4524 = vmatprep.subr.bf16.mxu0 0
    %4525 = vmatpush1.bf16.msra.mxu0 0
    %4526 = vmatprep.subr.bf16.mxu0 0
    %4527 = vmatpush1.bf16.msra.mxu0 0
    %4528 = vmatprep.subr.bf16.mxu0 0
    %4529 = vmatpush1.bf16.msra.mxu0 0
    %4530 = vmatprep.subr.bf16.mxu0 0
    %4531 = vmatpush1.bf16.msra.mxu0 0
    %4532 = vmatprep.subr.bf16.mxu0 0
    %4533 = vmatpush1.bf16.msra.mxu0 0
    %4534 = vmatprep.subr.bf16.mxu0 0
    %4535 = vmatpush1.bf16.msra.mxu0 0
    %4536 = vmatprep.subr.bf16.mxu0 0
    %4537 = vmatpush1.bf16.msra.mxu0 0
    %4538 = vmatprep.subr.bf16.mxu0 0
    %4539 = vmatpush1.bf16.msra.mxu0 0
    %4540 = vmatprep.mubr.bf16.mxu0 0
    %4541 = vmatmul.mubr.bf16.gmra.mrb[0].mxu0 %v4397
    %v4542 = vpop.f32.mrb[0].mxu0
    %v4543 = vadd.f32 0.0, %v4542
    %v4544 = vpop.f32.mrb[0].mxu0
    %v4545 = vadd.f32 0.0, %v4544
    %v4546 = vpop.f32.mrb[0].mxu0
    %v4547 = vadd.f32 0.0, %v4546
    %v4548 = vpop.f32.mrb[0].mxu0
    %v4549 = vadd.f32 0.0, %v4548
    %4550 = vmatprep.mubr.bf16.mxu0 0
    %4551 = vmatmul.mubr.bf16.gmra.mrb[0].mxu0 %v4400
    %v4552 = vpop.f32.mrb[0].mxu0
    %v4553 = vadd.f32 0.0, %v4552
    %v4554 = vpop.f32.mrb[0].mxu0
    %v4555 = vadd.f32 0.0, %v4554
    %v4556 = vpop.f32.mrb[0].mxu0
    %v4557 = vadd.f32 0.0, %v4556
    %v4558 = vpop.f32.mrb[0].mxu0
    %v4559 = vadd.f32 0.0, %v4558
    %4560 = vdwg.mxu0
    %v4561 = vadd.f32 %v4320, %v4437
    %v4562 = vadd.f32 %v4321, %v4439
    %v4563 = vadd.f32 %v4322, %v4490
    %v4564 = vadd.f32 %v4323, %v4492
    %v4565 = vadd.f32 %v4324, %v4543
    %v4566 = vadd.f32 %v4325, %v4545
    %v4567 = vadd.f32 %v4326, %v4441
    %v4568 = vadd.f32 %v4327, %v4443
    %v4569 = vadd.f32 %v4328, %v4494
    %v4570 = vadd.f32 %v4329, %v4496
    %v4571 = vadd.f32 %v4330, %v4547
    %v4572 = vadd.f32 %v4331, %v4549
    %v4573 = vadd.f32 %v4332, %v4447
    %v4574 = vadd.f32 %v4333, %v4449
    %v4575 = vadd.f32 %v4334, %v4500
    %v4576 = vadd.f32 %v4335, %v4502
    %v4577 = vadd.f32 %v4336, %v4553
    %v4578 = vadd.f32 %v4337, %v4555
    %v4579 = vadd.f32 %v4338, %v4451
    %v4580 = vadd.f32 %v4339, %v4453
    %v4581 = vadd.f32 %v4340, %v4504
    %v4582 = vadd.f32 %v4341, %v4506
    %v4583 = vadd.f32 %v4342, %v4557
    %v4584 = vadd.f32 %v4343, %v4559
    %v4585 = vld [vmem:[%s8 + $0x100] sm:$0xff]
    %v4586 = vld [vmem:[%s8 + $0x108] sm:$0xff]
    %v4587 = vld [vmem:[%s8 + $0x110] sm:$0xff]
    %v4588 = vld [vmem:[%s8 + $0x118] sm:$0xff]
    %v4589 = vpack.c.bf16 %v4586, %v4585
    %v4590 = vpack.c.bf16 %v4588, %v4587
    %4591 = vrot.lane.b32.xlu0 %v3399, 109
    %v4592 = vpop.permute.xlu0 %4591
    %4593 = vrot.lane.b32.xlu0 %v3400, 109
    %v4594 = vpop.permute.xlu0 %4593
    %4595 = vrot.lane.b32.xlu0 %v3401, 109
    %v4596 = vpop.permute.xlu0 %4595
    %4597 = vrot.lane.b32.xlu0 %v3402, 109
    %v4598 = vpop.permute.xlu0 %4597
    %4599 = vrot.lane.b32.xlu0 %v3403, 109
    %v4600 = vpop.permute.xlu0 %4599
    %4601 = vrot.lane.b32.xlu0 %v3404, 109
    %v4602 = vpop.permute.xlu0 %4601
    %4603 = vrot.lane.b32.xlu0 %v3406, 109
    %v4604 = vpop.permute.xlu0 %4603
    %4605 = vrot.lane.b32.xlu0 %v3407, 109
    %v4606 = vpop.permute.xlu0 %4605
    %4607 = vrot.lane.b32.xlu0 %v3408, 109
    %v4608 = vpop.permute.xlu0 %4607
    %4609 = vrot.lane.b32.xlu0 %v3409, 109
    %v4610 = vpop.permute.xlu0 %4609
    %4611 = vrot.lane.b32.xlu0 %v3410, 109
    %v4612 = vpop.permute.xlu0 %4611
    %4613 = vrot.lane.b32.xlu0 %v3411, 109
    %v4614 = vpop.permute.xlu0 %4613
    %v4615 = vsel %vm2027, %v4592, %v4594
    %v4616 = vsel %vm2027, %v4594, %v4596
    %v4617 = vsel %vm2027, %v4596, %v4598
    %v4618 = vsel %vm2027, %v4598, %v4600
    %v4619 = vsel %vm2027, %v4600, %v4602
    %v4620 = vsel %vm2027, %v4604, %v4606
    %v4621 = vsel %vm2027, %v4606, %v4608
    %v4622 = vsel %vm2027, %v4608, %v4610
    %v4623 = vsel %vm2027, %v4610, %v4612
    %v4624 = vsel %vm2027, %v4612, %v4614
    %v4638 = vsel %vm2746, %v4589, 0
    %v4641 = vsel %vm2746, %v4590, 0
    %4643 = vmatprep.subr.bf16.mxu0 %v4616
    %4644 = vmatpush1.bf16.msra.mxu0 %v4615
    %4645 = vmatprep.subr.bf16.mxu0 %v4621
    %4646 = vmatpush1.bf16.msra.mxu0 %v4620
    %4647 = vmatprep.subr.bf16.mxu0 0
    %4648 = vmatpush1.bf16.msra.mxu0 0
    %4649 = vmatprep.subr.bf16.mxu0 0
    %4650 = vmatpush1.bf16.msra.mxu0 0
    %4651 = vmatprep.subr.bf16.mxu0 0
    %4652 = vmatpush1.bf16.msra.mxu0 0
    %4653 = vmatprep.subr.bf16.mxu0 0
    %4654 = vmatpush1.bf16.msra.mxu0 0
    %4655 = vmatprep.subr.bf16.mxu0 0
    %4656 = vmatpush1.bf16.msra.mxu0 0
    %4657 = vmatprep.subr.bf16.mxu0 0
    %4658 = vmatpush1.bf16.msra.mxu0 0
    %4659 = vmatprep.subr.bf16.mxu0 0
    %4660 = vmatpush1.bf16.msra.mxu0 0
    %4661 = vmatprep.subr.bf16.mxu0 0
    %4662 = vmatpush1.bf16.msra.mxu0 0
    %4663 = vmatprep.subr.bf16.mxu0 0
    %4664 = vmatpush1.bf16.msra.mxu0 0
    %4665 = vmatprep.subr.bf16.mxu0 0
    %4666 = vmatpush1.bf16.msra.mxu0 0
    %4667 = vmatprep.subr.bf16.mxu0 0
    %4668 = vmatpush1.bf16.msra.mxu0 0
    %4669 = vmatprep.subr.bf16.mxu0 0
    %4670 = vmatpush1.bf16.msra.mxu0 0
    %4671 = vmatprep.subr.bf16.mxu0 0
    %4672 = vmatpush1.bf16.msra.mxu0 0
    %4673 = vmatprep.subr.bf16.mxu0 0
    %4674 = vmatpush1.bf16.msra.mxu0 0
    %4675 = vmatprep.mubr.bf16.mxu0 0
    %4676 = vmatmul.mubr.bf16.gmra.mrb[0].mxu0 %v4638
    %v4677 = vpop.f32.mrb[0].mxu0
    %v4678 = vadd.f32 0.0, %v4677
    %v4679 = vpop.f32.mrb[0].mxu0
    %v4680 = vadd.f32 0.0, %v4679
    %v4681 = vpop.f32.mrb[0].mxu0
    %v4682 = vadd.f32 0.0, %v4681
    %v4683 = vpop.f32.mrb[0].mxu0
    %v4684 = vadd.f32 0.0, %v4683
    %4685 = vmatprep.mubr.bf16.mxu0 0
    %4686 = vmatmul.mubr.bf16.gmra.mrb[0].mxu0 %v4641
    %v4687 = vpop.f32.mrb[0].mxu0
    %v4688 = vadd.f32 0.0, %v4687
    %v4689 = vpop.f32.mrb[0].mxu0
    %v4690 = vadd.f32 0.0, %v4689
    %v4691 = vpop.f32.mrb[0].mxu0
    %v4692 = vadd.f32 0.0, %v4691
    %v4693 = vpop.f32.mrb[0].mxu0
    %v4694 = vadd.f32 0.0, %v4693
    %4695 = vdwg.mxu0
    %4696 = vmatprep.subr.bf16.mxu0 %v4618
    %4697 = vmatpush1.bf16.msra.mxu0 %v4617
    %4698 = vmatprep.subr.bf16.mxu0 %v4623
    %4699 = vmatpush1.bf16.msra.mxu0 %v4622
    %4700 = vmatprep.subr.bf16.mxu0 0
    %4701 = vmatpush1.bf16.msra.mxu0 0
    %4702 = vmatprep.subr.bf16.mxu0 0
    %4703 = vmatpush1.bf16.msra.mxu0 0
    %4704 = vmatprep.subr.bf16.mxu0 0
    %4705 = vmatpush1.bf16.msra.mxu0 0
    %4706 = vmatprep.subr.bf16.mxu0 0
    %4707 = vmatpush1.bf16.msra.mxu0 0
    %4708 = vmatprep.subr.bf16.mxu0 0
    %4709 = vmatpush1.bf16.msra.mxu0 0
    %4710 = vmatprep.subr.bf16.mxu0 0
    %4711 = vmatpush1.bf16.msra.mxu0 0
    %4712 = vmatprep.subr.bf16.mxu0 0
    %4713 = vmatpush1.bf16.msra.mxu0 0
    %4714 = vmatprep.subr.bf16.mxu0 0
    %4715 = vmatpush1.bf16.msra.mxu0 0
    %4716 = vmatprep.subr.bf16.mxu0 0
    %4717 = vmatpush1.bf16.msra.mxu0 0
    %4718 = vmatprep.subr.bf16.mxu0 0
    %4719 = vmatpush1.bf16.msra.mxu0 0
    %4720 = vmatprep.subr.bf16.mxu0 0
    %4721 = vmatpush1.bf16.msra.mxu0 0
    %4722 = vmatprep.subr.bf16.mxu0 0
    %4723 = vmatpush1.bf16.msra.mxu0 0
    %4724 = vmatprep.subr.bf16.mxu0 0
    %4725 = vmatpush1.bf16.msra.mxu0 0
    %4726 = vmatprep.subr.bf16.mxu0 0
    %4727 = vmatpush1.bf16.msra.mxu0 0
    %4728 = vmatprep.mubr.bf16.mxu0 0
    %4729 = vmatmul.mubr.bf16.gmra.mrb[0].mxu0 %v4638
    %v4730 = vpop.f32.mrb[0].mxu0
    %v4731 = vadd.f32 0.0, %v4730
    %v4732 = vpop.f32.mrb[0].mxu0
    %v4733 = vadd.f32 0.0, %v4732
    %v4734 = vpop.f32.mrb[0].mxu0
    %v4735 = vadd.f32 0.0, %v4734
    %v4736 = vpop.f32.mrb[0].mxu0
    %v4737 = vadd.f32 0.0, %v4736
    %4738 = vmatprep.mubr.bf16.mxu0 0
    %4739 = vmatmul.mubr.bf16.gmra.mrb[0].mxu0 %v4641
    %v4740 = vpop.f32.mrb[0].mxu0
    %v4741 = vadd.f32 0.0, %v4740
    %v4742 = vpop.f32.mrb[0].mxu0
    %v4743 = vadd.f32 0.0, %v4742
    %v4744 = vpop.f32.mrb[0].mxu0
    %v4745 = vadd.f32 0.0, %v4744
    %v4746 = vpop.f32.mrb[0].mxu0
    %v4747 = vadd.f32 0.0, %v4746
    %4748 = vdwg.mxu0
    %4749 = vmatprep.subr.bf16.mxu0 %v4602
    %4750 = vmatpush1.bf16.msra.mxu0 %v4619
    %4751 = vmatprep.subr.bf16.mxu0 %v4614
    %4752 = vmatpush1.bf16.msra.mxu0 %v4624
    %4753 = vmatprep.subr.bf16.mxu0 0
    %4754 = vmatpush1.bf16.msra.mxu0 0
    %4755 = vmatprep.subr.bf16.mxu0 0
    %4756 = vmatpush1.bf16.msra.mxu0 0
    %4757 = vmatprep.subr.bf16.mxu0 0
    %4758 = vmatpush1.bf16.msra.mxu0 0
    %4759 = vmatprep.subr.bf16.mxu0 0
    %4760 = vmatpush1.bf16.msra.mxu0 0
    %4761 = vmatprep.subr.bf16.mxu0 0
    %4762 = vmatpush1.bf16.msra.mxu0 0
    %4763 = vmatprep.subr.bf16.mxu0 0
    %4764 = vmatpush1.bf16.msra.mxu0 0
    %4765 = vmatprep.subr.bf16.mxu0 0
    %4766 = vmatpush1.bf16.msra.mxu0 0
    %4767 = vmatprep.subr.bf16.mxu0 0
    %4768 = vmatpush1.bf16.msra.mxu0 0
    %4769 = vmatprep.subr.bf16.mxu0 0
    %4770 = vmatpush1.bf16.msra.mxu0 0
    %4771 = vmatprep.subr.bf16.mxu0 0
    %4772 = vmatpush1.bf16.msra.mxu0 0
    %4773 = vmatprep.subr.bf16.mxu0 0
    %4774 = vmatpush1.bf16.msra.mxu0 0
    %4775 = vmatprep.subr.bf16.mxu0 0
    %4776 = vmatpush1.bf16.msra.mxu0 0
    %4777 = vmatprep.subr.bf16.mxu0 0
    %4778 = vmatpush1.bf16.msra.mxu0 0
    %4779 = vmatprep.subr.bf16.mxu0 0
    %4780 = vmatpush1.bf16.msra.mxu0 0
    %4781 = vmatprep.mubr.bf16.mxu0 0
    %4782 = vmatmul.mubr.bf16.gmra.mrb[0].mxu0 %v4638
    %v4783 = vpop.f32.mrb[0].mxu0
    %v4784 = vadd.f32 0.0, %v4783
    %v4785 = vpop.f32.mrb[0].mxu0
    %v4786 = vadd.f32 0.0, %v4785
    %v4787 = vpop.f32.mrb[0].mxu0
    %v4788 = vadd.f32 0.0, %v4787
    %v4789 = vpop.f32.mrb[0].mxu0
    %v4790 = vadd.f32 0.0, %v4789
    %4791 = vmatprep.mubr.bf16.mxu0 0
    %4792 = vmatmul.mubr.bf16.gmra.mrb[0].mxu0 %v4641
    %v4793 = vpop.f32.mrb[0].mxu0
    %v4794 = vadd.f32 0.0, %v4793
    %v4795 = vpop.f32.mrb[0].mxu0
    %v4796 = vadd.f32 0.0, %v4795
    %v4797 = vpop.f32.mrb[0].mxu0
    %v4798 = vadd.f32 0.0, %v4797
    %v4799 = vpop.f32.mrb[0].mxu0
    %v4800 = vadd.f32 0.0, %v4799
    %4801 = vdwg.mxu0
    %v4802 = vadd.f32 %v4561, %v4678
    %v4803 = vadd.f32 %v4562, %v4680
    %v4804 = vadd.f32 %v4563, %v4731
    %v4805 = vadd.f32 %v4564, %v4733
    %v4806 = vadd.f32 %v4565, %v4784
    %v4807 = vadd.f32 %v4566, %v4786
    %v4808 = vadd.f32 %v4567, %v4682
    %v4809 = vadd.f32 %v4568, %v4684
    %v4810 = vadd.f32 %v4569, %v4735
    %v4811 = vadd.f32 %v4570, %v4737
    %v4812 = vadd.f32 %v4571, %v4788
    %v4813 = vadd.f32 %v4572, %v4790
    %v4814 = vadd.f32 %v4573, %v4688
    %v4815 = vadd.f32 %v4574, %v4690
    %v4816 = vadd.f32 %v4575, %v4741
    %v4817 = vadd.f32 %v4576, %v4743
    %v4818 = vadd.f32 %v4577, %v4794
    %v4819 = vadd.f32 %v4578, %v4796
    %v4820 = vadd.f32 %v4579, %v4692
    %v4821 = vadd.f32 %v4580, %v4694
    %v4822 = vadd.f32 %v4581, %v4745
    %v4823 = vadd.f32 %v4582, %v4747
    %v4824 = vadd.f32 %v4583, %v4798
    %v4825 = vadd.f32 %v4584, %v4800
    %v4826 = vld [vmem:[%s9] sm:$0xff]
    %v4827 = vld [vmem:[%s9 + $0x8] sm:$0xff]
    %v4828 = vld [vmem:[%s9 + $0x10] sm:$0xff]
    %v4829 = vld [vmem:[%s9 + $0x18] sm:$0xff]
    %4831 = vset.pattern.permute.xlu0 0
    %4832 = vperm.xlu0 %4831, %v4826
    %v4833 = vpop.permute.xlu0 %4832
    %4836 = vset.pattern.permute.xlu0 0
    %4837 = vperm.xlu0 %4836, %v4827
    %v4838 = vpop.permute.xlu0 %4837
    %4841 = vset.pattern.permute.xlu0 0
    %4842 = vperm.xlu0 %4841, %v4828
    %v4843 = vpop.permute.xlu0 %4842
    %4846 = vset.pattern.permute.xlu0 0
    %4847 = vperm.xlu0 %4846, %v4829
    %v4848 = vpop.permute.xlu0 %4847
    %v4850 = vadd.f32 %v4802, %v4833
    %v4851 = vadd.f32 %v4803, %v4833
    %v4852 = vadd.f32 %v4804, %v4833
    %v4853 = vadd.f32 %v4805, %v4833
    %v4854 = vadd.f32 %v4806, %v4833
    %v4855 = vadd.f32 %v4807, %v4833
    %v4856 = vadd.f32 %v4808, %v4838
    %v4857 = vadd.f32 %v4809, %v4838
    %v4858 = vadd.f32 %v4810, %v4838
    %v4859 = vadd.f32 %v4811, %v4838
    %v4860 = vadd.f32 %v4812, %v4838
    %v4861 = vadd.f32 %v4813, %v4838
    %v4862 = vadd.f32 %v4814, %v4843
    %v4863 = vadd.f32 %v4815, %v4843
    %v4864 = vadd.f32 %v4816, %v4843
    %v4865 = vadd.f32 %v4817, %v4843
    %v4866 = vadd.f32 %v4818, %v4843
    %v4867 = vadd.f32 %v4819, %v4843
    %v4868 = vadd.f32 %v4820, %v4848
    %v4869 = vadd.f32 %v4821, %v4848
    %v4870 = vadd.f32 %v4822, %v4848
    %v4871 = vadd.f32 %v4823, %v4848
    %v4872 = vadd.f32 %v4824, %v4848
    %v4873 = vadd.f32 %v4825, %v4848
    %v4874 = vld [vmem:[%s12] sm:$0xff]
    %v4875 = vld [vmem:[%s12 + $0x8] sm:$0xff]
    %v4876 = vld [vmem:[%s12 + $0x10] sm:$0xff]
    %v4877 = vld [vmem:[%s12 + $0x18] sm:$0xff]
    %v4878 = vld [vmem:[%s12 + $0x20] sm:$0xff]
    %v4879 = vld [vmem:[%s12 + $0x28] sm:$0xff]
    %v4880 = vld [vmem:[%s12 + $0x30] sm:$0xff]
    %v4881 = vld [vmem:[%s12 + $0x38] sm:$0xff]
    %v4882 = vld [vmem:[%s12 + $0x40] sm:$0xff]
    %v4883 = vld [vmem:[%s12 + $0x48] sm:$0xff]
    %v4884 = vld [vmem:[%s12 + $0x50] sm:$0xff]
    %v4885 = vld [vmem:[%s12 + $0x58] sm:$0xff]
    %v4886 = vld [vmem:[%s12 + $0x60] sm:$0xff]
    %v4887 = vld [vmem:[%s12 + $0x68] sm:$0xff]
    %v4888 = vld [vmem:[%s12 + $0x70] sm:$0xff]
    %v4889 = vld [vmem:[%s12 + $0x78] sm:$0xff]
    %v4890 = vld [vmem:[%s12 + $0x80] sm:$0xff]
    %v4891 = vld [vmem:[%s12 + $0x88] sm:$0xff]
    %v4892 = vld [vmem:[%s12 + $0x90] sm:$0xff]
    %v4893 = vld [vmem:[%s12 + $0x98] sm:$0xff]
    %v4894 = vld [vmem:[%s12 + $0xa0] sm:$0xff]
    %v4895 = vld [vmem:[%s12 + $0xa8] sm:$0xff]
    %v4896 = vld [vmem:[%s12 + $0xb0] sm:$0xff]
    %v4897 = vld [vmem:[%s12 + $0xb8] sm:$0xff]
    %v4898 = vld [vmem:[%s12 + $0xc0] sm:$0xff]
    %v4899 = vld [vmem:[%s12 + $0xc8] sm:$0xff]
    %v4900 = vld [vmem:[%s12 + $0xd0] sm:$0xff]
    %v4901 = vld [vmem:[%s12 + $0xd8] sm:$0xff]
    %v4902 = vld [vmem:[%s12 + $0xe0] sm:$0xff]
    %v4903 = vld [vmem:[%s12 + $0xe8] sm:$0xff]
    %v4904 = vld [vmem:[%s12 + $0xf0] sm:$0xff]
    %v4905 = vld [vmem:[%s12 + $0xf8] sm:$0xff]
    %v4906 = vld [vmem:[%s12 + $0x100] sm:$0xff]
    %v4907 = vld [vmem:[%s12 + $0x108] sm:$0xff]
    %v4908 = vld [vmem:[%s12 + $0x110] sm:$0xff]
    %v4909 = vld [vmem:[%s12 + $0x118] sm:$0xff]
    %v4910 = vld [vmem:[%s12 + $0x120] sm:$0xff]
    %v4911 = vld [vmem:[%s12 + $0x128] sm:$0xff]
    %v4912 = vld [vmem:[%s12 + $0x130] sm:$0xff]
    %v4913 = vld [vmem:[%s12 + $0x138] sm:$0xff]
    %v4914 = vld [vmem:[%s12 + $0x140] sm:$0xff]
    %v4915 = vld [vmem:[%s12 + $0x148] sm:$0xff]
    %v4916 = vld [vmem:[%s12 + $0x150] sm:$0xff]
    %v4917 = vld [vmem:[%s12 + $0x158] sm:$0xff]
    %v4918 = vld [vmem:[%s12 + $0x160] sm:$0xff]
    %v4919 = vld [vmem:[%s12 + $0x168] sm:$0xff]
    %v4920 = vld [vmem:[%s12 + $0x170] sm:$0xff]
    %v4921 = vld [vmem:[%s12 + $0x178] sm:$0xff]
    %v4922 = vld [vmem:[%s12 + $0x180] sm:$0xff]
    %v4923 = vld [vmem:[%s12 + $0x188] sm:$0xff]
    %v4924 = vld [vmem:[%s12 + $0x190] sm:$0xff]
    %v4925 = vld [vmem:[%s12 + $0x198] sm:$0xff]
    %v4926 = vld [vmem:[%s12 + $0x1a0] sm:$0xff]
    %v4927 = vld [vmem:[%s12 + $0x1a8] sm:$0xff]
    %v4928 = vld [vmem:[%s12 + $0x1b0] sm:$0xff]
    %v4929 = vld [vmem:[%s12 + $0x1b8] sm:$0xff]
    %v4930 = vld [vmem:[%s12 + $0x1c0] sm:$0xff]
    %v4931 = vld [vmem:[%s12 + $0x1c8] sm:$0xff]
    %v4932 = vld [vmem:[%s12 + $0x1d0] sm:$0xff]
    %v4933 = vld [vmem:[%s12 + $0x1d8] sm:$0xff]
    %v4934 = vld [vmem:[%s12 + $0x1e0] sm:$0xff]
    %v4935 = vld [vmem:[%s12 + $0x1e8] sm:$0xff]
    %v4936 = vld [vmem:[%s12 + $0x1f0] sm:$0xff]
    %v4937 = vld [vmem:[%s12 + $0x1f8] sm:$0xff]
    %v4938 = vld [vmem:[%s12 + $0x200] sm:$0xff]
    %v4939 = vld [vmem:[%s12 + $0x208] sm:$0xff]
    %v4940 = vld [vmem:[%s12 + $0x210] sm:$0xff]
    %v4941 = vld [vmem:[%s12 + $0x218] sm:$0xff]
    %v4942 = vld [vmem:[%s12 + $0x220] sm:$0xff]
    %v4943 = vld [vmem:[%s12 + $0x228] sm:$0xff]
    %v4944 = vld [vmem:[%s12 + $0x230] sm:$0xff]
    %v4945 = vld [vmem:[%s12 + $0x238] sm:$0xff]
    %v4946 = vld [vmem:[%s12 + $0x240] sm:$0xff]
    %v4947 = vld [vmem:[%s12 + $0x248] sm:$0xff]
    %v4948 = vld [vmem:[%s12 + $0x250] sm:$0xff]
    %v4949 = vld [vmem:[%s12 + $0x258] sm:$0xff]
    %v4950 = vld [vmem:[%s12 + $0x260] sm:$0xff]
    %v4951 = vld [vmem:[%s12 + $0x268] sm:$0xff]
    %v4952 = vld [vmem:[%s12 + $0x270] sm:$0xff]
    %v4953 = vld [vmem:[%s12 + $0x278] sm:$0xff]
    %v4954 = vld [vmem:[%s12 + $0x280] sm:$0xff]
    %v4956 = vsel %vm110, %v51, 0
    %v4959 = vsel %vm110, %v57, 0
    %4961 = vmatprep.subr.mxu0 0.0
    %4962 = vmatpush1.msra.mxu0 %v4874
    %4963 = vmatprep.subr.mxu0 0.0
    %4964 = vmatpush1.msra.mxu0 %v4875
    %4965 = vmatprep.subr.mxu0 0.0
    %4966 = vmatpush1.msra.mxu0 %v4876
    %4967 = vmatprep.subr.mxu0 0.0
    %4968 = vmatpush1.msra.mxu0 %v4877
    %4969 = vmatprep.subr.mxu0 0.0
    %4970 = vmatpush1.msra.mxu0 %v4878
    %4971 = vmatprep.subr.mxu0 0.0
    %4972 = vmatpush1.msra.mxu0 %v4879
    %4973 = vmatprep.subr.mxu0 0.0
    %4974 = vmatpush1.msra.mxu0 %v4880
    %4975 = vmatprep.subr.mxu0 0.0
    %4976 = vmatpush1.msra.mxu0 %v4881
    %4977 = vmatprep.subr.mxu0 0.0
    %4978 = vmatpush1.msra.mxu0 %v4882
    %4979 = vmatprep.subr.mxu0 0.0
    %4980 = vmatpush1.msra.mxu0 %v4883
    %4981 = vmatprep.subr.mxu0 0.0
    %4982 = vmatpush1.msra.mxu0 %v4884
    %4983 = vmatprep.subr.mxu0 0.0
    %4984 = vmatpush1.msra.mxu0 %v4885
    %4985 = vmatprep.subr.mxu0 0.0
    %4986 = vmatpush1.msra.mxu0 %v4886
    %4987 = vmatprep.subr.mxu0 0.0
    %4988 = vmatpush1.msra.mxu0 %v4887
    %4989 = vmatprep.subr.mxu0 0.0
    %4990 = vmatpush1.msra.mxu0 %v4888
    %4991 = vmatprep.subr.mxu0 0.0
    %4992 = vmatpush1.msra.mxu0 %v4889
    %4993 = vmatprep.subr.mxu0 0.0
    %4994 = vmatpush1.msra.mxu0 %v4890
    %4995 = vmatprep.subr.mxu0 0.0
    %4996 = vmatpush1.msra.mxu0 %v4891
    %4997 = vmatprep.subr.mxu0 0.0
    %4998 = vmatpush1.msra.mxu0 %v4892
    %4999 = vmatprep.subr.mxu0 0.0
    %5000 = vmatpush1.msra.mxu0 %v4893
    %5001 = vmatprep.subr.mxu0 0.0
    %5002 = vmatpush1.msra.mxu0 %v4894
    %5003 = vmatprep.subr.mxu0 0.0
    %5004 = vmatpush1.msra.mxu0 %v4895
    %5005 = vmatprep.subr.mxu0 0.0
    %5006 = vmatpush1.msra.mxu0 %v4896
    %5007 = vmatprep.subr.mxu0 0.0
    %5008 = vmatpush1.msra.mxu0 %v4897
    %5009 = vmatprep.subr.mxu0 0.0
    %5010 = vmatpush1.msra.mxu0 %v4898
    %5011 = vmatprep.subr.mxu0 0.0
    %5012 = vmatpush1.msra.mxu0 %v4899
    %5013 = vmatprep.subr.mxu0 0.0
    %5014 = vmatpush1.msra.mxu0 %v4900
    %5015 = vmatprep.subr.mxu0 0.0
    %5016 = vmatpush1.msra.mxu0 %v4901
    %5017 = vmatprep.subr.mxu0 0.0
    %5018 = vmatpush1.msra.mxu0 %v4902
    %5019 = vmatprep.subr.mxu0 0.0
    %5020 = vmatpush1.msra.mxu0 %v4903
    %5021 = vmatprep.subr.mxu0 0.0
    %5022 = vmatpush1.msra.mxu0 %v4904
    %5023 = vmatprep.subr.mxu0 0.0
    %5024 = vmatpush1.msra.mxu0 %v4905
    %5025 = vmatprep.mubr.f32.mxu0 %v47
    %5026 = vmatmul.mubr.f32.gmra.mrb[0].mxu0 %v46
    %v5027 = vpop.f32.mrb[0].mxu0
    %v5028 = vadd.f32 0.0, %v5027
    %v5029 = vpop.f32.mrb[0].mxu0
    %5030 = vmatprep.mubr.f32.mxu0 %v53
    %5031 = vmatmul.mubr.f32.gmra.mrb[0].mxu0 %v52
    %v5032 = vpop.f32.mrb[0].mxu0
    %v5033 = vadd.f32 0.0, %v5032
    %v5034 = vpop.f32.mrb[0].mxu0
    %5035 = vdwg.mxu0
    %5036 = vmatprep.subr.mxu0 0.0
    %5037 = vmatpush1.msra.mxu0 %v4906
    %5038 = vmatprep.subr.mxu0 0.0
    %5039 = vmatpush1.msra.mxu0 %v4907
    %5040 = vmatprep.subr.mxu0 0.0
    %5041 = vmatpush1.msra.mxu0 %v4908
    %5042 = vmatprep.subr.mxu0 0.0
    %5043 = vmatpush1.msra.mxu0 %v4909
    %5044 = vmatprep.subr.mxu0 0.0
    %5045 = vmatpush1.msra.mxu0 %v4910
    %5046 = vmatprep.subr.mxu0 0.0
    %5047 = vmatpush1.msra.mxu0 %v4911
    %5048 = vmatprep.subr.mxu0 0.0
    %5049 = vmatpush1.msra.mxu0 %v4912
    %5050 = vmatprep.subr.mxu0 0.0
    %5051 = vmatpush1.msra.mxu0 %v4913
    %5052 = vmatprep.subr.mxu0 0.0
    %5053 = vmatpush1.msra.mxu0 %v4914
    %5054 = vmatprep.subr.mxu0 0.0
    %5055 = vmatpush1.msra.mxu0 %v4915
    %5056 = vmatprep.subr.mxu0 0.0
    %5057 = vmatpush1.msra.mxu0 %v4916
    %5058 = vmatprep.subr.mxu0 0.0
    %5059 = vmatpush1.msra.mxu0 %v4917
    %5060 = vmatprep.subr.mxu0 0.0
    %5061 = vmatpush1.msra.mxu0 %v4918
    %5062 = vmatprep.subr.mxu0 0.0
    %5063 = vmatpush1.msra.mxu0 %v4919
    %5064 = vmatprep.subr.mxu0 0.0
    %5065 = vmatpush1.msra.mxu0 %v4920
    %5066 = vmatprep.subr.mxu0 0.0
    %5067 = vmatpush1.msra.mxu0 %v4921
    %5068 = vmatprep.subr.mxu0 0.0
    %5069 = vmatpush1.msra.mxu0 %v4922
    %5070 = vmatprep.subr.mxu0 0.0
    %5071 = vmatpush1.msra.mxu0 %v4923
    %5072 = vmatprep.subr.mxu0 0.0
    %5073 = vmatpush1.msra.mxu0 %v4924
    %5074 = vmatprep.subr.mxu0 0.0
    %5075 = vmatpush1.msra.mxu0 %v4925
    %5076 = vmatprep.subr.mxu0 0.0
    %5077 = vmatpush1.msra.mxu0 %v4926
    %5078 = vmatprep.subr.mxu0 0.0
    %5079 = vmatpush1.msra.mxu0 %v4927
    %5080 = vmatprep.subr.mxu0 0.0
    %5081 = vmatpush1.msra.mxu0 %v4928
    %5082 = vmatprep.subr.mxu0 0.0
    %5083 = vmatpush1.msra.mxu0 %v4929
    %5084 = vmatprep.subr.mxu0 0.0
    %5085 = vmatpush1.msra.mxu0 %v4930
    %5086 = vmatprep.subr.mxu0 0.0
    %5087 = vmatpush1.msra.mxu0 %v4931
    %5088 = vmatprep.subr.mxu0 0.0
    %5089 = vmatpush1.msra.mxu0 %v4932
    %5090 = vmatprep.subr.mxu0 0.0
    %5091 = vmatpush1.msra.mxu0 %v4933
    %5092 = vmatprep.subr.mxu0 0.0
    %5093 = vmatpush1.msra.mxu0 %v4934
    %5094 = vmatprep.subr.mxu0 0.0
    %5095 = vmatpush1.msra.mxu0 %v4935
    %5096 = vmatprep.subr.mxu0 0.0
    %5097 = vmatpush1.msra.mxu0 %v4936
    %5098 = vmatprep.subr.mxu0 0.0
    %5099 = vmatpush1.msra.mxu0 %v4937
    %5100 = vmatprep.mubr.f32.mxu0 %v49
    %5101 = vmatmul.mubr.f32.gmra.mrb[0].mxu0 %v48
    %v5102 = vpop.f32.mrb[0].mxu0
    %v5103 = vadd.f32 %v5028, %v5102
    %v5104 = vpop.f32.mrb[0].mxu0
    %5105 = vmatprep.mubr.f32.mxu0 %v55
    %5106 = vmatmul.mubr.f32.gmra.mrb[0].mxu0 %v54
    %v5107 = vpop.f32.mrb[0].mxu0
    %v5108 = vadd.f32 %v5033, %v5107
    %v5109 = vpop.f32.mrb[0].mxu0
    %5110 = vdwg.mxu0
    %5111 = vmatprep.subr.mxu0 0.0
    %5112 = vmatpush1.msra.mxu0 %v4938
    %5113 = vmatprep.subr.mxu0 0.0
    %5114 = vmatpush1.msra.mxu0 %v4939
    %5115 = vmatprep.subr.mxu0 0.0
    %5116 = vmatpush1.msra.mxu0 %v4940
    %5117 = vmatprep.subr.mxu0 0.0
    %5118 = vmatpush1.msra.mxu0 %v4941
    %5119 = vmatprep.subr.mxu0 0.0
    %5120 = vmatpush1.msra.mxu0 %v4942
    %5121 = vmatprep.subr.mxu0 0.0
    %5122 = vmatpush1.msra.mxu0 %v4943
    %5123 = vmatprep.subr.mxu0 0.0
    %5124 = vmatpush1.msra.mxu0 %v4944
    %5125 = vmatprep.subr.mxu0 0.0
    %5126 = vmatpush1.msra.mxu0 %v4945
    %5127 = vmatprep.subr.mxu0 0.0
    %5128 = vmatpush1.msra.mxu0 %v4946
    %5129 = vmatprep.subr.mxu0 0.0
    %5130 = vmatpush1.msra.mxu0 %v4947
    %5131 = vmatprep.subr.mxu0 0.0
    %5132 = vmatpush1.msra.mxu0 %v4948
    %5133 = vmatprep.subr.mxu0 0.0
    %5134 = vmatpush1.msra.mxu0 %v4949
    %5135 = vmatprep.subr.mxu0 0.0
    %5136 = vmatpush1.msra.mxu0 %v4950
    %5137 = vmatprep.subr.mxu0 0.0
    %5138 = vmatpush1.msra.mxu0 %v4951
    %5139 = vmatprep.subr.mxu0 0.0
    %5140 = vmatpush1.msra.mxu0 %v4952
    %5141 = vmatprep.subr.mxu0 0.0
    %5142 = vmatpush1.msra.mxu0 %v4953
    %5143 = vmatprep.subr.mxu0 0.0
    %5144 = vmatpush1.msra.mxu0 %v4954
    %5145 = vmatprep.subr.mxu0 0.0
    %5146 = vmatpush1.msra.mxu0 0.0
    %5147 = vmatprep.subr.mxu0 0.0
    %5148 = vmatpush1.msra.mxu0 0.0
    %5149 = vmatprep.subr.mxu0 0.0
    %5150 = vmatpush1.msra.mxu0 0.0
    %5151 = vmatprep.subr.mxu0 0.0
    %5152 = vmatpush1.msra.mxu0 0.0
    %5153 = vmatprep.subr.mxu0 0.0
    %5154 = vmatpush1.msra.mxu0 0.0
    %5155 = vmatprep.subr.mxu0 0.0
    %5156 = vmatpush1.msra.mxu0 0.0
    %5157 = vmatprep.subr.mxu0 0.0
    %5158 = vmatpush1.msra.mxu0 0.0
    %5159 = vmatprep.subr.mxu0 0.0
    %5160 = vmatpush1.msra.mxu0 0.0
    %5161 = vmatprep.subr.mxu0 0.0
    %5162 = vmatpush1.msra.mxu0 0.0
    %5163 = vmatprep.subr.mxu0 0.0
    %5164 = vmatpush1.msra.mxu0 0.0
    %5165 = vmatprep.subr.mxu0 0.0
    %5166 = vmatpush1.msra.mxu0 0.0
    %5167 = vmatprep.subr.mxu0 0.0
    %5168 = vmatpush1.msra.mxu0 0.0
    %5169 = vmatprep.subr.mxu0 0.0
    %5170 = vmatpush1.msra.mxu0 0.0
    %5171 = vmatprep.subr.mxu0 0.0
    %5172 = vmatpush1.msra.mxu0 0.0
    %5173 = vmatprep.subr.mxu0 0.0
    %5174 = vmatpush1.msra.mxu0 0.0
    %5175 = vmatprep.mubr.f32.mxu0 %v4956
    %5176 = vmatmul.mubr.f32.gmra.mrb[0].mxu0 %v50
    %v5177 = vpop.f32.mrb[0].mxu0
    %v5178 = vadd.f32 %v5103, %v5177
    %v5179 = vpop.f32.mrb[0].mxu0
    %5180 = vmatprep.mubr.f32.mxu0 %v4959
    %5181 = vmatmul.mubr.f32.gmra.mrb[0].mxu0 %v56
    %v5182 = vpop.f32.mrb[0].mxu0
    %v5183 = vadd.f32 %v5108, %v5182
    %v5184 = vpop.f32.mrb[0].mxu0
    %5185 = vdwg.mxu0
    %v5186 = vld [vmem:[%s10] sm:$0xff]
    %v5187 = vld [vmem:[%s10 + $0x8] sm:$0xff]
    %v5188 = vld [vmem:[%s10 + $0x10] sm:$0xff]
    %v5189 = vld [vmem:[%s10 + $0x18] sm:$0xff]
    %v5190 = vld [vmem:[%s11] sm:$0xff]
    %v5191 = vld [vmem:[%s11 + $0x8] sm:$0xff]
    %v5192 = vld [vmem:[%s11 + $0x10] sm:$0xff]
    %v5193 = vld [vmem:[%s11 + $0x18] sm:$0xff]
    %5195 = vset.pattern.permute.xlu0 0
    %5196 = vperm.xlu0 %5195, %v5190
    %v5197 = vpop.permute.xlu0 %5196
    %5200 = vset.pattern.permute.xlu0 0
    %5201 = vperm.xlu0 %5200, %v5191
    %v5202 = vpop.permute.xlu0 %5201
    %5205 = vset.pattern.permute.xlu0 0
    %5206 = vperm.xlu0 %5205, %v5192
    %v5207 = vpop.permute.xlu0 %5206
    %5210 = vset.pattern.permute.xlu0 0
    %5211 = vperm.xlu0 %5210, %v5193
    %v5212 = vpop.permute.xlu0 %5211
    %v5215 = vsel %vm333, %v5186, 0
    %v5218 = vsel %vm333, %v5187, 0
    %v5221 = vsel %vm333, %v5188, 0
    %v5224 = vsel %vm333, %v5189, 0
    %5226 = vmatprep.subr.mxu0 0.0
    %5227 = vmatpush1.msra.mxu0 %v5178
    %5228 = vmatprep.subr.mxu0 0.0
    %5229 = vmatpush1.msra.mxu0 %v5183
    %5230 = vmatprep.subr.mxu0 0.0
    %5231 = vmatpush1.msra.mxu0 0.0
    %5232 = vmatprep.subr.mxu0 0.0
    %5233 = vmatpush1.msra.mxu0 0.0
    %5234 = vmatprep.subr.mxu0 0.0
    %5235 = vmatpush1.msra.mxu0 0.0
    %5236 = vmatprep.subr.mxu0 0.0
    %5237 = vmatpush1.msra.mxu0 0.0
    %5238 = vmatprep.subr.mxu0 0.0
    %5239 = vmatpush1.msra.mxu0 0.0
    %5240 = vmatprep.subr.mxu0 0.0
    %5241 = vmatpush1.msra.mxu0 0.0
    %5242 = vmatprep.subr.mxu0 0.0
    %5243 = vmatpush1.msra.mxu0 0.0
    %5244 = vmatprep.subr.mxu0 0.0
    %5245 = vmatpush1.msra.mxu0 0.0
    %5246 = vmatprep.subr.mxu0 0.0
    %5247 = vmatpush1.msra.mxu0 0.0
    %5248 = vmatprep.subr.mxu0 0.0
    %5249 = vmatpush1.msra.mxu0 0.0
    %5250 = vmatprep.subr.mxu0 0.0
    %5251 = vmatpush1.msra.mxu0 0.0
    %5252 = vmatprep.subr.mxu0 0.0
    %5253 = vmatpush1.msra.mxu0 0.0
    %5254 = vmatprep.subr.mxu0 0.0
    %5255 = vmatpush1.msra.mxu0 0.0
    %5256 = vmatprep.subr.mxu0 0.0
    %5257 = vmatpush1.msra.mxu0 0.0
    %5258 = vmatprep.subr.mxu0 0.0
    %5259 = vmatpush1.msra.mxu0 0.0
    %5260 = vmatprep.subr.mxu0 0.0
    %5261 = vmatpush1.msra.mxu0 0.0
    %5262 = vmatprep.subr.mxu0 0.0
    %5263 = vmatpush1.msra.mxu0 0.0
    %5264 = vmatprep.subr.mxu0 0.0
    %5265 = vmatpush1.msra.mxu0 0.0
    %5266 = vmatprep.subr.mxu0 0.0
    %5267 = vmatpush1.msra.mxu0 0.0
    %5268 = vmatprep.subr.mxu0 0.0
    %5269 = vmatpush1.msra.mxu0 0.0
    %5270 = vmatprep.subr.mxu0 0.0
    %5271 = vmatpush1.msra.mxu0 0.0
    %5272 = vmatprep.subr.mxu0 0.0
    %5273 = vmatpush1.msra.mxu0 0.0
    %5274 = vmatprep.subr.mxu0 0.0
    %5275 = vmatpush1.msra.mxu0 0.0
    %5276 = vmatprep.subr.mxu0 0.0
    %5277 = vmatpush1.msra.mxu0 0.0
    %5278 = vmatprep.subr.mxu0 0.0
    %5279 = vmatpush1.msra.mxu0 0.0
    %5280 = vmatprep.subr.mxu0 0.0
    %5281 = vmatpush1.msra.mxu0 0.0
    %5282 = vmatprep.subr.mxu0 0.0
    %5283 = vmatpush1.msra.mxu0 0.0
    %5284 = vmatprep.subr.mxu0 0.0
    %5285 = vmatpush1.msra.mxu0 0.0
    %5286 = vmatprep.subr.mxu0 0.0
    %5287 = vmatpush1.msra.mxu0 0.0
    %5288 = vmatprep.subr.mxu0 0.0
    %5289 = vmatpush1.msra.mxu0 0.0
    %5290 = vmatprep.mubr.f32.mxu0 0.0
    %5291 = vmatmul.mubr.f32.gmra.mrb[0].mxu0 %v5215
    %v5292 = vpop.f32.mrb[0].mxu0
    %v5293 = vadd.f32 %v5197, %v5292
    %v5294 = vpop.f32.mrb[0].mxu0
    %5295 = vmatprep.mubr.f32.mxu0 0.0
    %5296 = vmatmul.mubr.f32.gmra.mrb[0].mxu0 %v5218
    %v5297 = vpop.f32.mrb[0].mxu0
    %v5298 = vadd.f32 %v5202, %v5297
    %v5299 = vpop.f32.mrb[0].mxu0
    %5300 = vmatprep.mubr.f32.mxu0 0.0
    %5301 = vmatmul.mubr.f32.gmra.mrb[0].mxu0 %v5221
    %v5302 = vpop.f32.mrb[0].mxu0
    %v5303 = vadd.f32 %v5207, %v5302
    %v5304 = vpop.f32.mrb[0].mxu0
    %5305 = vmatprep.mubr.f32.mxu0 0.0
    %5306 = vmatmul.mubr.f32.gmra.mrb[0].mxu0 %v5224
    %v5307 = vpop.f32.mrb[0].mxu0
    %v5308 = vadd.f32 %v5212, %v5307
    %v5309 = vpop.f32.mrb[0].mxu0
    %5310 = vdwg.mxu0
    %v5312 = vsel %vm110, %v4855, 0
    %v5315 = vsel %vm110, %v4861, 0
    %v5318 = vsel %vm110, %v4867, 0
    %v5321 = vsel %vm110, %v4873, 0
    %5323 = vmatprep.subr.mxu0 0.0
    %5324 = vmatpush1.msra.mxu0 %v4874
    %5325 = vmatprep.subr.mxu0 0.0
    %5326 = vmatpush1.msra.mxu0 %v4875
    %5327 = vmatprep.subr.mxu0 0.0
    %5328 = vmatpush1.msra.mxu0 %v4876
    %5329 = vmatprep.subr.mxu0 0.0
    %5330 = vmatpush1.msra.mxu0 %v4877
    %5331 = vmatprep.subr.mxu0 0.0
    %5332 = vmatpush1.msra.mxu0 %v4878
    %5333 = vmatprep.subr.mxu0 0.0
    %5334 = vmatpush1.msra.mxu0 %v4879
    %5335 = vmatprep.subr.mxu0 0.0
    %5336 = vmatpush1.msra.mxu0 %v4880
    %5337 = vmatprep.subr.mxu0 0.0
    %5338 = vmatpush1.msra.mxu0 %v4881
    %5339 = vmatprep.subr.mxu0 0.0
    %5340 = vmatpush1.msra.mxu0 %v4882
    %5341 = vmatprep.subr.mxu0 0.0
    %5342 = vmatpush1.msra.mxu0 %v4883
    %5343 = vmatprep.subr.mxu0 0.0
    %5344 = vmatpush1.msra.mxu0 %v4884
    %5345 = vmatprep.subr.mxu0 0.0
    %5346 = vmatpush1.msra.mxu0 %v4885
    %5347 = vmatprep.subr.mxu0 0.0
    %5348 = vmatpush1.msra.mxu0 %v4886
    %5349 = vmatprep.subr.mxu0 0.0
    %5350 = vmatpush1.msra.mxu0 %v4887
    %5351 = vmatprep.subr.mxu0 0.0
    %5352 = vmatpush1.msra.mxu0 %v4888
    %5353 = vmatprep.subr.mxu0 0.0
    %5354 = vmatpush1.msra.mxu0 %v4889
    %5355 = vmatprep.subr.mxu0 0.0
    %5356 = vmatpush1.msra.mxu0 %v4890
    %5357 = vmatprep.subr.mxu0 0.0
    %5358 = vmatpush1.msra.mxu0 %v4891
    %5359 = vmatprep.subr.mxu0 0.0
    %5360 = vmatpush1.msra.mxu0 %v4892
    %5361 = vmatprep.subr.mxu0 0.0
    %5362 = vmatpush1.msra.mxu0 %v4893
    %5363 = vmatprep.subr.mxu0 0.0
    %5364 = vmatpush1.msra.mxu0 %v4894
    %5365 = vmatprep.subr.mxu0 0.0
    %5366 = vmatpush1.msra.mxu0 %v4895
    %5367 = vmatprep.subr.mxu0 0.0
    %5368 = vmatpush1.msra.mxu0 %v4896
    %5369 = vmatprep.subr.mxu0 0.0
    %5370 = vmatpush1.msra.mxu0 %v4897
    %5371 = vmatprep.subr.mxu0 0.0
    %5372 = vmatpush1.msra.mxu0 %v4898
    %5373 = vmatprep.subr.mxu0 0.0
    %5374 = vmatpush1.msra.mxu0 %v4899
    %5375 = vmatprep.subr.mxu0 0.0
    %5376 = vmatpush1.msra.mxu0 %v4900
    %5377 = vmatprep.subr.mxu0 0.0
    %5378 = vmatpush1.msra.mxu0 %v4901
    %5379 = vmatprep.subr.mxu0 0.0
    %5380 = vmatpush1.msra.mxu0 %v4902
    %5381 = vmatprep.subr.mxu0 0.0
    %5382 = vmatpush1.msra.mxu0 %v4903
    %5383 = vmatprep.subr.mxu0 0.0
    %5384 = vmatpush1.msra.mxu0 %v4904
    %5385 = vmatprep.subr.mxu0 0.0
    %5386 = vmatpush1.msra.mxu0 %v4905
    %5387 = vmatprep.mubr.f32.mxu0 %v4851
    %5388 = vmatmul.mubr.f32.gmra.mrb[0].mxu0 %v4850
    %v5389 = vpop.f32.mrb[0].mxu0
    %v5390 = vadd.f32 %v5293, %v5389
    %v5391 = vpop.f32.mrb[0].mxu0
    %5392 = vmatprep.mubr.f32.mxu0 %v4857
    %5393 = vmatmul.mubr.f32.gmra.mrb[0].mxu0 %v4856
    %v5394 = vpop.f32.mrb[0].mxu0
    %v5395 = vadd.f32 %v5298, %v5394
    %v5396 = vpop.f32.mrb[0].mxu0
    %5397 = vmatprep.mubr.f32.mxu0 %v4863
    %5398 = vmatmul.mubr.f32.gmra.mrb[0].mxu0 %v4862
    %v5399 = vpop.f32.mrb[0].mxu0
    %v5400 = vadd.f32 %v5303, %v5399
    %v5401 = vpop.f32.mrb[0].mxu0
    %5402 = vmatprep.mubr.f32.mxu0 %v4869
    %5403 = vmatmul.mubr.f32.gmra.mrb[0].mxu0 %v4868
    %v5404 = vpop.f32.mrb[0].mxu0
    %v5405 = vadd.f32 %v5308, %v5404
    %v5406 = vpop.f32.mrb[0].mxu0
    %5407 = vdwg.mxu0
    %5408 = vmatprep.subr.mxu0 0.0
    %5409 = vmatpush1.msra.mxu0 %v4906
    %5410 = vmatprep.subr.mxu0 0.0
    %5411 = vmatpush1.msra.mxu0 %v4907
    %5412 = vmatprep.subr.mxu0 0.0
    %5413 = vmatpush1.msra.mxu0 %v4908
    %5414 = vmatprep.subr.mxu0 0.0
    %5415 = vmatpush1.msra.mxu0 %v4909
    %5416 = vmatprep.subr.mxu0 0.0
    %5417 = vmatpush1.msra.mxu0 %v4910
    %5418 = vmatprep.subr.mxu0 0.0
    %5419 = vmatpush1.msra.mxu0 %v4911
    %5420 = vmatprep.subr.mxu0 0.0
    %5421 = vmatpush1.msra.mxu0 %v4912
    %5422 = vmatprep.subr.mxu0 0.0
    %5423 = vmatpush1.msra.mxu0 %v4913
    %5424 = vmatprep.subr.mxu0 0.0
    %5425 = vmatpush1.msra.mxu0 %v4914
    %5426 = vmatprep.subr.mxu0 0.0
    %5427 = vmatpush1.msra.mxu0 %v4915
    %5428 = vmatprep.subr.mxu0 0.0
    %5429 = vmatpush1.msra.mxu0 %v4916
    %5430 = vmatprep.subr.mxu0 0.0
    %5431 = vmatpush1.msra.mxu0 %v4917
    %5432 = vmatprep.subr.mxu0 0.0
    %5433 = vmatpush1.msra.mxu0 %v4918
    %5434 = vmatprep.subr.mxu0 0.0
    %5435 = vmatpush1.msra.mxu0 %v4919
    %5436 = vmatprep.subr.mxu0 0.0
    %5437 = vmatpush1.msra.mxu0 %v4920
    %5438 = vmatprep.subr.mxu0 0.0
    %5439 = vmatpush1.msra.mxu0 %v4921
    %5440 = vmatprep.subr.mxu0 0.0
    %5441 = vmatpush1.msra.mxu0 %v4922
    %5442 = vmatprep.subr.mxu0 0.0
    %5443 = vmatpush1.msra.mxu0 %v4923
    %5444 = vmatprep.subr.mxu0 0.0
    %5445 = vmatpush1.msra.mxu0 %v4924
    %5446 = vmatprep.subr.mxu0 0.0
    %5447 = vmatpush1.msra.mxu0 %v4925
    %5448 = vmatprep.subr.mxu0 0.0
    %5449 = vmatpush1.msra.mxu0 %v4926
    %5450 = vmatprep.subr.mxu0 0.0
    %5451 = vmatpush1.msra.mxu0 %v4927
    %5452 = vmatprep.subr.mxu0 0.0
    %5453 = vmatpush1.msra.mxu0 %v4928
    %5454 = vmatprep.subr.mxu0 0.0
    %5455 = vmatpush1.msra.mxu0 %v4929
    %5456 = vmatprep.subr.mxu0 0.0
    %5457 = vmatpush1.msra.mxu0 %v4930
    %5458 = vmatprep.subr.mxu0 0.0
    %5459 = vmatpush1.msra.mxu0 %v4931
    %5460 = vmatprep.subr.mxu0 0.0
    %5461 = vmatpush1.msra.mxu0 %v4932
    %5462 = vmatprep.subr.mxu0 0.0
    %5463 = vmatpush1.msra.mxu0 %v4933
    %5464 = vmatprep.subr.mxu0 0.0
    %5465 = vmatpush1.msra.mxu0 %v4934
    %5466 = vmatprep.subr.mxu0 0.0
    %5467 = vmatpush1.msra.mxu0 %v4935
    %5468 = vmatprep.subr.mxu0 0.0
    %5469 = vmatpush1.msra.mxu0 %v4936
    %5470 = vmatprep.subr.mxu0 0.0
    %5471 = vmatpush1.msra.mxu0 %v4937
    %5472 = vmatprep.mubr.f32.mxu0 %v4853
    %5473 = vmatmul.mubr.f32.gmra.mrb[0].mxu0 %v4852
    %v5474 = vpop.f32.mrb[0].mxu0
    %v5475 = vadd.f32 %v5390, %v5474
    %v5476 = vpop.f32.mrb[0].mxu0
    %5477 = vmatprep.mubr.f32.mxu0 %v4859
    %5478 = vmatmul.mubr.f32.gmra.mrb[0].mxu0 %v4858
    %v5479 = vpop.f32.mrb[0].mxu0
    %v5480 = vadd.f32 %v5395, %v5479
    %v5481 = vpop.f32.mrb[0].mxu0
    %5482 = vmatprep.mubr.f32.mxu0 %v4865
    %5483 = vmatmul.mubr.f32.gmra.mrb[0].mxu0 %v4864
    %v5484 = vpop.f32.mrb[0].mxu0
    %v5485 = vadd.f32 %v5400, %v5484
    %v5486 = vpop.f32.mrb[0].mxu0
    %5487 = vmatprep.mubr.f32.mxu0 %v4871
    %5488 = vmatmul.mubr.f32.gmra.mrb[0].mxu0 %v4870
    %v5489 = vpop.f32.mrb[0].mxu0
    %v5490 = vadd.f32 %v5405, %v5489
    %v5491 = vpop.f32.mrb[0].mxu0
    %5492 = vdwg.mxu0
    %5493 = vmatprep.subr.mxu0 0.0
    %5494 = vmatpush1.msra.mxu0 %v4938
    %5495 = vmatprep.subr.mxu0 0.0
    %5496 = vmatpush1.msra.mxu0 %v4939
    %5497 = vmatprep.subr.mxu0 0.0
    %5498 = vmatpush1.msra.mxu0 %v4940
    %5499 = vmatprep.subr.mxu0 0.0
    %5500 = vmatpush1.msra.mxu0 %v4941
    %5501 = vmatprep.subr.mxu0 0.0
    %5502 = vmatpush1.msra.mxu0 %v4942
    %5503 = vmatprep.subr.mxu0 0.0
    %5504 = vmatpush1.msra.mxu0 %v4943
    %5505 = vmatprep.subr.mxu0 0.0
    %5506 = vmatpush1.msra.mxu0 %v4944
    %5507 = vmatprep.subr.mxu0 0.0
    %5508 = vmatpush1.msra.mxu0 %v4945
    %5509 = vmatprep.subr.mxu0 0.0
    %5510 = vmatpush1.msra.mxu0 %v4946
    %5511 = vmatprep.subr.mxu0 0.0
    %5512 = vmatpush1.msra.mxu0 %v4947
    %5513 = vmatprep.subr.mxu0 0.0
    %5514 = vmatpush1.msra.mxu0 %v4948
    %5515 = vmatprep.subr.mxu0 0.0
    %5516 = vmatpush1.msra.mxu0 %v4949
    %5517 = vmatprep.subr.mxu0 0.0
    %5518 = vmatpush1.msra.mxu0 %v4950
    %5519 = vmatprep.subr.mxu0 0.0
    %5520 = vmatpush1.msra.mxu0 %v4951
    %5521 = vmatprep.subr.mxu0 0.0
    %5522 = vmatpush1.msra.mxu0 %v4952
    %5523 = vmatprep.subr.mxu0 0.0
    %5524 = vmatpush1.msra.mxu0 %v4953
    %5525 = vmatprep.subr.mxu0 0.0
    %5526 = vmatpush1.msra.mxu0 %v4954
    %5527 = vmatprep.subr.mxu0 0.0
    %5528 = vmatpush1.msra.mxu0 0.0
    %5529 = vmatprep.subr.mxu0 0.0
    %5530 = vmatpush1.msra.mxu0 0.0
    %5531 = vmatprep.subr.mxu0 0.0
    %5532 = vmatpush1.msra.mxu0 0.0
    %5533 = vmatprep.subr.mxu0 0.0
    %5534 = vmatpush1.msra.mxu0 0.0
    %5535 = vmatprep.subr.mxu0 0.0
    %5536 = vmatpush1.msra.mxu0 0.0
    %5537 = vmatprep.subr.mxu0 0.0
    %5538 = vmatpush1.msra.mxu0 0.0
    %5539 = vmatprep.subr.mxu0 0.0
    %5540 = vmatpush1.msra.mxu0 0.0
    %5541 = vmatprep.subr.mxu0 0.0
    %5542 = vmatpush1.msra.mxu0 0.0
    %5543 = vmatprep.subr.mxu0 0.0
    %5544 = vmatpush1.msra.mxu0 0.0
    %5545 = vmatprep.subr.mxu0 0.0
    %5546 = vmatpush1.msra.mxu0 0.0
    %5547 = vmatprep.subr.mxu0 0.0
    %5548 = vmatpush1.msra.mxu0 0.0
    %5549 = vmatprep.subr.mxu0 0.0
    %5550 = vmatpush1.msra.mxu0 0.0
    %5551 = vmatprep.subr.mxu0 0.0
    %5552 = vmatpush1.msra.mxu0 0.0
    %5553 = vmatprep.subr.mxu0 0.0
    %5554 = vmatpush1.msra.mxu0 0.0
    %5555 = vmatprep.subr.mxu0 0.0
    %5556 = vmatpush1.msra.mxu0 0.0
    %5557 = vmatprep.mubr.f32.mxu0 %v5312
    %5558 = vmatmul.mubr.f32.gmra.mrb[0].mxu0 %v4854
    %v5559 = vpop.f32.mrb[0].mxu0
    %v5560 = vadd.f32 %v5475, %v5559
    %v5561 = vpop.f32.mrb[0].mxu0
    %5562 = vmatprep.mubr.f32.mxu0 %v5315
    %5563 = vmatmul.mubr.f32.gmra.mrb[0].mxu0 %v4860
    %v5564 = vpop.f32.mrb[0].mxu0
    %v5565 = vadd.f32 %v5480, %v5564
    %v5566 = vpop.f32.mrb[0].mxu0
    %5567 = vmatprep.mubr.f32.mxu0 %v5318
    %5568 = vmatmul.mubr.f32.gmra.mrb[0].mxu0 %v4866
    %v5569 = vpop.f32.mrb[0].mxu0
    %v5570 = vadd.f32 %v5485, %v5569
    %v5571 = vpop.f32.mrb[0].mxu0
    %5572 = vmatprep.mubr.f32.mxu0 %v5321
    %5573 = vmatmul.mubr.f32.gmra.mrb[0].mxu0 %v4872
    %v5574 = vpop.f32.mrb[0].mxu0
    %v5575 = vadd.f32 %v5490, %v5574
    %v5576 = vpop.f32.mrb[0].mxu0
    %5577 = vdwg.mxu0
    %5578 = vst [vmem:[#allocation4] sm:$0xff] %v5560
    %5579 = vst [vmem:[#allocation4 + $0x8] sm:$0xff] %v5565
    %5580 = vst [vmem:[#allocation4 + $0x10] sm:$0xff] %v5570
    %5581 = vst [vmem:[#allocation4 + $0x18] sm:$0xff] %v5575
    // Predicated region
    $region54: #{tpu_custom_call.1} parent=1 // pred_check
      _
    $region55: #{tpu_custom_call.1} parent=1 // pred_check_branch
      %5583 = sbr.rel (0) target = $region57
    $region56: #{tpu_custom_call.1} parent=1 // pred_region
      %s5585 = ssub.s32 512, 512
      %5586 = vsyncadd [#allocation5], %s5585
      %s5587 = sshll.u32 [#allocation4], 4
      %s5588 = int_to_ptr.vmem [resolvable:$true] %s5587
      %5593 = dma.vmem_to_hbm [thread:$0]  %s5588, 512, %s13, [#allocation5], 128, 128, 8
    $region57: #{tpu_custom_call.1} parent=1 // pred_fallthru
      _
    // Predicated region
    $region58: #{tpu_custom_call.1} parent=1 // pred_check
      _
    $region59: #{tpu_custom_call.1} parent=1 // pred_check_branch
      %5595 = sbr.rel (0) target = $region61
    $region60: #{tpu_custom_call.1} parent=1 // pred_region
      %5596 = dma.done [#allocation5], 512
    $region61: #{tpu_custom_call.1} parent=1 // pred_fallthru
      _
    %5597 = vsyncpa [#allocation5], 1

</llo_original>
